<compile_context>
chip_gen: v7x
topology: tpu7x:2x2x1
jax: 0.10.0
libtpu: 0.0.40
codegen_flags: <defaults>
</compile_context>

<pallas_src>
import math

import jax
import jax.numpy as jnp
from jax.experimental import pallas as pl
from jax.experimental.pallas import tpu as pltpu

BOTTLENECK = 16
IN_DIM = BOTTLENECK * 2          # 32
H1 = 512
H2 = 1024
OUT_DIM = 3 * 28 * 28            # 2352 (ragged: 2352 % 128 == 48)
OUT_PAD = 2560                   # 20 * 128 -> lane-dense output / w3 / b3
TN = 512                         # N-tile of the third layer (5 tiles of 2560)


def mlp_decoder_kernel(z_ref, w1_ref, b1_ref, w2_ref, b2_ref, w3_ref, b3_ref,
                       o_ref, h2_ref):
    # Layers 1 & 2 run once per batch block (on the first N tile); the bf16 h2
    # activation is cached in VMEM scratch and reused for every w3 N tile.
    @pl.when(pl.program_id(1) == 0)
    def _():
        z = z_ref[...].astype(jnp.bfloat16)
        h1 = jnp.dot(z, w1_ref[...], preferred_element_type=jnp.float32) + b1_ref[...]
        h1 = jnp.maximum(h1, 0.0).astype(jnp.bfloat16)
        h2 = jnp.dot(h1, w2_ref[...], preferred_element_type=jnp.float32) + b2_ref[...]
        h2_ref[...] = jnp.maximum(h2, 0.0).astype(jnp.bfloat16)

    # Layer 3 on the current lane-dense (TB, TN) tile of the padded output.
    logits = jnp.dot(h2_ref[...], w3_ref[...],
                     preferred_element_type=jnp.float32) + b3_ref[...]
    o_ref[...] = jax.nn.sigmoid(logits)


def _batch_tile(B):
    # Full batch as one block unless B splits cleanly into 128-row tiles
    # (second-to-last block dim must be a multiple of 8 or equal the full dim).
    if B > 128 and B % 128 == 0:
        return 128
    return B


def mlp_decoder_forward(z, params):
    """z: (B, 32) float32 -> (B, 3, 28, 28) float32."""
    w1, b1, w2, b2, w3, b3 = params          # bf16 weights, f32 biases, w3/b3 padded
    B = z.shape[0]
    TB = _batch_tile(B)
    nb = B // TB
    nj = OUT_PAD // TN

    weight_bytes = (w1.size + w2.size + w3.size) * 2 + (b1.size + b2.size + b3.size) * 4
    cost = pl.CostEstimate(
        flops=2 * B * (IN_DIM * H1 + H1 * H2 + H2 * OUT_PAD),
        transcendentals=B * OUT_PAD,
        bytes_accessed=weight_bytes + B * (IN_DIM + OUT_PAD) * 4,
    )

    flat = pl.pallas_call(
        mlp_decoder_kernel,
        out_shape=jax.ShapeDtypeStruct((B, OUT_PAD), jnp.float32),
        grid=(nb, nj),
        in_specs=[
            pl.BlockSpec((TB, IN_DIM), lambda i, j: (i, 0)),   # z
            pl.BlockSpec((IN_DIM, H1), lambda i, j: (0, 0)),   # w1 (resident)
            pl.BlockSpec((1, H1), lambda i, j: (0, 0)),        # b1
            pl.BlockSpec((H1, H2), lambda i, j: (0, 0)),       # w2 (resident)
            pl.BlockSpec((1, H2), lambda i, j: (0, 0)),        # b2
            pl.BlockSpec((H2, TN), lambda i, j: (0, j)),       # w3 (N-tiled, pipelined)
            pl.BlockSpec((1, TN), lambda i, j: (0, j)),        # b3 (N-tiled)
        ],
        out_specs=pl.BlockSpec((TB, TN), lambda i, j: (i, j)),
        scratch_shapes=[pltpu.VMEM((TB, H2), jnp.bfloat16)],   # cached h2
        compiler_params=pltpu.CompilerParams(
            dimension_semantics=("parallel", "arbitrary"),
            vmem_limit_bytes=32 << 20,                          # fits v5e/v6e/v7x
        ),
        cost_estimate=cost,
    )(z, w1, b1, w2, b2, w3, b3)

    # Drop the lane padding, then same as torch: x_hat.view(B, 3, 28, 28) (NCHW).
    return flat[:, :OUT_DIM].reshape(B, 3, 28, 28)


def init_params(key):
    """Deterministic init mimicking nn.Linear's uniform(-1/sqrt(fan_in), 1/sqrt(fan_in)).

    Weights are stored (in_features, out_features) (transposed vs torch) in bfloat16;
    biases stay f32 as (1, out_features).  w3/b3 are zero-padded to OUT_PAD columns."""
    def linear(key, fan_in, fan_out):
        kw, kb = jax.random.split(key)
        bound = 1.0 / math.sqrt(fan_in)
        w = jax.random.uniform(kw, (fan_in, fan_out), jnp.float32, -bound, bound)
        b = jax.random.uniform(kb, (1, fan_out), jnp.float32, -bound, bound)
        return w, b

    k1, k2, k3 = jax.random.split(key, 3)
    w1, b1 = linear(k1, IN_DIM, H1)
    w2, b2 = linear(k2, H1, H2)
    w3, b3 = linear(k3, H2, OUT_DIM)

    pad = OUT_PAD - OUT_DIM
    w3 = jnp.pad(w3, ((0, 0), (0, pad)))
    b3 = jnp.pad(b3, ((0, 0), (0, pad)))

    return (w1.astype(jnp.bfloat16), b1,
            w2.astype(jnp.bfloat16), b2,
            w3.astype(jnp.bfloat16), b3)


def reference_forward(z, params):
    """Pure-JAX reference with the same bf16-weight / f32-accumulate math."""
    w1, b1, w2, b2, w3, b3 = params
    zb = z.astype(jnp.bfloat16)
    h1 = jnp.maximum(jnp.dot(zb, w1, preferred_element_type=jnp.float32) + b1, 0.0)
    h2 = jnp.maximum(
        jnp.dot(h1.astype(jnp.bfloat16), w2, preferred_element_type=jnp.float32) + b2, 0.0)
    logits = jnp.dot(h2.astype(jnp.bfloat16), w3, preferred_element_type=jnp.float32) + b3
    out = jax.nn.sigmoid(logits)[:, :OUT_DIM]
    return out.reshape(z.shape[0], 3, 28, 28)


if __name__ == "__main__":
    key = jax.random.PRNGKey(0)
    k_params, k_z = jax.random.split(key)

    params = init_params(k_params)
    B = 2
    z = jax.random.normal(k_z, (B, IN_DIM), jnp.float32)

    x_hat = mlp_decoder_forward(z, params)
    x_hat = jax.block_until_ready(x_hat)

    assert x_hat.shape == (B, 3, 28, 28), x_hat.shape
    assert bool(jnp.all(jnp.isfinite(x_hat))), "non-finite output"

    ref = jax.block_until_ready(reference_forward(z, params))
    assert jnp.allclose(x_hat, ref, atol=1e-4, rtol=1e-4), "mismatch vs reference"

    print("KERNEL_OK")
</pallas_src>

<mosaic_0001>
module attributes {stable_mosaic.version = 11 : i64} {
  func.func @mlp_decoder_kernel(%arg0: i32, %arg1: i32, %arg2: memref<2x32xf32, #tpu.memory_space<vmem>>, %arg3: memref<32x512xbf16, #tpu.memory_space<vmem>>, %arg4: memref<1x512xf32, #tpu.memory_space<vmem>>, %arg5: memref<512x1024xbf16, #tpu.memory_space<vmem>>, %arg6: memref<1x1024xf32, #tpu.memory_space<vmem>>, %arg7: memref<1024x512xbf16, #tpu.memory_space<vmem>>, %arg8: memref<1x512xf32, #tpu.memory_space<vmem>>, %arg9: memref<2x512xf32, #tpu.memory_space<vmem>>, %arg10: memref<2x1024xbf16, #tpu.memory_space<vmem>>) attributes {dimension_semantics = [#tpu.dimension_semantics<parallel>, #tpu.dimension_semantics<arbitrary>], iteration_bounds = array<i64: 1, 5>, scalar_prefetch = 0 : i64, scratch_operands = 1 : i64, tpu.core_type = #tpu.core_type<tc>, window_params = [{transform_indices = @transform_0, window_bounds = array<i64: 2, 32>}, {pipeline_mode = #tpu.pipeline_mode<synchronous>, transform_indices = @transform_1, window_bounds = array<i64: 32, 512>}, {pipeline_mode = #tpu.pipeline_mode<synchronous>, transform_indices = @transform_2, window_bounds = array<i64: 1, 512>}, {pipeline_mode = #tpu.pipeline_mode<synchronous>, transform_indices = @transform_3, window_bounds = array<i64: 512, 1024>}, {pipeline_mode = #tpu.pipeline_mode<synchronous>, transform_indices = @transform_4, window_bounds = array<i64: 1, 1024>}, {transform_indices = @transform_5, window_bounds = array<i64: 1024, 512>}, {transform_indices = @transform_6, window_bounds = array<i64: 1, 512>}, {transform_indices = @transform_7, window_bounds = array<i64: 2, 512>}]} {
    %c0_i32 = arith.constant 0 : i32
    %0 = arith.cmpi eq, %arg1, %c0_i32 : i32
    %1 = arith.extui %0 : i1 to i32
    %c0_i32_0 = arith.constant 0 : i32
    %2 = arith.cmpi ne, %1, %c0_i32_0 : i32
    scf.if %2 {
      %c0_9 = arith.constant 0 : index
      %c0_10 = arith.constant 0 : index
      %15 = vector.load %arg2[%c0_9, %c0_10] : memref<2x32xf32, #tpu.memory_space<vmem>>, vector<2x32xf32>
      %16 = arith.truncf %15 : vector<2x32xf32> to vector<2x32xbf16>
      %c0_11 = arith.constant 0 : index
      %c0_12 = arith.constant 0 : index
      %17 = vector.load %arg3[%c0_11, %c0_12] : memref<32x512xbf16, #tpu.memory_space<vmem>>, vector<32x512xbf16>
      %cst_13 = arith.constant dense<0.000000e+00> : vector<2x512xf32>
      %18 = tpu.matmul %16, %17, %cst_13 {dimension_numbers = #tpu.dot_dimension_numbers<[1], [0], [0], [1], [0, 0, 1, 1], [], []>} : vector<2x32xbf16>, vector<32x512xbf16>, vector<2x512xf32> -> vector<2x512xf32>
      %c0_14 = arith.constant 0 : index
      %c0_15 = arith.constant 0 : index
      %19 = vector.load %arg4[%c0_14, %c0_15] : memref<1x512xf32, #tpu.memory_space<vmem>>, vector<1x512xf32>
      %20 = vector.broadcast %19 : vector<1x512xf32> to vector<2x512xf32>
      %21 = arith.addf %18, %20 : vector<2x512xf32>
      %cst_16 = arith.constant 0.000000e+00 : f32
      %22 = vector.broadcast %cst_16 : f32 to vector<2x512xf32>
      %23 = arith.maximumf %21, %22 : vector<2x512xf32>
      %24 = arith.truncf %23 : vector<2x512xf32> to vector<2x512xbf16>
      %c0_17 = arith.constant 0 : index
      %c0_18 = arith.constant 0 : index
      %25 = vector.load %arg5[%c0_17, %c0_18] : memref<512x1024xbf16, #tpu.memory_space<vmem>>, vector<512x1024xbf16>
      %cst_19 = arith.constant dense<0.000000e+00> : vector<2x1024xf32>
      %26 = tpu.matmul %24, %25, %cst_19 {dimension_numbers = #tpu.dot_dimension_numbers<[1], [0], [0], [1], [0, 0, 1, 1], [], []>} : vector<2x512xbf16>, vector<512x1024xbf16>, vector<2x1024xf32> -> vector<2x1024xf32>
      %c0_20 = arith.constant 0 : index
      %c0_21 = arith.constant 0 : index
      %27 = vector.load %arg6[%c0_20, %c0_21] : memref<1x1024xf32, #tpu.memory_space<vmem>>, vector<1x1024xf32>
      %28 = vector.broadcast %27 : vector<1x1024xf32> to vector<2x1024xf32>
      %29 = arith.addf %26, %28 : vector<2x1024xf32>
      %cst_22 = arith.constant 0.000000e+00 : f32
      %30 = vector.broadcast %cst_22 : f32 to vector<2x1024xf32>
      %31 = arith.maximumf %29, %30 : vector<2x1024xf32>
      %32 = arith.truncf %31 : vector<2x1024xf32> to vector<2x1024xbf16>
      %c0_23 = arith.constant 0 : index
      %c0_24 = arith.constant 0 : index
      %33 = vector.load %arg10[%c0_23, %c0_24] : memref<2x1024xbf16, #tpu.memory_space<vmem>>, vector<2x1024xbf16>
      tpu.vector_store %arg10[%c0_23, %c0_24], %32 {strides = array<i32>} : memref<2x1024xbf16, #tpu.memory_space<vmem>>, vector<2x1024xbf16>,
    } else {
    }
    %c0 = arith.constant 0 : index
    %c0_1 = arith.constant 0 : index
    %3 = vector.load %arg10[%c0, %c0_1] : memref<2x1024xbf16, #tpu.memory_space<vmem>>, vector<2x1024xbf16>
    %c0_2 = arith.constant 0 : index
    %c0_3 = arith.constant 0 : index
    %4 = vector.load %arg7[%c0_2, %c0_3] : memref<1024x512xbf16, #tpu.memory_space<vmem>>, vector<1024x512xbf16>
    %cst = arith.constant dense<0.000000e+00> : vector<2x512xf32>
    %5 = tpu.matmul %3, %4, %cst {dimension_numbers = #tpu.dot_dimension_numbers<[1], [0], [0], [1], [0, 0, 1, 1], [], []>} : vector<2x1024xbf16>, vector<1024x512xbf16>, vector<2x512xf32> -> vector<2x512xf32>
    %c0_4 = arith.constant 0 : index
    %c0_5 = arith.constant 0 : index
    %6 = vector.load %arg8[%c0_4, %c0_5] : memref<1x512xf32, #tpu.memory_space<vmem>>, vector<1x512xf32>
    %7 = vector.broadcast %6 : vector<1x512xf32> to vector<2x512xf32>
    %8 = arith.addf %5, %7 : vector<2x512xf32>
    %9 = arith.negf %8 : vector<2x512xf32>
    %10 = math.exp %9 : vector<2x512xf32>
    %cst_6 = arith.constant 1.000000e+00 : f32
    %11 = vector.broadcast %cst_6 : f32 to vector<2x512xf32>
    %12 = arith.addf %11, %10 : vector<2x512xf32>
    %13 = arith.divf %11, %12 : vector<2x512xf32>
    %c0_7 = arith.constant 0 : index
    %c0_8 = arith.constant 0 : index
    %14 = vector.load %arg9[%c0_7, %c0_8] : memref<2x512xf32, #tpu.memory_space<vmem>>, vector<2x512xf32>
    tpu.vector_store %arg9[%c0_7, %c0_8], %13 {strides = array<i32>} : memref<2x512xf32, #tpu.memory_space<vmem>>, vector<2x512xf32>,
    return
  }
  func.func @transform_0(%arg0: i32, %arg1: i32) -> (i32, i32) {
    %c0_i32 = arith.constant 0 : i32
    %c0_i32_0 = arith.constant 0 : i32
    return %arg0, %c0_i32 : i32, i32
  }
  func.func @transform_1(%arg0: i32, %arg1: i32) -> (i32, i32) {
    %c0_i32 = arith.constant 0 : i32
    %c0_i32_0 = arith.constant 0 : i32
    %c0_i32_1 = arith.constant 0 : i32
    return %c0_i32, %c0_i32_0 : i32, i32
  }
  func.func @transform_2(%arg0: i32, %arg1: i32) -> (i32, i32) {
    %c0_i32 = arith.constant 0 : i32
    %c0_i32_0 = arith.constant 0 : i32
    %c0_i32_1 = arith.constant 0 : i32
    return %c0_i32, %c0_i32_0 : i32, i32
  }
  func.func @transform_3(%arg0: i32, %arg1: i32) -> (i32, i32) {
    %c0_i32 = arith.constant 0 : i32
    %c0_i32_0 = arith.constant 0 : i32
    %c0_i32_1 = arith.constant 0 : i32
    return %c0_i32, %c0_i32_0 : i32, i32
  }
  func.func @transform_4(%arg0: i32, %arg1: i32) -> (i32, i32) {
    %c0_i32 = arith.constant 0 : i32
    %c0_i32_0 = arith.constant 0 : i32
    %c0_i32_1 = arith.constant 0 : i32
    return %c0_i32, %c0_i32_0 : i32, i32
  }
  func.func @transform_5(%arg0: i32, %arg1: i32) -> (i32, i32) {
    %c0_i32 = arith.constant 0 : i32
    %c0_i32_0 = arith.constant 0 : i32
    return %c0_i32, %arg1 : i32, i32
  }
  func.func @transform_6(%arg0: i32, %arg1: i32) -> (i32, i32) {
    %c0_i32 = arith.constant 0 : i32
    %c0_i32_0 = arith.constant 0 : i32
    return %c0_i32, %arg1 : i32, i32
  }
  func.func @transform_7(%arg0: i32, %arg1: i32) -> (i32, i32) {
    %c0_i32 = arith.constant 0 : i32
    return %arg0, %arg1 : i32, i32
  }
}

</mosaic_0001>

<llo_original>
// kernel: tpu_custom_call.1
$region0: #{tpu_custom_call.1}
  #allocation0 [shape = 'u32[]', space=smem, size = 0x4, offset = 0x4, fixed_abs, tag = 'smem constant byte address 0x4 - core index']
  #allocation1 [shape = 'u32[144,128]{1,0:T(1,128)}', space=vmem, size = 0x12000, scoped, tag = 'internal scratch']
  #allocation2 [shape = 'bf16[2,1024]{1,0:T(2,128)(2,1)}', space=vmem, size = 0x1000, scoped, tag = 'scratch operand']
  %s0 = inlined_call_operand.hbm [shape: f32[2,32], index: 0, kind: input, shape index: {}]
  %s1 = inlined_call_operand.hbm [shape: bf16[32,512], index: 1, kind: input, shape index: {}]
  %s2 = inlined_call_operand.hbm [shape: f32[1,512], index: 2, kind: input, shape index: {}]
  %s3 = inlined_call_operand.hbm [shape: bf16[512,1024], index: 3, kind: input, shape index: {}]
  %s4 = inlined_call_operand.hbm [shape: f32[1,1024], index: 4, kind: input, shape index: {}]
  %s5 = inlined_call_operand.hbm [shape: bf16[1024,2560], index: 5, kind: input, shape index: {}]
  %s6 = inlined_call_operand.hbm [shape: f32[1,2560], index: 6, kind: input, shape index: {}]
  %s7 = inlined_call_operand.hbm [shape: f32[2,2560], index: 7, kind: output, shape index: {}]
  %s8 = sld [smem:[#allocation0]]
  $region93: #{tpu_custom_call.1} parent=0
    _
  %s10 = ssub.s32 1, %s8
  %s11 = scalar_select 0, %s10, %s8
  $region1: #{tpu_custom_call.1} parent=0
    #allocation3 [shape = 'u8[1024]{0}', space=vmem, size = 0x400, scoped, tag = 'input window, operand 0, single buffered']
    #allocation4 [shape = 's32[2]{0}', space=sflag, size = 0x8, scoped, tag = 'scoped memory for tpu_custom_call.1']
    #allocation5 [shape = 's32[2]{0}', space=sflag, size = 0x8, scoped, tag = 'scoped memory for tpu_custom_call.1']
    #allocation6 [shape = 'u8[32768]{0}', space=vmem, size = 0x8000, scoped, tag = 'input window, operand 1, single buffered']
    #allocation7 [shape = 's32[1]{0}', space=sflag, size = 0x4, scoped, tag = 'scoped memory for tpu_custom_call.1']
    #allocation8 [shape = 'u8[2048]{0}', space=vmem, size = 0x800, scoped, tag = 'input window, operand 2, single buffered']
    #allocation9 [shape = 'u8[1048576]{0}', space=vmem, size = 0x100000, scoped, tag = 'input window, operand 3, single buffered']
    #allocation10 [shape = 's32[1]{0}', space=sflag, size = 0x4, scoped, tag = 'scoped memory for tpu_custom_call.1']
    #allocation11 [shape = 'u8[4096]{0}', space=vmem, size = 0x1000, scoped, tag = 'input window, operand 4, single buffered']
    #allocation12 [shape = 'u8[2097152]{0}', space=vmem, size = 0x200000, scoped, tag = 'input window, operand 5']
    #allocation13 [shape = 's32[2]{0}', space=sflag, size = 0x8, scoped, tag = 'scoped memory for tpu_custom_call.1']
    #allocation14 [shape = 'u8[4096]{0}', space=vmem, size = 0x1000, scoped, tag = 'input window, operand 6']
    #allocation15 [shape = 'u8[8192]{0}', space=vmem, size = 0x2000, scoped, tag = 'output window, operand 0']
    %12 = vsyncpa [#allocation4], 0
    %13 = vsyncpa [#allocation7], 0
    %14 = vsyncpa [#allocation10], 0
    %15 = vsyncpa [#allocation13], 0
    %s16 = scalar_lea.sflag [#allocation13], 1
    %17 = vsyncpa %s16, 0
    %18 = vsyncpa [#allocation5], 0
    %s19 = scalar_lea.sflag [#allocation5], 1
    %20 = vsyncpa %s19, 0
    loop: start=0, step=1, limit=7
    $region2: #{tpu_custom_call.1} parent=1 // loop_pre_header
      _
    $region3: #{tpu_custom_call.1} parent=1 // loop_header
      %s22 = sphi 0, %s26
      %p23 = scmp.ge.s32.totalorder %s22, 7
      %s29 = sphi 0, %s41
      %s30 = sphi 0, %s37
      %s31 = sphi 0, %s29
      %s32 = sphi 0, %s30
      %s33 = sphi 0, %s31
      %s34 = sphi 0, %s32
      %s44 = sphi 0, %s46
      %s47 = sphi 0, %s44
      %s48 = sphi 0, %s47
      %s64 = sphi 0, %s48
      %s68 = sphi 0, %s68
      %s70 = sphi 0, %s68
      %s71 = sphi 0, %s70
      %s85 = sphi 0, %s71
      %s89 = sphi 0, %s89
      %s91 = sphi 0, %s89
      %s92 = sphi 0, %s91
      %s106 = sphi 0, %s92
      %s110 = sphi 0, %s110
      %s112 = sphi 0, %s110
      %s113 = sphi 0, %s112
      %s127 = sphi 0, %s113
      %s131 = sphi 0, %s131
      %s133 = sphi 0, %s131
      %s134 = sphi 0, %s133
      %s148 = sphi 0, %s134
      %s154 = sphi 0, %s156
      %s157 = sphi 0, %s154
      %s158 = sphi 0, %s157
      %s174 = sphi 0, %s158
      %s180 = sphi 0, %s182
      %s183 = sphi 0, %s180
      %s184 = sphi 0, %s183
      %s200 = sphi 0, %s184
      %s208 = sphi 0, %s210
      %s211 = sphi 0, %s208
      %s212 = sphi 0, %s211
      %s228 = sphi 0, %s212
    $region4: #{tpu_custom_call.1} parent=1 // loop_header_branch
      %25 = sbr.rel (%p23) target = $region8
    $region5: #{tpu_custom_call.1} parent=1 // loop_body
      %s27 = ssub.s32 %s22, 1
      %s28 = ssub.s32 %s22, 2
      %s35 = sadd.s32 1, %s30
      %p36 = scmp.ge.s32.totalorder %s35, 5
      %s37 = scalar_select %p36, 0, %s35
      %s38 = sadd.s32 1, %s29
      %s39 = scalar_select %p36, %s38, %s29
      %p40 = scmp.ge.s32.totalorder %s39, 1
      %s41 = scalar_select %p40, 0, %s39
      %s42 = ssub.s32 %s29, %s41
      %p43 = scmp.eq.s32.totalorder %s42, 0
      %s45 = sadd.s32 %s44, 1
      %s46 = scalar_select %p43, %s44, %s45
      %p49 = pneg %p43
      %p50 = scmp.eq.s32.totalorder %s22, 4
      %p51 = por %p49, %p50
      %p52 = scmp.ne.s32.totalorder %s44, %s47
      %p53 = scmp.eq.s32.totalorder %s22, 0
      %p54 = por %p52, %p53
      %p55 = scmp.ne.s32.totalorder %s44, %s47
      %p56 = scmp.eq.s32.totalorder %s27, 4
      %p57 = por %p55, %p56
      %p58 = scmp.ne.s32.totalorder %s47, %s48
      %p59 = scmp.eq.s32.totalorder %s27, 0
      %p60 = por %p58, %p59
      %p61 = scmp.ne.s32.totalorder %s47, %s48
      %p62 = scmp.eq.s32.totalorder %s28, 4
      %p63 = por %p61, %p62
      %p65 = scmp.ne.s32.totalorder %s48, %s64
      %p66 = scmp.eq.s32.totalorder %s28, 0
      %p67 = por %p65, %p66
      %s69 = sadd.s32 %s68, 1
      %p72 = scmp.eq.s32.totalorder %s22, 4
      %p73 = scmp.ne.s32.totalorder %s68, %s70
      %p74 = scmp.eq.s32.totalorder %s22, 0
      %p75 = por %p73, %p74
      %p76 = scmp.ne.s32.totalorder %s68, %s70
      %p77 = scmp.eq.s32.totalorder %s27, 4
      %p78 = por %p76, %p77
      %p79 = scmp.ne.s32.totalorder %s70, %s71
      %p80 = scmp.eq.s32.totalorder %s27, 0
      %p81 = por %p79, %p80
      %p82 = scmp.ne.s32.totalorder %s70, %s71
      %p83 = scmp.eq.s32.totalorder %s28, 4
      %p84 = por %p82, %p83
      %p86 = scmp.ne.s32.totalorder %s71, %s85
      %p87 = scmp.eq.s32.totalorder %s28, 0
      %p88 = por %p86, %p87
      %s90 = sadd.s32 %s89, 1
      %p93 = scmp.eq.s32.totalorder %s22, 4
      %p94 = scmp.ne.s32.totalorder %s89, %s91
      %p95 = scmp.eq.s32.totalorder %s22, 0
      %p96 = por %p94, %p95
      %p97 = scmp.ne.s32.totalorder %s89, %s91
      %p98 = scmp.eq.s32.totalorder %s27, 4
      %p99 = por %p97, %p98
      %p100 = scmp.ne.s32.totalorder %s91, %s92
      %p101 = scmp.eq.s32.totalorder %s27, 0
      %p102 = por %p100, %p101
      %p103 = scmp.ne.s32.totalorder %s91, %s92
      %p104 = scmp.eq.s32.totalorder %s28, 4
      %p105 = por %p103, %p104
      %p107 = scmp.ne.s32.totalorder %s92, %s106
      %p108 = scmp.eq.s32.totalorder %s28, 0
      %p109 = por %p107, %p108
      %s111 = sadd.s32 %s110, 1
      %p114 = scmp.eq.s32.totalorder %s22, 4
      %p115 = scmp.ne.s32.totalorder %s110, %s112
      %p116 = scmp.eq.s32.totalorder %s22, 0
      %p117 = por %p115, %p116
      %p118 = scmp.ne.s32.totalorder %s110, %s112
      %p119 = scmp.eq.s32.totalorder %s27, 4
      %p120 = por %p118, %p119
      %p121 = scmp.ne.s32.totalorder %s112, %s113
      %p122 = scmp.eq.s32.totalorder %s27, 0
      %p123 = por %p121, %p122
      %p124 = scmp.ne.s32.totalorder %s112, %s113
      %p125 = scmp.eq.s32.totalorder %s28, 4
      %p126 = por %p124, %p125
      %p128 = scmp.ne.s32.totalorder %s113, %s127
      %p129 = scmp.eq.s32.totalorder %s28, 0
      %p130 = por %p128, %p129
      %s132 = sadd.s32 %s131, 1
      %p135 = scmp.eq.s32.totalorder %s22, 4
      %p136 = scmp.ne.s32.totalorder %s131, %s133
      %p137 = scmp.eq.s32.totalorder %s22, 0
      %p138 = por %p136, %p137
      %p139 = scmp.ne.s32.totalorder %s131, %s133
      %p140 = scmp.eq.s32.totalorder %s27, 4
      %p141 = por %p139, %p140
      %p142 = scmp.ne.s32.totalorder %s133, %s134
      %p143 = scmp.eq.s32.totalorder %s27, 0
      %p144 = por %p142, %p143
      %p145 = scmp.ne.s32.totalorder %s133, %s134
      %p146 = scmp.eq.s32.totalorder %s28, 4
      %p147 = por %p145, %p146
      %p149 = scmp.ne.s32.totalorder %s134, %s148
      %p150 = scmp.eq.s32.totalorder %s28, 0
      %p151 = por %p149, %p150
      %s152 = ssub.s32 %s30, %s37
      %p153 = scmp.eq.s32.totalorder %s152, 0
      %s155 = sadd.s32 %s154, 1
      %s156 = scalar_select %p153, %s154, %s155
      %p159 = pneg %p153
      %p160 = scmp.eq.s32.totalorder %s22, 4
      %p161 = por %p159, %p160
      %p162 = scmp.ne.s32.totalorder %s154, %s157
      %p163 = scmp.eq.s32.totalorder %s22, 0
      %p164 = por %p162, %p163
      %p165 = scmp.ne.s32.totalorder %s154, %s157
      %p166 = scmp.eq.s32.totalorder %s27, 4
      %p167 = por %p165, %p166
      %p168 = scmp.ne.s32.totalorder %s157, %s158
      %p169 = scmp.eq.s32.totalorder %s27, 0
      %p170 = por %p168, %p169
      %p171 = scmp.ne.s32.totalorder %s157, %s158
      %p172 = scmp.eq.s32.totalorder %s28, 4
      %p173 = por %p171, %p172
      %p175 = scmp.ne.s32.totalorder %s158, %s174
      %p176 = scmp.eq.s32.totalorder %s28, 0
      %p177 = por %p175, %p176
      %s178 = ssub.s32 %s30, %s37
      %p179 = scmp.eq.s32.totalorder %s178, 0
      %s181 = sadd.s32 %s180, 1
      %s182 = scalar_select %p179, %s180, %s181
      %p185 = pneg %p179
      %p186 = scmp.eq.s32.totalorder %s22, 4
      %p187 = por %p185, %p186
      %p188 = scmp.ne.s32.totalorder %s180, %s183
      %p189 = scmp.eq.s32.totalorder %s22, 0
      %p190 = por %p188, %p189
      %p191 = scmp.ne.s32.totalorder %s180, %s183
      %p192 = scmp.eq.s32.totalorder %s27, 4
      %p193 = por %p191, %p192
      %p194 = scmp.ne.s32.totalorder %s183, %s184
      %p195 = scmp.eq.s32.totalorder %s27, 0
      %p196 = por %p194, %p195
      %p197 = scmp.ne.s32.totalorder %s183, %s184
      %p198 = scmp.eq.s32.totalorder %s28, 4
      %p199 = por %p197, %p198
      %p201 = scmp.ne.s32.totalorder %s184, %s200
      %p202 = scmp.eq.s32.totalorder %s28, 0
      %p203 = por %p201, %p202
      %s204 = ssub.s32 %s29, %s41
      %s205 = ssub.s32 %s30, %s37
      %s206 = sor.u32 %s204, %s205
      %p207 = scmp.eq.s32.totalorder %s206, 0
      %s209 = sadd.s32 %s208, 1
      %s210 = scalar_select %p207, %s208, %s209
      %p213 = pneg %p207
      %p214 = scmp.eq.s32.totalorder %s22, 4
      %p215 = por %p213, %p214
      %p216 = scmp.ne.s32.totalorder %s208, %s211
      %p217 = scmp.eq.s32.totalorder %s22, 0
      %p218 = por %p216, %p217
      %p219 = scmp.ne.s32.totalorder %s208, %s211
      %p220 = scmp.eq.s32.totalorder %s27, 4
      %p221 = por %p219, %p220
      %p222 = scmp.ne.s32.totalorder %s211, %s212
      %p223 = scmp.eq.s32.totalorder %s27, 0
      %p224 = por %p222, %p223
      %p225 = scmp.ne.s32.totalorder %s211, %s212
      %p226 = scmp.eq.s32.totalorder %s28, 4
      %p227 = por %p225, %p226
      %p229 = scmp.ne.s32.totalorder %s212, %s228
      %p230 = scmp.eq.s32.totalorder %s28, 0
      %p231 = por %p229, %p230
      %p232 = scmp.le.s32.totalorder 1, %s22
      %p233 = scmp.lt.s32.totalorder %s22, 6
      %p234 = pnand %p232, %p233
      %p235 = pneg %p234
      // Predicated region
      $region9: #{tpu_custom_call.1} parent=5 // pred_check
        _
      $region10: #{tpu_custom_call.1} parent=5 // pred_check_branch
        %237 = sbr.rel (%p234) target = $region12
      $region11: #{tpu_custom_call.1} parent=5 // pred_region
        %s238 = ssub.s32 %s22, 1
        // Predicated region
        $region13: #{tpu_custom_call.1} parent=11 // pred_check
          %p239 = pneg %p60
        $region14: #{tpu_custom_call.1} parent=11 // pred_check_branch
          %241 = sbr.rel (%p239) target = $region16
        $region15: #{tpu_custom_call.1} parent=11 // pred_region
          %s243 = ssub.s32 32, 32
          %244 = vsyncadd [#allocation4], %s243
          %s245 = smul.addr %s31, 32
          %s246 = scalar_lea.hbm %s0, %s245
          %s248 = sshll.u32 [#allocation3], 4
          %s249 = int_to_ptr.vmem [resolvable:$true] %s248
          %251 = dma.hbm_to_vmem [thread:$0]  %s246, 32, %s249, [#allocation4]
        $region16: #{tpu_custom_call.1} parent=11 // pred_fallthru
          _
        // Predicated region
        $region17: #{tpu_custom_call.1} parent=11 // pred_check
          %p252 = pneg %p81
        $region18: #{tpu_custom_call.1} parent=11 // pred_check_branch
          %254 = sbr.rel (%p252) target = $region20
        $region19: #{tpu_custom_call.1} parent=11 // pred_region
          %s256 = ssub.s32 1024, 1024
          %257 = vsyncadd [#allocation7], %s256
          %s258 = sshll.u32 [#allocation6], 4
          %s259 = int_to_ptr.vmem [resolvable:$true] %s258
          %264 = dma.hbm_to_vmem [thread:$0]  %s1, 1024, %s259, [#allocation7], 256, 256, 16
        $region20: #{tpu_custom_call.1} parent=11 // pred_fallthru
          _
        // Predicated region
        $region21: #{tpu_custom_call.1} parent=11 // pred_check
          %p265 = pneg %p102
        $region22: #{tpu_custom_call.1} parent=11 // pred_check_branch
          %267 = sbr.rel (%p265) target = $region24
        $region23: #{tpu_custom_call.1} parent=11 // pred_region
          %s269 = ssub.s32 64, 64
          %270 = vsyncadd [#allocation7], %s269
          %s272 = sshll.u32 [#allocation8], 4
          %s273 = int_to_ptr.vmem [resolvable:$true] %s272
          %275 = dma.hbm_to_vmem [thread:$0]  %s2, 64, %s273, [#allocation7]
        $region24: #{tpu_custom_call.1} parent=11 // pred_fallthru
          _
        // Predicated region
        $region25: #{tpu_custom_call.1} parent=11 // pred_check
          %p276 = pneg %p123
        $region26: #{tpu_custom_call.1} parent=11 // pred_check_branch
          %278 = sbr.rel (%p276) target = $region28
        $region27: #{tpu_custom_call.1} parent=11 // pred_region
          %s280 = ssub.s32 32768, 32768
          %281 = vsyncadd [#allocation10], %s280
          %s282 = sshll.u32 [#allocation9], 4
          %s283 = int_to_ptr.vmem [resolvable:$true] %s282
          %288 = dma.hbm_to_vmem [thread:$0]  %s3, 32768, %s283, [#allocation10], 512, 512, 32
        $region28: #{tpu_custom_call.1} parent=11 // pred_fallthru
          _
        // Predicated region
        $region29: #{tpu_custom_call.1} parent=11 // pred_check
          %p289 = pneg %p144
        $region30: #{tpu_custom_call.1} parent=11 // pred_check_branch
          %291 = sbr.rel (%p289) target = $region32
        $region31: #{tpu_custom_call.1} parent=11 // pred_region
          %s293 = ssub.s32 128, 128
          %294 = vsyncadd [#allocation10], %s293
          %s296 = sshll.u32 [#allocation11], 4
          %s297 = int_to_ptr.vmem [resolvable:$true] %s296
          %299 = dma.hbm_to_vmem [thread:$0]  %s4, 128, %s297, [#allocation10]
        $region32: #{tpu_custom_call.1} parent=11 // pred_fallthru
          _
      $region12: #{tpu_custom_call.1} parent=5 // pred_fallthru
        _
      %p300 = scmp.lt.s32.totalorder %s22, 5
      // Predicated region
      $region33: #{tpu_custom_call.1} parent=5 // pred_check
        %p301 = pneg %p300
      $region34: #{tpu_custom_call.1} parent=5 // pred_check_branch
        %303 = sbr.rel (%p301) target = $region36
      $region35: #{tpu_custom_call.1} parent=5 // pred_region
        // Predicated region
        $region37: #{tpu_custom_call.1} parent=35 // pred_check
          %p304 = pneg %p164
        $region38: #{tpu_custom_call.1} parent=35 // pred_check_branch
          %306 = sbr.rel (%p304) target = $region40
        $region39: #{tpu_custom_call.1} parent=35 // pred_region
          %s307 = sand.u32 %s22, 1
          %s308 = scalar_lea.sflag [#allocation13], %s307
          %s309 = sand.u32 %s154, 1
          %s310 = smul.addr %s309, 2048
          %s311 = scalar_lea.vmem [#allocation12], %s310
          %s312 = smul.u32 4, %s30
          %s314 = ssub.s32 32768, 32768
          %315 = vsyncadd %s308, %s314
          %s316 = smul.addr %s312, 64
          %s317 = scalar_lea.hbm %s5, %s316
          %s318 = sshll.u32 %s311, 4
          %s319 = int_to_ptr.vmem [resolvable:$true] %s318
          %324 = dma.hbm_to_vmem [thread:$0]  %s317, 32768, %s319, %s308, 1280, 256, 16
        $region40: #{tpu_custom_call.1} parent=35 // pred_fallthru
          _
        // Predicated region
        $region41: #{tpu_custom_call.1} parent=35 // pred_check
          %p325 = pneg %p190
        $region42: #{tpu_custom_call.1} parent=35 // pred_check_branch
          %327 = sbr.rel (%p325) target = $region44
        $region43: #{tpu_custom_call.1} parent=35 // pred_region
          %s328 = sand.u32 %s22, 1
          %s329 = scalar_lea.sflag [#allocation13], %s328
          %s330 = sand.u32 %s180, 1
          %s331 = smul.addr %s330, 4
          %s332 = scalar_lea.vmem [#allocation14], %s331
          %s333 = smul.u32 4, %s30
          %s335 = ssub.s32 64, 64
          %336 = vsyncadd %s329, %s335
          %s337 = smul.addr %s333, 16
          %s338 = scalar_lea.hbm %s6, %s337
          %s340 = sshll.u32 %s332, 4
          %s341 = int_to_ptr.vmem [resolvable:$true] %s340
          %343 = dma.hbm_to_vmem [thread:$0]  %s338, 64, %s341, %s329
        $region44: #{tpu_custom_call.1} parent=35 // pred_fallthru
          _
      $region36: #{tpu_custom_call.1} parent=5 // pred_fallthru
        _
      %p344 = scmp.le.s32.totalorder 1, %s22
      %p345 = scmp.lt.s32.totalorder %s22, 6
      %p346 = pnand %p344, %p345
      %p347 = pneg %p346
      // Predicated region
      $region45: #{tpu_custom_call.1} parent=5 // pred_check
        _
      $region46: #{tpu_custom_call.1} parent=5 // pred_check_branch
        %349 = sbr.rel (%p346) target = $region48
      $region47: #{tpu_custom_call.1} parent=5 // pred_region
        %s350 = ssub.s32 %s22, 1
        // Predicated region
        $region49: #{tpu_custom_call.1} parent=47 // pred_check
          %p351 = pneg %p60
        $region50: #{tpu_custom_call.1} parent=47 // pred_check_branch
          %353 = sbr.rel (%p351) target = $region52
        $region51: #{tpu_custom_call.1} parent=47 // pred_region
          %354 = dma.done [#allocation4], 32
        $region52: #{tpu_custom_call.1} parent=47 // pred_fallthru
          _
        // Predicated region
        $region53: #{tpu_custom_call.1} parent=47 // pred_check
          %p355 = pneg %p81
        $region54: #{tpu_custom_call.1} parent=47 // pred_check_branch
          %357 = sbr.rel (%p355) target = $region56
        $region55: #{tpu_custom_call.1} parent=47 // pred_region
          %358 = dma.done [#allocation7], 1024
        $region56: #{tpu_custom_call.1} parent=47 // pred_fallthru
          _
        // Predicated region
        $region57: #{tpu_custom_call.1} parent=47 // pred_check
          %p359 = pneg %p102
        $region58: #{tpu_custom_call.1} parent=47 // pred_check_branch
          %361 = sbr.rel (%p359) target = $region60
        $region59: #{tpu_custom_call.1} parent=47 // pred_region
          %362 = dma.done [#allocation7], 64
        $region60: #{tpu_custom_call.1} parent=47 // pred_fallthru
          _
        // Predicated region
        $region61: #{tpu_custom_call.1} parent=47 // pred_check
          %p363 = pneg %p123
        $region62: #{tpu_custom_call.1} parent=47 // pred_check_branch
          %365 = sbr.rel (%p363) target = $region64
        $region63: #{tpu_custom_call.1} parent=47 // pred_region
          %366 = dma.done [#allocation10], 32768
        $region64: #{tpu_custom_call.1} parent=47 // pred_fallthru
          _
        // Predicated region
        $region65: #{tpu_custom_call.1} parent=47 // pred_check
          %p367 = pneg %p144
        $region66: #{tpu_custom_call.1} parent=47 // pred_check_branch
          %369 = sbr.rel (%p367) target = $region68
        $region67: #{tpu_custom_call.1} parent=47 // pred_region
          %370 = dma.done [#allocation10], 128
        $region68: #{tpu_custom_call.1} parent=47 // pred_fallthru
          _
        %s371 = sand.u32 %s27, 1
        %s372 = scalar_lea.sflag [#allocation13], %s371
        %s373 = sand.u32 %s157, 1
        %s374 = smul.addr %s373, 2048
        %s375 = scalar_lea.vmem [#allocation12], %s374
        // Predicated region
        $region69: #{tpu_custom_call.1} parent=47 // pred_check
          %p376 = pneg %p170
        $region70: #{tpu_custom_call.1} parent=47 // pred_check_branch
          %378 = sbr.rel (%p376) target = $region72
        $region71: #{tpu_custom_call.1} parent=47 // pred_region
          %379 = dma.done %s372, 32768
        $region72: #{tpu_custom_call.1} parent=47 // pred_fallthru
          _
        %s380 = sand.u32 %s27, 1
        %s381 = scalar_lea.sflag [#allocation13], %s380
        %s382 = sand.u32 %s183, 1
        %s383 = smul.addr %s382, 4
        %s384 = scalar_lea.vmem [#allocation14], %s383
        // Predicated region
        $region73: #{tpu_custom_call.1} parent=47 // pred_check
          %p385 = pneg %p196
        $region74: #{tpu_custom_call.1} parent=47 // pred_check_branch
          %387 = sbr.rel (%p385) target = $region76
        $region75: #{tpu_custom_call.1} parent=47 // pred_region
          %388 = dma.done %s381, 64
        $region76: #{tpu_custom_call.1} parent=47 // pred_fallthru
          _
        %p389 = pneg %p60
        %p390 = pneg %p57
        %p391 = pneg %p81
        %p392 = pneg %p78
        %p393 = pneg %p102
        %p394 = pneg %p99
        %p395 = pneg %p123
        %p396 = pneg %p120
        %p397 = pneg %p144
        %p398 = pneg %p141
        %s399 = sand.u32 %s27, 1
        %s400 = scalar_lea.sflag [#allocation13], %s399
        %s401 = sand.u32 %s157, 1
        %s402 = smul.addr %s401, 2048
        %s403 = scalar_lea.vmem [#allocation12], %s402
        %p404 = pneg %p170
        %p405 = pneg %p167
        %s406 = sand.u32 %s27, 1
        %s407 = scalar_lea.sflag [#allocation13], %s406
        %s408 = sand.u32 %s183, 1
        %s409 = smul.addr %s408, 4
        %s410 = scalar_lea.vmem [#allocation14], %s409
        %p411 = pneg %p196
        %p412 = pneg %p193
        %p413 = pneg %p224
        %p414 = pneg %p221
        %s415 = sand.u32 %s211, 1
        %s416 = scalar_lea.sflag [#allocation5], %s415
        %s417 = sand.u32 %s211, 1
        %s418 = smul.addr %s417, 8
        %s419 = scalar_lea.vmem [#allocation15], %s418
        %s420 = smul.u32 4, %s32
        %s421 = smul.u32 4, %s32
        %s422 = smul.u32 4, %s32
        %p424 = scmp.eq.s32.totalorder %s32, 0
        // Predicated region
        $region77: #{tpu_custom_call.1} parent=47 // pred_check
          %p425 = pneg %p424
        $region78: #{tpu_custom_call.1} parent=47 // pred_check_branch
          %427 = sbr.rel (%p425) target = $region80
        $region79: #{tpu_custom_call.1} parent=47 // pred_region
          %v428 = vld [vmem:[#allocation3] sm:$0x3]
          %v429 = vpack.c.bf16 %v428, %v428
          %v430 = vld [vmem:[#allocation6] sm:$0xff]
          %v431 = vld [vmem:[#allocation6 + $0x8] sm:$0xff]
          %v432 = vld [vmem:[#allocation6 + $0x10] sm:$0xff]
          %v433 = vld [vmem:[#allocation6 + $0x18] sm:$0xff]
          %v434 = vld [vmem:[#allocation6 + $0x20] sm:$0xff]
          %v435 = vld [vmem:[#allocation6 + $0x28] sm:$0xff]
          %v436 = vld [vmem:[#allocation6 + $0x30] sm:$0xff]
          %v437 = vld [vmem:[#allocation6 + $0x38] sm:$0xff]
          %v438 = vld [vmem:[#allocation8] sm:$0xf]
          %v440 = vlaneseq
          %v441 = vshrl.u32 %v440, 7
          %v442 = vsub.s32 0, %v441
          %v443 = vrot.slane %v438, %v442
          %v444 = vlaneseq
          %v445 = vshrl.u32 %v444, 7
          %v446 = vsub.s32 1, %v445
          %v447 = vrot.slane %v438, %v446
          %v448 = vlaneseq
          %v449 = vshrl.u32 %v448, 7
          %v450 = vsub.s32 2, %v449
          %v451 = vrot.slane %v438, %v450
          %v452 = vlaneseq
          %v453 = vshrl.u32 %v452, 7
          %v454 = vsub.s32 3, %v453
          %v455 = vrot.slane %v438, %v454
          %v468 = vunpack.c.l.b16 %v430
          %v469 = vunpack.c.h.b16 %v430
          %v470 = vunpack.c.l.b16 %v431
          %v471 = vunpack.c.h.b16 %v431
          %v472 = vunpack.c.l.b16 %v432
          %v473 = vunpack.c.h.b16 %v432
          %v474 = vunpack.c.l.b16 %v433
          %v475 = vunpack.c.h.b16 %v433
          %v476 = vunpack.c.l.b16 %v434
          %v477 = vunpack.c.h.b16 %v434
          %v478 = vunpack.c.l.b16 %v435
          %v479 = vunpack.c.h.b16 %v435
          %v480 = vunpack.c.l.b16 %v436
          %v481 = vunpack.c.h.b16 %v436
          %v482 = vunpack.c.l.b16 %v437
          %v483 = vunpack.c.h.b16 %v437
          %v484 = vpack.c.b16 %v472, %v468
          %v485 = vpack.c.b16 %v473, %v469
          %v486 = vpack.c.b16 %v474, %v470
          %v487 = vpack.c.b16 %v475, %v471
          %v488 = vpack.c.b16 %v480, %v476
          %v489 = vpack.c.b16 %v481, %v477
          %v490 = vpack.c.b16 %v482, %v478
          %v491 = vpack.c.b16 %v483, %v479
          %vm500 = vcmask 261120
          %v502 = vsel %vm500, %v429, 0
          %504 = vmatprep.subr.bf16.mxu0 %v485
          %505 = vmatpush1.bf16.msra.mxu0 %v484
          %506 = vmatprep.subr.bf16.mxu0 %v489
          %507 = vmatpush1.bf16.msra.mxu0 %v488
          %508 = vmatprep.subr.bf16.mxu0 0
          %509 = vmatpush1.bf16.msra.mxu0 0
          %510 = vmatprep.subr.bf16.mxu0 0
          %511 = vmatpush1.bf16.msra.mxu0 0
          %512 = vmatprep.subr.bf16.mxu0 0
          %513 = vmatpush1.bf16.msra.mxu0 0
          %514 = vmatprep.subr.bf16.mxu0 0
          %515 = vmatpush1.bf16.msra.mxu0 0
          %516 = vmatprep.subr.bf16.mxu0 0
          %517 = vmatpush1.bf16.msra.mxu0 0
          %518 = vmatprep.subr.bf16.mxu0 0
          %519 = vmatpush1.bf16.msra.mxu0 0
          %520 = vmatprep.subr.bf16.mxu0 0
          %521 = vmatpush1.bf16.msra.mxu0 0
          %522 = vmatprep.subr.bf16.mxu0 0
          %523 = vmatpush1.bf16.msra.mxu0 0
          %524 = vmatprep.subr.bf16.mxu0 0
          %525 = vmatpush1.bf16.msra.mxu0 0
          %526 = vmatprep.subr.bf16.mxu0 0
          %527 = vmatpush1.bf16.msra.mxu0 0
          %528 = vmatprep.subr.bf16.mxu0 0
          %529 = vmatpush1.bf16.msra.mxu0 0
          %530 = vmatprep.subr.bf16.mxu0 0
          %531 = vmatpush1.bf16.msra.mxu0 0
          %532 = vmatprep.subr.bf16.mxu0 0
          %533 = vmatpush1.bf16.msra.mxu0 0
          %534 = vmatprep.subr.bf16.mxu0 0
          %535 = vmatpush1.bf16.msra.mxu0 0
          %536 = vmatprep.mubr.bf16.mxu0 0
          %537 = vmatmul.mubr.bf16.gmra.mrb[0].mxu0 %v502
          %v538 = vpop.f32.mrb[0].mxu0
          %v539 = vadd.f32 %v443, %v538
          %v540 = vpop.f32.mrb[0].mxu0
          %v541 = vadd.f32 %v447, %v540
          %v542 = vpop.f32.mrb[0].mxu0
          %v543 = vpop.f32.mrb[0].mxu0
          %544 = vdwg.mxu0
          %545 = vmatprep.subr.bf16.mxu0 %v487
          %546 = vmatpush1.bf16.msra.mxu0 %v486
          %547 = vmatprep.subr.bf16.mxu0 %v491
          %548 = vmatpush1.bf16.msra.mxu0 %v490
          %549 = vmatprep.subr.bf16.mxu0 0
          %550 = vmatpush1.bf16.msra.mxu0 0
          %551 = vmatprep.subr.bf16.mxu0 0
          %552 = vmatpush1.bf16.msra.mxu0 0
          %553 = vmatprep.subr.bf16.mxu0 0
          %554 = vmatpush1.bf16.msra.mxu0 0
          %555 = vmatprep.subr.bf16.mxu0 0
          %556 = vmatpush1.bf16.msra.mxu0 0
          %557 = vmatprep.subr.bf16.mxu0 0
          %558 = vmatpush1.bf16.msra.mxu0 0
          %559 = vmatprep.subr.bf16.mxu0 0
          %560 = vmatpush1.bf16.msra.mxu0 0
          %561 = vmatprep.subr.bf16.mxu0 0
          %562 = vmatpush1.bf16.msra.mxu0 0
          %563 = vmatprep.subr.bf16.mxu0 0
          %564 = vmatpush1.bf16.msra.mxu0 0
          %565 = vmatprep.subr.bf16.mxu0 0
          %566 = vmatpush1.bf16.msra.mxu0 0
          %567 = vmatprep.subr.bf16.mxu0 0
          %568 = vmatpush1.bf16.msra.mxu0 0
          %569 = vmatprep.subr.bf16.mxu0 0
          %570 = vmatpush1.bf16.msra.mxu0 0
          %571 = vmatprep.subr.bf16.mxu0 0
          %572 = vmatpush1.bf16.msra.mxu0 0
          %573 = vmatprep.subr.bf16.mxu0 0
          %574 = vmatpush1.bf16.msra.mxu0 0
          %575 = vmatprep.subr.bf16.mxu0 0
          %576 = vmatpush1.bf16.msra.mxu0 0
          %577 = vmatprep.mubr.bf16.mxu0 0
          %578 = vmatmul.mubr.bf16.gmra.mrb[0].mxu0 %v502
          %v579 = vpop.f32.mrb[0].mxu0
          %v580 = vadd.f32 %v451, %v579
          %v581 = vpop.f32.mrb[0].mxu0
          %v582 = vadd.f32 %v455, %v581
          %v583 = vpop.f32.mrb[0].mxu0
          %v584 = vpop.f32.mrb[0].mxu0
          %585 = vdwg.mxu0
          %v586 = vmax.f32 %v539, 0.0
          %v587 = vmax.f32 %v541, 0.0
          %v588 = vmax.f32 %v580, 0.0
          %v589 = vmax.f32 %v582, 0.0
          %v590 = vpack.c.bf16 %v586, %v586
          %v591 = vpack.c.bf16 %v587, %v587
          %v592 = vpack.c.bf16 %v588, %v588
          %v593 = vpack.c.bf16 %v589, %v589
          %v594 = vld [vmem:[#allocation9] sm:$0xff]
          %v595 = vld [vmem:[#allocation9 + $0x8] sm:$0xff]
          %v596 = vld [vmem:[#allocation9 + $0x10] sm:$0xff]
          %v597 = vld [vmem:[#allocation9 + $0x18] sm:$0xff]
          %v598 = vld [vmem:[#allocation9 + $0x20] sm:$0xff]
          %v599 = vld [vmem:[#allocation9 + $0x28] sm:$0xff]
          %v600 = vld [vmem:[#allocation9 + $0x30] sm:$0xff]
          %v601 = vld [vmem:[#allocation9 + $0x38] sm:$0xff]
          %v602 = vld [vmem:[#allocation9 + $0x40] sm:$0xff]
          %v603 = vld [vmem:[#allocation9 + $0x48] sm:$0xff]
          %v604 = vld [vmem:[#allocation9 + $0x50] sm:$0xff]
          %v605 = vld [vmem:[#allocation9 + $0x58] sm:$0xff]
          %v606 = vld [vmem:[#allocation9 + $0x60] sm:$0xff]
          %v607 = vld [vmem:[#allocation9 + $0x68] sm:$0xff]
          %v608 = vld [vmem:[#allocation9 + $0x70] sm:$0xff]
          %v609 = vld [vmem:[#allocation9 + $0x78] sm:$0xff]
          %v610 = vld [vmem:[#allocation9 + $0x80] sm:$0xff]
          %v611 = vld [vmem:[#allocation9 + $0x88] sm:$0xff]
          %v612 = vld [vmem:[#allocation9 + $0x90] sm:$0xff]
          %v613 = vld [vmem:[#allocation9 + $0x98] sm:$0xff]
          %v614 = vld [vmem:[#allocation9 + $0xa0] sm:$0xff]
          %v615 = vld [vmem:[#allocation9 + $0xa8] sm:$0xff]
          %v616 = vld [vmem:[#allocation9 + $0xb0] sm:$0xff]
          %v617 = vld [vmem:[#allocation9 + $0xb8] sm:$0xff]
          %v618 = vld [vmem:[#allocation9 + $0xc0] sm:$0xff]
          %v619 = vld [vmem:[#allocation9 + $0xc8] sm:$0xff]
          %v620 = vld [vmem:[#allocation9 + $0xd0] sm:$0xff]
          %v621 = vld [vmem:[#allocation9 + $0xd8] sm:$0xff]
          %v622 = vld [vmem:[#allocation9 + $0xe0] sm:$0xff]
          %v623 = vld [vmem:[#allocation9 + $0xe8] sm:$0xff]
          %v624 = vld [vmem:[#allocation9 + $0xf0] sm:$0xff]
          %v625 = vld [vmem:[#allocation9 + $0xf8] sm:$0xff]
          %v626 = vld [vmem:[#allocation9 + $0x100] sm:$0xff]
          %v627 = vld [vmem:[#allocation9 + $0x108] sm:$0xff]
          %v628 = vld [vmem:[#allocation9 + $0x110] sm:$0xff]
          %v629 = vld [vmem:[#allocation9 + $0x118] sm:$0xff]
          %v630 = vld [vmem:[#allocation9 + $0x120] sm:$0xff]
          %v631 = vld [vmem:[#allocation9 + $0x128] sm:$0xff]
          %v632 = vld [vmem:[#allocation9 + $0x130] sm:$0xff]
          %v633 = vld [vmem:[#allocation9 + $0x138] sm:$0xff]
          %v634 = vld [vmem:[#allocation9 + $0x140] sm:$0xff]
          %v635 = vld [vmem:[#allocation9 + $0x148] sm:$0xff]
          %v636 = vld [vmem:[#allocation9 + $0x150] sm:$0xff]
          %v637 = vld [vmem:[#allocation9 + $0x158] sm:$0xff]
          %v638 = vld [vmem:[#allocation9 + $0x160] sm:$0xff]
          %v639 = vld [vmem:[#allocation9 + $0x168] sm:$0xff]
          %v640 = vld [vmem:[#allocation9 + $0x170] sm:$0xff]
          %v641 = vld [vmem:[#allocation9 + $0x178] sm:$0xff]
          %v642 = vld [vmem:[#allocation9 + $0x180] sm:$0xff]
          %v643 = vld [vmem:[#allocation9 + $0x188] sm:$0xff]
          %v644 = vld [vmem:[#allocation9 + $0x190] sm:$0xff]
          %v645 = vld [vmem:[#allocation9 + $0x198] sm:$0xff]
          %v646 = vld [vmem:[#allocation9 + $0x1a0] sm:$0xff]
          %v647 = vld [vmem:[#allocation9 + $0x1a8] sm:$0xff]
          %v648 = vld [vmem:[#allocation9 + $0x1b0] sm:$0xff]
          %v649 = vld [vmem:[#allocation9 + $0x1b8] sm:$0xff]
          %v650 = vld [vmem:[#allocation9 + $0x1c0] sm:$0xff]
          %v651 = vld [vmem:[#allocation9 + $0x1c8] sm:$0xff]
          %v652 = vld [vmem:[#allocation9 + $0x1d0] sm:$0xff]
          %v653 = vld [vmem:[#allocation9 + $0x1d8] sm:$0xff]
          %v654 = vld [vmem:[#allocation9 + $0x1e0] sm:$0xff]
          %v655 = vld [vmem:[#allocation9 + $0x1e8] sm:$0xff]
          %v656 = vld [vmem:[#allocation9 + $0x1f0] sm:$0xff]
          %v657 = vld [vmem:[#allocation9 + $0x1f8] sm:$0xff]
          %v658 = vld [vmem:[#allocation9 + $0x200] sm:$0xff]
          %v659 = vld [vmem:[#allocation9 + $0x208] sm:$0xff]
          %v660 = vld [vmem:[#allocation9 + $0x210] sm:$0xff]
          %v661 = vld [vmem:[#allocation9 + $0x218] sm:$0xff]
          %v662 = vld [vmem:[#allocation9 + $0x220] sm:$0xff]
          %v663 = vld [vmem:[#allocation9 + $0x228] sm:$0xff]
          %v664 = vld [vmem:[#allocation9 + $0x230] sm:$0xff]
          %v665 = vld [vmem:[#allocation9 + $0x238] sm:$0xff]
          %v666 = vld [vmem:[#allocation9 + $0x240] sm:$0xff]
          %v667 = vld [vmem:[#allocation9 + $0x248] sm:$0xff]
          %v668 = vld [vmem:[#allocation9 + $0x250] sm:$0xff]
          %v669 = vld [vmem:[#allocation9 + $0x258] sm:$0xff]
          %v670 = vld [vmem:[#allocation9 + $0x260] sm:$0xff]
          %v671 = vld [vmem:[#allocation9 + $0x268] sm:$0xff]
          %v672 = vld [vmem:[#allocation9 + $0x270] sm:$0xff]
          %v673 = vld [vmem:[#allocation9 + $0x278] sm:$0xff]
          %v674 = vld [vmem:[#allocation9 + $0x280] sm:$0xff]
          %v675 = vld [vmem:[#allocation9 + $0x288] sm:$0xff]
          %v676 = vld [vmem:[#allocation9 + $0x290] sm:$0xff]
          %v677 = vld [vmem:[#allocation9 + $0x298] sm:$0xff]
          %v678 = vld [vmem:[#allocation9 + $0x2a0] sm:$0xff]
          %v679 = vld [vmem:[#allocation9 + $0x2a8] sm:$0xff]
          %v680 = vld [vmem:[#allocation9 + $0x2b0] sm:$0xff]
          %v681 = vld [vmem:[#allocation9 + $0x2b8] sm:$0xff]
          %v682 = vld [vmem:[#allocation9 + $0x2c0] sm:$0xff]
          %v683 = vld [vmem:[#allocation9 + $0x2c8] sm:$0xff]
          %v684 = vld [vmem:[#allocation9 + $0x2d0] sm:$0xff]
          %v685 = vld [vmem:[#allocation9 + $0x2d8] sm:$0xff]
          %v686 = vld [vmem:[#allocation9 + $0x2e0] sm:$0xff]
          %v687 = vld [vmem:[#allocation9 + $0x2e8] sm:$0xff]
          %v688 = vld [vmem:[#allocation9 + $0x2f0] sm:$0xff]
          %v689 = vld [vmem:[#allocation9 + $0x2f8] sm:$0xff]
          %v690 = vld [vmem:[#allocation9 + $0x300] sm:$0xff]
          %v691 = vld [vmem:[#allocation9 + $0x308] sm:$0xff]
          %v692 = vld [vmem:[#allocation9 + $0x310] sm:$0xff]
          %v693 = vld [vmem:[#allocation9 + $0x318] sm:$0xff]
          %v694 = vld [vmem:[#allocation9 + $0x320] sm:$0xff]
          %v695 = vld [vmem:[#allocation9 + $0x328] sm:$0xff]
          %v696 = vld [vmem:[#allocation9 + $0x330] sm:$0xff]
          %v697 = vld [vmem:[#allocation9 + $0x338] sm:$0xff]
          %v698 = vld [vmem:[#allocation9 + $0x340] sm:$0xff]
          %v699 = vld [vmem:[#allocation9 + $0x348] sm:$0xff]
          %v700 = vld [vmem:[#allocation9 + $0x350] sm:$0xff]
          %v701 = vld [vmem:[#allocation9 + $0x358] sm:$0xff]
          %v702 = vld [vmem:[#allocation9 + $0x360] sm:$0xff]
          %v703 = vld [vmem:[#allocation9 + $0x368] sm:$0xff]
          %v704 = vld [vmem:[#allocation9 + $0x370] sm:$0xff]
          %v705 = vld [vmem:[#allocation9 + $0x378] sm:$0xff]
          %v706 = vld [vmem:[#allocation9 + $0x380] sm:$0xff]
          %v707 = vld [vmem:[#allocation9 + $0x388] sm:$0xff]
          %v708 = vld [vmem:[#allocation9 + $0x390] sm:$0xff]
          %v709 = vld [vmem:[#allocation9 + $0x398] sm:$0xff]
          %v710 = vld [vmem:[#allocation9 + $0x3a0] sm:$0xff]
          %v711 = vld [vmem:[#allocation9 + $0x3a8] sm:$0xff]
          %v712 = vld [vmem:[#allocation9 + $0x3b0] sm:$0xff]
          %v713 = vld [vmem:[#allocation9 + $0x3b8] sm:$0xff]
          %v714 = vld [vmem:[#allocation9 + $0x3c0] sm:$0xff]
          %v715 = vld [vmem:[#allocation9 + $0x3c8] sm:$0xff]
          %v716 = vld [vmem:[#allocation9 + $0x3d0] sm:$0xff]
          %v717 = vld [vmem:[#allocation9 + $0x3d8] sm:$0xff]
          %v718 = vld [vmem:[#allocation9 + $0x3e0] sm:$0xff]
          %v719 = vld [vmem:[#allocation9 + $0x3e8] sm:$0xff]
          %v720 = vld [vmem:[#allocation9 + $0x3f0] sm:$0xff]
          %v721 = vld [vmem:[#allocation9 + $0x3f8] sm:$0xff]
          %v722 = vld [vmem:[#allocation9 + $0x400] sm:$0xff]
          %v723 = vld [vmem:[#allocation9 + $0x408] sm:$0xff]
          %v724 = vld [vmem:[#allocation9 + $0x410] sm:$0xff]
          %v725 = vld [vmem:[#allocation9 + $0x418] sm:$0xff]
          %v726 = vld [vmem:[#allocation9 + $0x420] sm:$0xff]
          %v727 = vld [vmem:[#allocation9 + $0x428] sm:$0xff]
          %v728 = vld [vmem:[#allocation9 + $0x430] sm:$0xff]
          %v729 = vld [vmem:[#allocation9 + $0x438] sm:$0xff]
          %v730 = vld [vmem:[#allocation9 + $0x440] sm:$0xff]
          %v731 = vld [vmem:[#allocation9 + $0x448] sm:$0xff]
          %v732 = vld [vmem:[#allocation9 + $0x450] sm:$0xff]
          %v733 = vld [vmem:[#allocation9 + $0x458] sm:$0xff]
          %v734 = vld [vmem:[#allocation9 + $0x460] sm:$0xff]
          %v735 = vld [vmem:[#allocation9 + $0x468] sm:$0xff]
          %v736 = vld [vmem:[#allocation9 + $0x470] sm:$0xff]
          %v737 = vld [vmem:[#allocation9 + $0x478] sm:$0xff]
          %v738 = vld [vmem:[#allocation9 + $0x480] sm:$0xff]
          %v739 = vld [vmem:[#allocation9 + $0x488] sm:$0xff]
          %v740 = vld [vmem:[#allocation9 + $0x490] sm:$0xff]
          %v741 = vld [vmem:[#allocation9 + $0x498] sm:$0xff]
          %v742 = vld [vmem:[#allocation9 + $0x4a0] sm:$0xff]
          %v743 = vld [vmem:[#allocation9 + $0x4a8] sm:$0xff]
          %v744 = vld [vmem:[#allocation9 + $0x4b0] sm:$0xff]
          %v745 = vld [vmem:[#allocation9 + $0x4b8] sm:$0xff]
          %v746 = vld [vmem:[#allocation9 + $0x4c0] sm:$0xff]
          %v747 = vld [vmem:[#allocation9 + $0x4c8] sm:$0xff]
          %v748 = vld [vmem:[#allocation9 + $0x4d0] sm:$0xff]
          %v749 = vld [vmem:[#allocation9 + $0x4d8] sm:$0xff]
          %v750 = vld [vmem:[#allocation9 + $0x4e0] sm:$0xff]
          %v751 = vld [vmem:[#allocation9 + $0x4e8] sm:$0xff]
          %v752 = vld [vmem:[#allocation9 + $0x4f0] sm:$0xff]
          %v753 = vld [vmem:[#allocation9 + $0x4f8] sm:$0xff]
          %v754 = vld [vmem:[#allocation9 + $0x500] sm:$0xff]
          %v755 = vld [vmem:[#allocation9 + $0x508] sm:$0xff]
          %v756 = vld [vmem:[#allocation9 + $0x510] sm:$0xff]
          %v757 = vld [vmem:[#allocation9 + $0x518] sm:$0xff]
          %v758 = vld [vmem:[#allocation9 + $0x520] sm:$0xff]
          %v759 = vld [vmem:[#allocation9 + $0x528] sm:$0xff]
          %v760 = vld [vmem:[#allocation9 + $0x530] sm:$0xff]
          %v761 = vld [vmem:[#allocation9 + $0x538] sm:$0xff]
          %v762 = vld [vmem:[#allocation9 + $0x540] sm:$0xff]
          %v763 = vld [vmem:[#allocation9 + $0x548] sm:$0xff]
          %v764 = vld [vmem:[#allocation9 + $0x550] sm:$0xff]
          %v765 = vld [vmem:[#allocation9 + $0x558] sm:$0xff]
          %v766 = vld [vmem:[#allocation9 + $0x560] sm:$0xff]
          %v767 = vld [vmem:[#allocation9 + $0x568] sm:$0xff]
          %v768 = vld [vmem:[#allocation9 + $0x570] sm:$0xff]
          %v769 = vld [vmem:[#allocation9 + $0x578] sm:$0xff]
          %v770 = vld [vmem:[#allocation9 + $0x580] sm:$0xff]
          %v771 = vld [vmem:[#allocation9 + $0x588] sm:$0xff]
          %v772 = vld [vmem:[#allocation9 + $0x590] sm:$0xff]
          %v773 = vld [vmem:[#allocation9 + $0x598] sm:$0xff]
          %v774 = vld [vmem:[#allocation9 + $0x5a0] sm:$0xff]
          %v775 = vld [vmem:[#allocation9 + $0x5a8] sm:$0xff]
          %v776 = vld [vmem:[#allocation9 + $0x5b0] sm:$0xff]
          %v777 = vld [vmem:[#allocation9 + $0x5b8] sm:$0xff]
          %v778 = vld [vmem:[#allocation9 + $0x5c0] sm:$0xff]
          %v779 = vld [vmem:[#allocation9 + $0x5c8] sm:$0xff]
          %v780 = vld [vmem:[#allocation9 + $0x5d0] sm:$0xff]
          %v781 = vld [vmem:[#allocation9 + $0x5d8] sm:$0xff]
          %v782 = vld [vmem:[#allocation9 + $0x5e0] sm:$0xff]
          %v783 = vld [vmem:[#allocation9 + $0x5e8] sm:$0xff]
          %v784 = vld [vmem:[#allocation9 + $0x5f0] sm:$0xff]
          %v785 = vld [vmem:[#allocation9 + $0x5f8] sm:$0xff]
          %v786 = vld [vmem:[#allocation9 + $0x600] sm:$0xff]
          %v787 = vld [vmem:[#allocation9 + $0x608] sm:$0xff]
          %v788 = vld [vmem:[#allocation9 + $0x610] sm:$0xff]
          %v789 = vld [vmem:[#allocation9 + $0x618] sm:$0xff]
          %v790 = vld [vmem:[#allocation9 + $0x620] sm:$0xff]
          %v791 = vld [vmem:[#allocation9 + $0x628] sm:$0xff]
          %v792 = vld [vmem:[#allocation9 + $0x630] sm:$0xff]
          %v793 = vld [vmem:[#allocation9 + $0x638] sm:$0xff]
          %v794 = vld [vmem:[#allocation9 + $0x640] sm:$0xff]
          %v795 = vld [vmem:[#allocation9 + $0x648] sm:$0xff]
          %v796 = vld [vmem:[#allocation9 + $0x650] sm:$0xff]
          %v797 = vld [vmem:[#allocation9 + $0x658] sm:$0xff]
          %v798 = vld [vmem:[#allocation9 + $0x660] sm:$0xff]
          %v799 = vld [vmem:[#allocation9 + $0x668] sm:$0xff]
          %v800 = vld [vmem:[#allocation9 + $0x670] sm:$0xff]
          %v801 = vld [vmem:[#allocation9 + $0x678] sm:$0xff]
          %v802 = vld [vmem:[#allocation9 + $0x680] sm:$0xff]
          %v803 = vld [vmem:[#allocation9 + $0x688] sm:$0xff]
          %v804 = vld [vmem:[#allocation9 + $0x690] sm:$0xff]
          %v805 = vld [vmem:[#allocation9 + $0x698] sm:$0xff]
          %v806 = vld [vmem:[#allocation9 + $0x6a0] sm:$0xff]
          %v807 = vld [vmem:[#allocation9 + $0x6a8] sm:$0xff]
          %v808 = vld [vmem:[#allocation9 + $0x6b0] sm:$0xff]
          %v809 = vld [vmem:[#allocation9 + $0x6b8] sm:$0xff]
          %v810 = vld [vmem:[#allocation9 + $0x6c0] sm:$0xff]
          %v811 = vld [vmem:[#allocation9 + $0x6c8] sm:$0xff]
          %v812 = vld [vmem:[#allocation9 + $0x6d0] sm:$0xff]
          %v813 = vld [vmem:[#allocation9 + $0x6d8] sm:$0xff]
          %v814 = vld [vmem:[#allocation9 + $0x6e0] sm:$0xff]
          %v815 = vld [vmem:[#allocation9 + $0x6e8] sm:$0xff]
          %v816 = vld [vmem:[#allocation9 + $0x6f0] sm:$0xff]
          %v817 = vld [vmem:[#allocation9 + $0x6f8] sm:$0xff]
          %v818 = vld [vmem:[#allocation9 + $0x700] sm:$0xff]
          %v819 = vld [vmem:[#allocation9 + $0x708] sm:$0xff]
          %v820 = vld [vmem:[#allocation9 + $0x710] sm:$0xff]
          %v821 = vld [vmem:[#allocation9 + $0x718] sm:$0xff]
          %v822 = vld [vmem:[#allocation9 + $0x720] sm:$0xff]
          %v823 = vld [vmem:[#allocation9 + $0x728] sm:$0xff]
          %v824 = vld [vmem:[#allocation9 + $0x730] sm:$0xff]
          %v825 = vld [vmem:[#allocation9 + $0x738] sm:$0xff]
          %v826 = vld [vmem:[#allocation9 + $0x740] sm:$0xff]
          %v827 = vld [vmem:[#allocation9 + $0x748] sm:$0xff]
          %v828 = vld [vmem:[#allocation9 + $0x750] sm:$0xff]
          %v829 = vld [vmem:[#allocation9 + $0x758] sm:$0xff]
          %v830 = vld [vmem:[#allocation9 + $0x760] sm:$0xff]
          %v831 = vld [vmem:[#allocation9 + $0x768] sm:$0xff]
          %v832 = vld [vmem:[#allocation9 + $0x770] sm:$0xff]
          %v833 = vld [vmem:[#allocation9 + $0x778] sm:$0xff]
          %v834 = vld [vmem:[#allocation9 + $0x780] sm:$0xff]
          %v835 = vld [vmem:[#allocation9 + $0x788] sm:$0xff]
          %v836 = vld [vmem:[#allocation9 + $0x790] sm:$0xff]
          %v837 = vld [vmem:[#allocation9 + $0x798] sm:$0xff]
          %v838 = vld [vmem:[#allocation9 + $0x7a0] sm:$0xff]
          %v839 = vld [vmem:[#allocation9 + $0x7a8] sm:$0xff]
          %v840 = vld [vmem:[#allocation9 + $0x7b0] sm:$0xff]
          %v841 = vld [vmem:[#allocation9 + $0x7b8] sm:$0xff]
          %v842 = vld [vmem:[#allocation9 + $0x7c0] sm:$0xff]
          %v843 = vld [vmem:[#allocation9 + $0x7c8] sm:$0xff]
          %v844 = vld [vmem:[#allocation9 + $0x7d0] sm:$0xff]
          %v845 = vld [vmem:[#allocation9 + $0x7d8] sm:$0xff]
          %v846 = vld [vmem:[#allocation9 + $0x7e0] sm:$0xff]
          %v847 = vld [vmem:[#allocation9 + $0x7e8] sm:$0xff]
          %v848 = vld [vmem:[#allocation9 + $0x7f0] sm:$0xff]
          %v849 = vld [vmem:[#allocation9 + $0x7f8] sm:$0xff]
          %v850 = vld [vmem:[#allocation11] sm:$0xff]
          %v852 = vlaneseq
          %v853 = vshrl.u32 %v852, 7
          %v854 = vsub.s32 0, %v853
          %v855 = vrot.slane %v850, %v854
          %v856 = vlaneseq
          %v857 = vshrl.u32 %v856, 7
          %v858 = vsub.s32 1, %v857
          %v859 = vrot.slane %v850, %v858
          %v860 = vlaneseq
          %v861 = vshrl.u32 %v860, 7
          %v862 = vsub.s32 2, %v861
          %v863 = vrot.slane %v850, %v862
          %v864 = vlaneseq
          %v865 = vshrl.u32 %v864, 7
          %v866 = vsub.s32 3, %v865
          %v867 = vrot.slane %v850, %v866
          %v868 = vlaneseq
          %v869 = vshrl.u32 %v868, 7
          %v870 = vsub.s32 4, %v869
          %v871 = vrot.slane %v850, %v870
          %v872 = vlaneseq
          %v873 = vshrl.u32 %v872, 7
          %v874 = vsub.s32 5, %v873
          %v875 = vrot.slane %v850, %v874
          %v876 = vlaneseq
          %v877 = vshrl.u32 %v876, 7
          %v878 = vsub.s32 6, %v877
          %v879 = vrot.slane %v850, %v878
          %v880 = vlaneseq
          %v881 = vshrl.u32 %v880, 7
          %v882 = vsub.s32 7, %v881
          %v883 = vrot.slane %v850, %v882
          %v1148 = vunpack.c.l.b16 %v594
          %v1149 = vunpack.c.h.b16 %v594
          %v1150 = vunpack.c.l.b16 %v595
          %v1151 = vunpack.c.h.b16 %v595
          %v1152 = vunpack.c.l.b16 %v596
          %v1153 = vunpack.c.h.b16 %v596
          %v1154 = vunpack.c.l.b16 %v597
          %v1155 = vunpack.c.h.b16 %v597
          %v1156 = vunpack.c.l.b16 %v598
          %v1157 = vunpack.c.h.b16 %v598
          %v1158 = vunpack.c.l.b16 %v599
          %v1159 = vunpack.c.h.b16 %v599
          %v1160 = vunpack.c.l.b16 %v600
          %v1161 = vunpack.c.h.b16 %v600
          %v1162 = vunpack.c.l.b16 %v601
          %v1163 = vunpack.c.h.b16 %v601
          %v1164 = vunpack.c.l.b16 %v602
          %v1165 = vunpack.c.h.b16 %v602
          %v1166 = vunpack.c.l.b16 %v603
          %v1167 = vunpack.c.h.b16 %v603
          %v1168 = vunpack.c.l.b16 %v604
          %v1169 = vunpack.c.h.b16 %v604
          %v1170 = vunpack.c.l.b16 %v605
          %v1171 = vunpack.c.h.b16 %v605
          %v1172 = vunpack.c.l.b16 %v606
          %v1173 = vunpack.c.h.b16 %v606
          %v1174 = vunpack.c.l.b16 %v607
          %v1175 = vunpack.c.h.b16 %v607
          %v1176 = vunpack.c.l.b16 %v608
          %v1177 = vunpack.c.h.b16 %v608
          %v1178 = vunpack.c.l.b16 %v609
          %v1179 = vunpack.c.h.b16 %v609
          %v1180 = vunpack.c.l.b16 %v610
          %v1181 = vunpack.c.h.b16 %v610
          %v1182 = vunpack.c.l.b16 %v611
          %v1183 = vunpack.c.h.b16 %v611
          %v1184 = vunpack.c.l.b16 %v612
          %v1185 = vunpack.c.h.b16 %v612
          %v1186 = vunpack.c.l.b16 %v613
          %v1187 = vunpack.c.h.b16 %v613
          %v1188 = vunpack.c.l.b16 %v614
          %v1189 = vunpack.c.h.b16 %v614
          %v1190 = vunpack.c.l.b16 %v615
          %v1191 = vunpack.c.h.b16 %v615
          %v1192 = vunpack.c.l.b16 %v616
          %v1193 = vunpack.c.h.b16 %v616
          %v1194 = vunpack.c.l.b16 %v617
          %v1195 = vunpack.c.h.b16 %v617
          %v1196 = vunpack.c.l.b16 %v618
          %v1197 = vunpack.c.h.b16 %v618
          %v1198 = vunpack.c.l.b16 %v619
          %v1199 = vunpack.c.h.b16 %v619
          %v1200 = vunpack.c.l.b16 %v620
          %v1201 = vunpack.c.h.b16 %v620
          %v1202 = vunpack.c.l.b16 %v621
          %v1203 = vunpack.c.h.b16 %v621
          %v1204 = vunpack.c.l.b16 %v622
          %v1205 = vunpack.c.h.b16 %v622
          %v1206 = vunpack.c.l.b16 %v623
          %v1207 = vunpack.c.h.b16 %v623
          %v1208 = vunpack.c.l.b16 %v624
          %v1209 = vunpack.c.h.b16 %v624
          %v1210 = vunpack.c.l.b16 %v625
          %v1211 = vunpack.c.h.b16 %v625
          %v1212 = vunpack.c.l.b16 %v626
          %v1213 = vunpack.c.h.b16 %v626
          %v1214 = vunpack.c.l.b16 %v627
          %v1215 = vunpack.c.h.b16 %v627
          %v1216 = vunpack.c.l.b16 %v628
          %v1217 = vunpack.c.h.b16 %v628
          %v1218 = vunpack.c.l.b16 %v629
          %v1219 = vunpack.c.h.b16 %v629
          %v1220 = vunpack.c.l.b16 %v630
          %v1221 = vunpack.c.h.b16 %v630
          %v1222 = vunpack.c.l.b16 %v631
          %v1223 = vunpack.c.h.b16 %v631
          %v1224 = vunpack.c.l.b16 %v632
          %v1225 = vunpack.c.h.b16 %v632
          %v1226 = vunpack.c.l.b16 %v633
          %v1227 = vunpack.c.h.b16 %v633
          %v1228 = vunpack.c.l.b16 %v634
          %v1229 = vunpack.c.h.b16 %v634
          %v1230 = vunpack.c.l.b16 %v635
          %v1231 = vunpack.c.h.b16 %v635
          %v1232 = vunpack.c.l.b16 %v636
          %v1233 = vunpack.c.h.b16 %v636
          %v1234 = vunpack.c.l.b16 %v637
          %v1235 = vunpack.c.h.b16 %v637
          %v1236 = vunpack.c.l.b16 %v638
          %v1237 = vunpack.c.h.b16 %v638
          %v1238 = vunpack.c.l.b16 %v639
          %v1239 = vunpack.c.h.b16 %v639
          %v1240 = vunpack.c.l.b16 %v640
          %v1241 = vunpack.c.h.b16 %v640
          %v1242 = vunpack.c.l.b16 %v641
          %v1243 = vunpack.c.h.b16 %v641
          %v1244 = vunpack.c.l.b16 %v642
          %v1245 = vunpack.c.h.b16 %v642
          %v1246 = vunpack.c.l.b16 %v643
          %v1247 = vunpack.c.h.b16 %v643
          %v1248 = vunpack.c.l.b16 %v644
          %v1249 = vunpack.c.h.b16 %v644
          %v1250 = vunpack.c.l.b16 %v645
          %v1251 = vunpack.c.h.b16 %v645
          %v1252 = vunpack.c.l.b16 %v646
          %v1253 = vunpack.c.h.b16 %v646
          %v1254 = vunpack.c.l.b16 %v647
          %v1255 = vunpack.c.h.b16 %v647
          %v1256 = vunpack.c.l.b16 %v648
          %v1257 = vunpack.c.h.b16 %v648
          %v1258 = vunpack.c.l.b16 %v649
          %v1259 = vunpack.c.h.b16 %v649
          %v1260 = vunpack.c.l.b16 %v650
          %v1261 = vunpack.c.h.b16 %v650
          %v1262 = vunpack.c.l.b16 %v651
          %v1263 = vunpack.c.h.b16 %v651
          %v1264 = vunpack.c.l.b16 %v652
          %v1265 = vunpack.c.h.b16 %v652
          %v1266 = vunpack.c.l.b16 %v653
          %v1267 = vunpack.c.h.b16 %v653
          %v1268 = vunpack.c.l.b16 %v654
          %v1269 = vunpack.c.h.b16 %v654
          %v1270 = vunpack.c.l.b16 %v655
          %v1271 = vunpack.c.h.b16 %v655
          %v1272 = vunpack.c.l.b16 %v656
          %v1273 = vunpack.c.h.b16 %v656
          %v1274 = vunpack.c.l.b16 %v657
          %v1275 = vunpack.c.h.b16 %v657
          %v1276 = vunpack.c.l.b16 %v658
          %v1277 = vunpack.c.h.b16 %v658
          %v1278 = vunpack.c.l.b16 %v659
          %v1279 = vunpack.c.h.b16 %v659
          %v1280 = vunpack.c.l.b16 %v660
          %v1281 = vunpack.c.h.b16 %v660
          %v1282 = vunpack.c.l.b16 %v661
          %v1283 = vunpack.c.h.b16 %v661
          %v1284 = vunpack.c.l.b16 %v662
          %v1285 = vunpack.c.h.b16 %v662
          %v1286 = vunpack.c.l.b16 %v663
          %v1287 = vunpack.c.h.b16 %v663
          %v1288 = vunpack.c.l.b16 %v664
          %v1289 = vunpack.c.h.b16 %v664
          %v1290 = vunpack.c.l.b16 %v665
          %v1291 = vunpack.c.h.b16 %v665
          %v1292 = vunpack.c.l.b16 %v666
          %v1293 = vunpack.c.h.b16 %v666
          %v1294 = vunpack.c.l.b16 %v667
          %v1295 = vunpack.c.h.b16 %v667
          %v1296 = vunpack.c.l.b16 %v668
          %v1297 = vunpack.c.h.b16 %v668
          %v1298 = vunpack.c.l.b16 %v669
          %v1299 = vunpack.c.h.b16 %v669
          %v1300 = vunpack.c.l.b16 %v670
          %v1301 = vunpack.c.h.b16 %v670
          %v1302 = vunpack.c.l.b16 %v671
          %v1303 = vunpack.c.h.b16 %v671
          %v1304 = vunpack.c.l.b16 %v672
          %v1305 = vunpack.c.h.b16 %v672
          %v1306 = vunpack.c.l.b16 %v673
          %v1307 = vunpack.c.h.b16 %v673
          %v1308 = vunpack.c.l.b16 %v674
          %v1309 = vunpack.c.h.b16 %v674
          %v1310 = vunpack.c.l.b16 %v675
          %v1311 = vunpack.c.h.b16 %v675
          %v1312 = vunpack.c.l.b16 %v676
          %v1313 = vunpack.c.h.b16 %v676
          %v1314 = vunpack.c.l.b16 %v677
          %v1315 = vunpack.c.h.b16 %v677
          %v1316 = vunpack.c.l.b16 %v678
          %v1317 = vunpack.c.h.b16 %v678
          %v1318 = vunpack.c.l.b16 %v679
          %v1319 = vunpack.c.h.b16 %v679
          %v1320 = vunpack.c.l.b16 %v680
          %v1321 = vunpack.c.h.b16 %v680
          %v1322 = vunpack.c.l.b16 %v681
          %v1323 = vunpack.c.h.b16 %v681
          %v1324 = vunpack.c.l.b16 %v682
          %v1325 = vunpack.c.h.b16 %v682
          %v1326 = vunpack.c.l.b16 %v683
          %v1327 = vunpack.c.h.b16 %v683
          %v1328 = vunpack.c.l.b16 %v684
          %v1329 = vunpack.c.h.b16 %v684
          %v1330 = vunpack.c.l.b16 %v685
          %v1331 = vunpack.c.h.b16 %v685
          %v1332 = vunpack.c.l.b16 %v686
          %v1333 = vunpack.c.h.b16 %v686
          %v1334 = vunpack.c.l.b16 %v687
          %v1335 = vunpack.c.h.b16 %v687
          %v1336 = vunpack.c.l.b16 %v688
          %v1337 = vunpack.c.h.b16 %v688
          %v1338 = vunpack.c.l.b16 %v689
          %v1339 = vunpack.c.h.b16 %v689
          %v1340 = vunpack.c.l.b16 %v690
          %v1341 = vunpack.c.h.b16 %v690
          %v1342 = vunpack.c.l.b16 %v691
          %v1343 = vunpack.c.h.b16 %v691
          %v1344 = vunpack.c.l.b16 %v692
          %v1345 = vunpack.c.h.b16 %v692
          %v1346 = vunpack.c.l.b16 %v693
          %v1347 = vunpack.c.h.b16 %v693
          %v1348 = vunpack.c.l.b16 %v694
          %v1349 = vunpack.c.h.b16 %v694
          %v1350 = vunpack.c.l.b16 %v695
          %v1351 = vunpack.c.h.b16 %v695
          %v1352 = vunpack.c.l.b16 %v696
          %v1353 = vunpack.c.h.b16 %v696
          %v1354 = vunpack.c.l.b16 %v697
          %v1355 = vunpack.c.h.b16 %v697
          %v1356 = vunpack.c.l.b16 %v698
          %v1357 = vunpack.c.h.b16 %v698
          %v1358 = vunpack.c.l.b16 %v699
          %v1359 = vunpack.c.h.b16 %v699
          %v1360 = vunpack.c.l.b16 %v700
          %v1361 = vunpack.c.h.b16 %v700
          %v1362 = vunpack.c.l.b16 %v701
          %v1363 = vunpack.c.h.b16 %v701
          %v1364 = vunpack.c.l.b16 %v702
          %v1365 = vunpack.c.h.b16 %v702
          %v1366 = vunpack.c.l.b16 %v703
          %v1367 = vunpack.c.h.b16 %v703
          %v1368 = vunpack.c.l.b16 %v704
          %v1369 = vunpack.c.h.b16 %v704
          %v1370 = vunpack.c.l.b16 %v705
          %v1371 = vunpack.c.h.b16 %v705
          %v1372 = vunpack.c.l.b16 %v706
          %v1373 = vunpack.c.h.b16 %v706
          %v1374 = vunpack.c.l.b16 %v707
          %v1375 = vunpack.c.h.b16 %v707
          %v1376 = vunpack.c.l.b16 %v708
          %v1377 = vunpack.c.h.b16 %v708
          %v1378 = vunpack.c.l.b16 %v709
          %v1379 = vunpack.c.h.b16 %v709
          %v1380 = vunpack.c.l.b16 %v710
          %v1381 = vunpack.c.h.b16 %v710
          %v1382 = vunpack.c.l.b16 %v711
          %v1383 = vunpack.c.h.b16 %v711
          %v1384 = vunpack.c.l.b16 %v712
          %v1385 = vunpack.c.h.b16 %v712
          %v1386 = vunpack.c.l.b16 %v713
          %v1387 = vunpack.c.h.b16 %v713
          %v1388 = vunpack.c.l.b16 %v714
          %v1389 = vunpack.c.h.b16 %v714
          %v1390 = vunpack.c.l.b16 %v715
          %v1391 = vunpack.c.h.b16 %v715
          %v1392 = vunpack.c.l.b16 %v716
          %v1393 = vunpack.c.h.b16 %v716
          %v1394 = vunpack.c.l.b16 %v717
          %v1395 = vunpack.c.h.b16 %v717
          %v1396 = vunpack.c.l.b16 %v718
          %v1397 = vunpack.c.h.b16 %v718
          %v1398 = vunpack.c.l.b16 %v719
          %v1399 = vunpack.c.h.b16 %v719
          %v1400 = vunpack.c.l.b16 %v720
          %v1401 = vunpack.c.h.b16 %v720
          %v1402 = vunpack.c.l.b16 %v721
          %v1403 = vunpack.c.h.b16 %v721
          %v1404 = vunpack.c.l.b16 %v722
          %v1405 = vunpack.c.h.b16 %v722
          %v1406 = vunpack.c.l.b16 %v723
          %v1407 = vunpack.c.h.b16 %v723
          %v1408 = vunpack.c.l.b16 %v724
          %v1409 = vunpack.c.h.b16 %v724
          %v1410 = vunpack.c.l.b16 %v725
          %v1411 = vunpack.c.h.b16 %v725
          %v1412 = vunpack.c.l.b16 %v726
          %v1413 = vunpack.c.h.b16 %v726
          %v1414 = vunpack.c.l.b16 %v727
          %v1415 = vunpack.c.h.b16 %v727
          %v1416 = vunpack.c.l.b16 %v728
          %v1417 = vunpack.c.h.b16 %v728
          %v1418 = vunpack.c.l.b16 %v729
          %v1419 = vunpack.c.h.b16 %v729
          %v1420 = vunpack.c.l.b16 %v730
          %v1421 = vunpack.c.h.b16 %v730
          %v1422 = vunpack.c.l.b16 %v731
          %v1423 = vunpack.c.h.b16 %v731
          %v1424 = vunpack.c.l.b16 %v732
          %v1425 = vunpack.c.h.b16 %v732
          %v1426 = vunpack.c.l.b16 %v733
          %v1427 = vunpack.c.h.b16 %v733
          %v1428 = vunpack.c.l.b16 %v734
          %v1429 = vunpack.c.h.b16 %v734
          %v1430 = vunpack.c.l.b16 %v735
          %v1431 = vunpack.c.h.b16 %v735
          %v1432 = vunpack.c.l.b16 %v736
          %v1433 = vunpack.c.h.b16 %v736
          %v1434 = vunpack.c.l.b16 %v737
          %v1435 = vunpack.c.h.b16 %v737
          %v1436 = vunpack.c.l.b16 %v738
          %v1437 = vunpack.c.h.b16 %v738
          %v1438 = vunpack.c.l.b16 %v739
          %v1439 = vunpack.c.h.b16 %v739
          %v1440 = vunpack.c.l.b16 %v740
          %v1441 = vunpack.c.h.b16 %v740
          %v1442 = vunpack.c.l.b16 %v741
          %v1443 = vunpack.c.h.b16 %v741
          %v1444 = vunpack.c.l.b16 %v742
          %v1445 = vunpack.c.h.b16 %v742
          %v1446 = vunpack.c.l.b16 %v743
          %v1447 = vunpack.c.h.b16 %v743
          %v1448 = vunpack.c.l.b16 %v744
          %v1449 = vunpack.c.h.b16 %v744
          %v1450 = vunpack.c.l.b16 %v745
          %v1451 = vunpack.c.h.b16 %v745
          %v1452 = vunpack.c.l.b16 %v746
          %v1453 = vunpack.c.h.b16 %v746
          %v1454 = vunpack.c.l.b16 %v747
          %v1455 = vunpack.c.h.b16 %v747
          %v1456 = vunpack.c.l.b16 %v748
          %v1457 = vunpack.c.h.b16 %v748
          %v1458 = vunpack.c.l.b16 %v749
          %v1459 = vunpack.c.h.b16 %v749
          %v1460 = vunpack.c.l.b16 %v750
          %v1461 = vunpack.c.h.b16 %v750
          %v1462 = vunpack.c.l.b16 %v751
          %v1463 = vunpack.c.h.b16 %v751
          %v1464 = vunpack.c.l.b16 %v752
          %v1465 = vunpack.c.h.b16 %v752
          %v1466 = vunpack.c.l.b16 %v753
          %v1467 = vunpack.c.h.b16 %v753
          %v1468 = vunpack.c.l.b16 %v754
          %v1469 = vunpack.c.h.b16 %v754
          %v1470 = vunpack.c.l.b16 %v755
          %v1471 = vunpack.c.h.b16 %v755
          %v1472 = vunpack.c.l.b16 %v756
          %v1473 = vunpack.c.h.b16 %v756
          %v1474 = vunpack.c.l.b16 %v757
          %v1475 = vunpack.c.h.b16 %v757
          %v1476 = vunpack.c.l.b16 %v758
          %v1477 = vunpack.c.h.b16 %v758
          %v1478 = vunpack.c.l.b16 %v759
          %v1479 = vunpack.c.h.b16 %v759
          %v1480 = vunpack.c.l.b16 %v760
          %v1481 = vunpack.c.h.b16 %v760
          %v1482 = vunpack.c.l.b16 %v761
          %v1483 = vunpack.c.h.b16 %v761
          %v1484 = vunpack.c.l.b16 %v762
          %v1485 = vunpack.c.h.b16 %v762
          %v1486 = vunpack.c.l.b16 %v763
          %v1487 = vunpack.c.h.b16 %v763
          %v1488 = vunpack.c.l.b16 %v764
          %v1489 = vunpack.c.h.b16 %v764
          %v1490 = vunpack.c.l.b16 %v765
          %v1491 = vunpack.c.h.b16 %v765
          %v1492 = vunpack.c.l.b16 %v766
          %v1493 = vunpack.c.h.b16 %v766
          %v1494 = vunpack.c.l.b16 %v767
          %v1495 = vunpack.c.h.b16 %v767
          %v1496 = vunpack.c.l.b16 %v768
          %v1497 = vunpack.c.h.b16 %v768
          %v1498 = vunpack.c.l.b16 %v769
          %v1499 = vunpack.c.h.b16 %v769
          %v1500 = vunpack.c.l.b16 %v770
          %v1501 = vunpack.c.h.b16 %v770
          %v1502 = vunpack.c.l.b16 %v771
          %v1503 = vunpack.c.h.b16 %v771
          %v1504 = vunpack.c.l.b16 %v772
          %v1505 = vunpack.c.h.b16 %v772
          %v1506 = vunpack.c.l.b16 %v773
          %v1507 = vunpack.c.h.b16 %v773
          %v1508 = vunpack.c.l.b16 %v774
          %v1509 = vunpack.c.h.b16 %v774
          %v1510 = vunpack.c.l.b16 %v775
          %v1511 = vunpack.c.h.b16 %v775
          %v1512 = vunpack.c.l.b16 %v776
          %v1513 = vunpack.c.h.b16 %v776
          %v1514 = vunpack.c.l.b16 %v777
          %v1515 = vunpack.c.h.b16 %v777
          %v1516 = vunpack.c.l.b16 %v778
          %v1517 = vunpack.c.h.b16 %v778
          %v1518 = vunpack.c.l.b16 %v779
          %v1519 = vunpack.c.h.b16 %v779
          %v1520 = vunpack.c.l.b16 %v780
          %v1521 = vunpack.c.h.b16 %v780
          %v1522 = vunpack.c.l.b16 %v781
          %v1523 = vunpack.c.h.b16 %v781
          %v1524 = vunpack.c.l.b16 %v782
          %v1525 = vunpack.c.h.b16 %v782
          %v1526 = vunpack.c.l.b16 %v783
          %v1527 = vunpack.c.h.b16 %v783
          %v1528 = vunpack.c.l.b16 %v784
          %v1529 = vunpack.c.h.b16 %v784
          %v1530 = vunpack.c.l.b16 %v785
          %v1531 = vunpack.c.h.b16 %v785
          %v1532 = vunpack.c.l.b16 %v786
          %v1533 = vunpack.c.h.b16 %v786
          %v1534 = vunpack.c.l.b16 %v787
          %v1535 = vunpack.c.h.b16 %v787
          %v1536 = vunpack.c.l.b16 %v788
          %v1537 = vunpack.c.h.b16 %v788
          %v1538 = vunpack.c.l.b16 %v789
          %v1539 = vunpack.c.h.b16 %v789
          %v1540 = vunpack.c.l.b16 %v790
          %v1541 = vunpack.c.h.b16 %v790
          %v1542 = vunpack.c.l.b16 %v791
          %v1543 = vunpack.c.h.b16 %v791
          %v1544 = vunpack.c.l.b16 %v792
          %v1545 = vunpack.c.h.b16 %v792
          %v1546 = vunpack.c.l.b16 %v793
          %v1547 = vunpack.c.h.b16 %v793
          %v1548 = vunpack.c.l.b16 %v794
          %v1549 = vunpack.c.h.b16 %v794
          %v1550 = vunpack.c.l.b16 %v795
          %v1551 = vunpack.c.h.b16 %v795
          %v1552 = vunpack.c.l.b16 %v796
          %v1553 = vunpack.c.h.b16 %v796
          %v1554 = vunpack.c.l.b16 %v797
          %v1555 = vunpack.c.h.b16 %v797
          %v1556 = vunpack.c.l.b16 %v798
          %v1557 = vunpack.c.h.b16 %v798
          %v1558 = vunpack.c.l.b16 %v799
          %v1559 = vunpack.c.h.b16 %v799
          %v1560 = vunpack.c.l.b16 %v800
          %v1561 = vunpack.c.h.b16 %v800
          %v1562 = vunpack.c.l.b16 %v801
          %v1563 = vunpack.c.h.b16 %v801
          %v1564 = vunpack.c.l.b16 %v802
          %v1565 = vunpack.c.h.b16 %v802
          %v1566 = vunpack.c.l.b16 %v803
          %v1567 = vunpack.c.h.b16 %v803
          %v1568 = vunpack.c.l.b16 %v804
          %v1569 = vunpack.c.h.b16 %v804
          %v1570 = vunpack.c.l.b16 %v805
          %v1571 = vunpack.c.h.b16 %v805
          %v1572 = vunpack.c.l.b16 %v806
          %v1573 = vunpack.c.h.b16 %v806
          %v1574 = vunpack.c.l.b16 %v807
          %v1575 = vunpack.c.h.b16 %v807
          %v1576 = vunpack.c.l.b16 %v808
          %v1577 = vunpack.c.h.b16 %v808
          %v1578 = vunpack.c.l.b16 %v809
          %v1579 = vunpack.c.h.b16 %v809
          %v1580 = vunpack.c.l.b16 %v810
          %v1581 = vunpack.c.h.b16 %v810
          %v1582 = vunpack.c.l.b16 %v811
          %v1583 = vunpack.c.h.b16 %v811
          %v1584 = vunpack.c.l.b16 %v812
          %v1585 = vunpack.c.h.b16 %v812
          %v1586 = vunpack.c.l.b16 %v813
          %v1587 = vunpack.c.h.b16 %v813
          %v1588 = vunpack.c.l.b16 %v814
          %v1589 = vunpack.c.h.b16 %v814
          %v1590 = vunpack.c.l.b16 %v815
          %v1591 = vunpack.c.h.b16 %v815
          %v1592 = vunpack.c.l.b16 %v816
          %v1593 = vunpack.c.h.b16 %v816
          %v1594 = vunpack.c.l.b16 %v817
          %v1595 = vunpack.c.h.b16 %v817
          %v1596 = vunpack.c.l.b16 %v818
          %v1597 = vunpack.c.h.b16 %v818
          %v1598 = vunpack.c.l.b16 %v819
          %v1599 = vunpack.c.h.b16 %v819
          %v1600 = vunpack.c.l.b16 %v820
          %v1601 = vunpack.c.h.b16 %v820
          %v1602 = vunpack.c.l.b16 %v821
          %v1603 = vunpack.c.h.b16 %v821
          %v1604 = vunpack.c.l.b16 %v822
          %v1605 = vunpack.c.h.b16 %v822
          %v1606 = vunpack.c.l.b16 %v823
          %v1607 = vunpack.c.h.b16 %v823
          %v1608 = vunpack.c.l.b16 %v824
          %v1609 = vunpack.c.h.b16 %v824
          %v1610 = vunpack.c.l.b16 %v825
          %v1611 = vunpack.c.h.b16 %v825
          %v1612 = vunpack.c.l.b16 %v826
          %v1613 = vunpack.c.h.b16 %v826
          %v1614 = vunpack.c.l.b16 %v827
          %v1615 = vunpack.c.h.b16 %v827
          %v1616 = vunpack.c.l.b16 %v828
          %v1617 = vunpack.c.h.b16 %v828
          %v1618 = vunpack.c.l.b16 %v829
          %v1619 = vunpack.c.h.b16 %v829
          %v1620 = vunpack.c.l.b16 %v830
          %v1621 = vunpack.c.h.b16 %v830
          %v1622 = vunpack.c.l.b16 %v831
          %v1623 = vunpack.c.h.b16 %v831
          %v1624 = vunpack.c.l.b16 %v832
          %v1625 = vunpack.c.h.b16 %v832
          %v1626 = vunpack.c.l.b16 %v833
          %v1627 = vunpack.c.h.b16 %v833
          %v1628 = vunpack.c.l.b16 %v834
          %v1629 = vunpack.c.h.b16 %v834
          %v1630 = vunpack.c.l.b16 %v835
          %v1631 = vunpack.c.h.b16 %v835
          %v1632 = vunpack.c.l.b16 %v836
          %v1633 = vunpack.c.h.b16 %v836
          %v1634 = vunpack.c.l.b16 %v837
          %v1635 = vunpack.c.h.b16 %v837
          %v1636 = vunpack.c.l.b16 %v838
          %v1637 = vunpack.c.h.b16 %v838
          %v1638 = vunpack.c.l.b16 %v839
          %v1639 = vunpack.c.h.b16 %v839
          %v1640 = vunpack.c.l.b16 %v840
          %v1641 = vunpack.c.h.b16 %v840
          %v1642 = vunpack.c.l.b16 %v841
          %v1643 = vunpack.c.h.b16 %v841
          %v1644 = vunpack.c.l.b16 %v842
          %v1645 = vunpack.c.h.b16 %v842
          %v1646 = vunpack.c.l.b16 %v843
          %v1647 = vunpack.c.h.b16 %v843
          %v1648 = vunpack.c.l.b16 %v844
          %v1649 = vunpack.c.h.b16 %v844
          %v1650 = vunpack.c.l.b16 %v845
          %v1651 = vunpack.c.h.b16 %v845
          %v1652 = vunpack.c.l.b16 %v846
          %v1653 = vunpack.c.h.b16 %v846
          %v1654 = vunpack.c.l.b16 %v847
          %v1655 = vunpack.c.h.b16 %v847
          %v1656 = vunpack.c.l.b16 %v848
          %v1657 = vunpack.c.h.b16 %v848
          %v1658 = vunpack.c.l.b16 %v849
          %v1659 = vunpack.c.h.b16 %v849
          %v1660 = vpack.c.b16 %v1156, %v1148
          %v1661 = vpack.c.b16 %v1157, %v1149
          %v1662 = vpack.c.b16 %v1158, %v1150
          %v1663 = vpack.c.b16 %v1159, %v1151
          %v1664 = vpack.c.b16 %v1160, %v1152
          %v1665 = vpack.c.b16 %v1161, %v1153
          %v1666 = vpack.c.b16 %v1162, %v1154
          %v1667 = vpack.c.b16 %v1163, %v1155
          %v1668 = vpack.c.b16 %v1172, %v1164
          %v1669 = vpack.c.b16 %v1173, %v1165
          %v1670 = vpack.c.b16 %v1174, %v1166
          %v1671 = vpack.c.b16 %v1175, %v1167
          %v1672 = vpack.c.b16 %v1176, %v1168
          %v1673 = vpack.c.b16 %v1177, %v1169
          %v1674 = vpack.c.b16 %v1178, %v1170
          %v1675 = vpack.c.b16 %v1179, %v1171
          %v1676 = vpack.c.b16 %v1188, %v1180
          %v1677 = vpack.c.b16 %v1189, %v1181
          %v1678 = vpack.c.b16 %v1190, %v1182
          %v1679 = vpack.c.b16 %v1191, %v1183
          %v1680 = vpack.c.b16 %v1192, %v1184
          %v1681 = vpack.c.b16 %v1193, %v1185
          %v1682 = vpack.c.b16 %v1194, %v1186
          %v1683 = vpack.c.b16 %v1195, %v1187
          %v1684 = vpack.c.b16 %v1204, %v1196
          %v1685 = vpack.c.b16 %v1205, %v1197
          %v1686 = vpack.c.b16 %v1206, %v1198
          %v1687 = vpack.c.b16 %v1207, %v1199
          %v1688 = vpack.c.b16 %v1208, %v1200
          %v1689 = vpack.c.b16 %v1209, %v1201
          %v1690 = vpack.c.b16 %v1210, %v1202
          %v1691 = vpack.c.b16 %v1211, %v1203
          %v1692 = vpack.c.b16 %v1220, %v1212
          %v1693 = vpack.c.b16 %v1221, %v1213
          %v1694 = vpack.c.b16 %v1222, %v1214
          %v1695 = vpack.c.b16 %v1223, %v1215
          %v1696 = vpack.c.b16 %v1224, %v1216
          %v1697 = vpack.c.b16 %v1225, %v1217
          %v1698 = vpack.c.b16 %v1226, %v1218
          %v1699 = vpack.c.b16 %v1227, %v1219
          %v1700 = vpack.c.b16 %v1236, %v1228
          %v1701 = vpack.c.b16 %v1237, %v1229
          %v1702 = vpack.c.b16 %v1238, %v1230
          %v1703 = vpack.c.b16 %v1239, %v1231
          %v1704 = vpack.c.b16 %v1240, %v1232
          %v1705 = vpack.c.b16 %v1241, %v1233
          %v1706 = vpack.c.b16 %v1242, %v1234
          %v1707 = vpack.c.b16 %v1243, %v1235
          %v1708 = vpack.c.b16 %v1252, %v1244
          %v1709 = vpack.c.b16 %v1253, %v1245
          %v1710 = vpack.c.b16 %v1254, %v1246
          %v1711 = vpack.c.b16 %v1255, %v1247
          %v1712 = vpack.c.b16 %v1256, %v1248
          %v1713 = vpack.c.b16 %v1257, %v1249
          %v1714 = vpack.c.b16 %v1258, %v1250
          %v1715 = vpack.c.b16 %v1259, %v1251
          %v1716 = vpack.c.b16 %v1268, %v1260
          %v1717 = vpack.c.b16 %v1269, %v1261
          %v1718 = vpack.c.b16 %v1270, %v1262
          %v1719 = vpack.c.b16 %v1271, %v1263
          %v1720 = vpack.c.b16 %v1272, %v1264
          %v1721 = vpack.c.b16 %v1273, %v1265
          %v1722 = vpack.c.b16 %v1274, %v1266
          %v1723 = vpack.c.b16 %v1275, %v1267
          %v1724 = vpack.c.b16 %v1284, %v1276
          %v1725 = vpack.c.b16 %v1285, %v1277
          %v1726 = vpack.c.b16 %v1286, %v1278
          %v1727 = vpack.c.b16 %v1287, %v1279
          %v1728 = vpack.c.b16 %v1288, %v1280
          %v1729 = vpack.c.b16 %v1289, %v1281
          %v1730 = vpack.c.b16 %v1290, %v1282
          %v1731 = vpack.c.b16 %v1291, %v1283
          %v1732 = vpack.c.b16 %v1300, %v1292
          %v1733 = vpack.c.b16 %v1301, %v1293
          %v1734 = vpack.c.b16 %v1302, %v1294
          %v1735 = vpack.c.b16 %v1303, %v1295
          %v1736 = vpack.c.b16 %v1304, %v1296
          %v1737 = vpack.c.b16 %v1305, %v1297
          %v1738 = vpack.c.b16 %v1306, %v1298
          %v1739 = vpack.c.b16 %v1307, %v1299
          %v1740 = vpack.c.b16 %v1316, %v1308
          %v1741 = vpack.c.b16 %v1317, %v1309
          %v1742 = vpack.c.b16 %v1318, %v1310
          %v1743 = vpack.c.b16 %v1319, %v1311
          %v1744 = vpack.c.b16 %v1320, %v1312
          %v1745 = vpack.c.b16 %v1321, %v1313
          %v1746 = vpack.c.b16 %v1322, %v1314
          %v1747 = vpack.c.b16 %v1323, %v1315
          %v1748 = vpack.c.b16 %v1332, %v1324
          %v1749 = vpack.c.b16 %v1333, %v1325
          %v1750 = vpack.c.b16 %v1334, %v1326
          %v1751 = vpack.c.b16 %v1335, %v1327
          %v1752 = vpack.c.b16 %v1336, %v1328
          %v1753 = vpack.c.b16 %v1337, %v1329
          %v1754 = vpack.c.b16 %v1338, %v1330
          %v1755 = vpack.c.b16 %v1339, %v1331
          %v1756 = vpack.c.b16 %v1348, %v1340
          %v1757 = vpack.c.b16 %v1349, %v1341
          %v1758 = vpack.c.b16 %v1350, %v1342
          %v1759 = vpack.c.b16 %v1351, %v1343
          %v1760 = vpack.c.b16 %v1352, %v1344
          %v1761 = vpack.c.b16 %v1353, %v1345
          %v1762 = vpack.c.b16 %v1354, %v1346
          %v1763 = vpack.c.b16 %v1355, %v1347
          %v1764 = vpack.c.b16 %v1364, %v1356
          %v1765 = vpack.c.b16 %v1365, %v1357
          %v1766 = vpack.c.b16 %v1366, %v1358
          %v1767 = vpack.c.b16 %v1367, %v1359
          %v1768 = vpack.c.b16 %v1368, %v1360
          %v1769 = vpack.c.b16 %v1369, %v1361
          %v1770 = vpack.c.b16 %v1370, %v1362
          %v1771 = vpack.c.b16 %v1371, %v1363
          %v1772 = vpack.c.b16 %v1380, %v1372
          %v1773 = vpack.c.b16 %v1381, %v1373
          %v1774 = vpack.c.b16 %v1382, %v1374
          %v1775 = vpack.c.b16 %v1383, %v1375
          %v1776 = vpack.c.b16 %v1384, %v1376
          %v1777 = vpack.c.b16 %v1385, %v1377
          %v1778 = vpack.c.b16 %v1386, %v1378
          %v1779 = vpack.c.b16 %v1387, %v1379
          %v1780 = vpack.c.b16 %v1396, %v1388
          %v1781 = vpack.c.b16 %v1397, %v1389
          %v1782 = vpack.c.b16 %v1398, %v1390
          %v1783 = vpack.c.b16 %v1399, %v1391
          %v1784 = vpack.c.b16 %v1400, %v1392
          %v1785 = vpack.c.b16 %v1401, %v1393
          %v1786 = vpack.c.b16 %v1402, %v1394
          %v1787 = vpack.c.b16 %v1403, %v1395
          %v1788 = vpack.c.b16 %v1412, %v1404
          %v1789 = vpack.c.b16 %v1413, %v1405
          %v1790 = vpack.c.b16 %v1414, %v1406
          %v1791 = vpack.c.b16 %v1415, %v1407
          %v1792 = vpack.c.b16 %v1416, %v1408
          %v1793 = vpack.c.b16 %v1417, %v1409
          %v1794 = vpack.c.b16 %v1418, %v1410
          %v1795 = vpack.c.b16 %v1419, %v1411
          %v1796 = vpack.c.b16 %v1428, %v1420
          %v1797 = vpack.c.b16 %v1429, %v1421
          %v1798 = vpack.c.b16 %v1430, %v1422
          %v1799 = vpack.c.b16 %v1431, %v1423
          %v1800 = vpack.c.b16 %v1432, %v1424
          %v1801 = vpack.c.b16 %v1433, %v1425
          %v1802 = vpack.c.b16 %v1434, %v1426
          %v1803 = vpack.c.b16 %v1435, %v1427
          %v1804 = vpack.c.b16 %v1444, %v1436
          %v1805 = vpack.c.b16 %v1445, %v1437
          %v1806 = vpack.c.b16 %v1446, %v1438
          %v1807 = vpack.c.b16 %v1447, %v1439
          %v1808 = vpack.c.b16 %v1448, %v1440
          %v1809 = vpack.c.b16 %v1449, %v1441
          %v1810 = vpack.c.b16 %v1450, %v1442
          %v1811 = vpack.c.b16 %v1451, %v1443
          %v1812 = vpack.c.b16 %v1460, %v1452
          %v1813 = vpack.c.b16 %v1461, %v1453
          %v1814 = vpack.c.b16 %v1462, %v1454
          %v1815 = vpack.c.b16 %v1463, %v1455
          %v1816 = vpack.c.b16 %v1464, %v1456
          %v1817 = vpack.c.b16 %v1465, %v1457
          %v1818 = vpack.c.b16 %v1466, %v1458
          %v1819 = vpack.c.b16 %v1467, %v1459
          %v1820 = vpack.c.b16 %v1476, %v1468
          %v1821 = vpack.c.b16 %v1477, %v1469
          %v1822 = vpack.c.b16 %v1478, %v1470
          %v1823 = vpack.c.b16 %v1479, %v1471
          %v1824 = vpack.c.b16 %v1480, %v1472
          %v1825 = vpack.c.b16 %v1481, %v1473
          %v1826 = vpack.c.b16 %v1482, %v1474
          %v1827 = vpack.c.b16 %v1483, %v1475
          %v1828 = vpack.c.b16 %v1492, %v1484
          %v1829 = vpack.c.b16 %v1493, %v1485
          %v1830 = vpack.c.b16 %v1494, %v1486
          %v1831 = vpack.c.b16 %v1495, %v1487
          %v1832 = vpack.c.b16 %v1496, %v1488
          %v1833 = vpack.c.b16 %v1497, %v1489
          %v1834 = vpack.c.b16 %v1498, %v1490
          %v1835 = vpack.c.b16 %v1499, %v1491
          %v1836 = vpack.c.b16 %v1508, %v1500
          %v1837 = vpack.c.b16 %v1509, %v1501
          %v1838 = vpack.c.b16 %v1510, %v1502
          %v1839 = vpack.c.b16 %v1511, %v1503
          %v1840 = vpack.c.b16 %v1512, %v1504
          %v1841 = vpack.c.b16 %v1513, %v1505
          %v1842 = vpack.c.b16 %v1514, %v1506
          %v1843 = vpack.c.b16 %v1515, %v1507
          %v1844 = vpack.c.b16 %v1524, %v1516
          %v1845 = vpack.c.b16 %v1525, %v1517
          %v1846 = vpack.c.b16 %v1526, %v1518
          %v1847 = vpack.c.b16 %v1527, %v1519
          %v1848 = vpack.c.b16 %v1528, %v1520
          %v1849 = vpack.c.b16 %v1529, %v1521
          %v1850 = vpack.c.b16 %v1530, %v1522
          %v1851 = vpack.c.b16 %v1531, %v1523
          %v1852 = vpack.c.b16 %v1540, %v1532
          %v1853 = vpack.c.b16 %v1541, %v1533
          %v1854 = vpack.c.b16 %v1542, %v1534
          %v1855 = vpack.c.b16 %v1543, %v1535
          %v1856 = vpack.c.b16 %v1544, %v1536
          %v1857 = vpack.c.b16 %v1545, %v1537
          %v1858 = vpack.c.b16 %v1546, %v1538
          %v1859 = vpack.c.b16 %v1547, %v1539
          %v1860 = vpack.c.b16 %v1556, %v1548
          %v1861 = vpack.c.b16 %v1557, %v1549
          %v1862 = vpack.c.b16 %v1558, %v1550
          %v1863 = vpack.c.b16 %v1559, %v1551
          %v1864 = vpack.c.b16 %v1560, %v1552
          %v1865 = vpack.c.b16 %v1561, %v1553
          %v1866 = vpack.c.b16 %v1562, %v1554
          %v1867 = vpack.c.b16 %v1563, %v1555
          %v1868 = vpack.c.b16 %v1572, %v1564
          %v1869 = vpack.c.b16 %v1573, %v1565
          %v1870 = vpack.c.b16 %v1574, %v1566
          %v1871 = vpack.c.b16 %v1575, %v1567
          %v1872 = vpack.c.b16 %v1576, %v1568
          %v1873 = vpack.c.b16 %v1577, %v1569
          %v1874 = vpack.c.b16 %v1578, %v1570
          %v1875 = vpack.c.b16 %v1579, %v1571
          %v1876 = vpack.c.b16 %v1588, %v1580
          %v1877 = vpack.c.b16 %v1589, %v1581
          %v1878 = vpack.c.b16 %v1590, %v1582
          %v1879 = vpack.c.b16 %v1591, %v1583
          %v1880 = vpack.c.b16 %v1592, %v1584
          %v1881 = vpack.c.b16 %v1593, %v1585
          %v1882 = vpack.c.b16 %v1594, %v1586
          %v1883 = vpack.c.b16 %v1595, %v1587
          %v1884 = vpack.c.b16 %v1604, %v1596
          %v1885 = vpack.c.b16 %v1605, %v1597
          %v1886 = vpack.c.b16 %v1606, %v1598
          %v1887 = vpack.c.b16 %v1607, %v1599
          %v1888 = vpack.c.b16 %v1608, %v1600
          %v1889 = vpack.c.b16 %v1609, %v1601
          %v1890 = vpack.c.b16 %v1610, %v1602
          %v1891 = vpack.c.b16 %v1611, %v1603
          %v1892 = vpack.c.b16 %v1620, %v1612
          %v1893 = vpack.c.b16 %v1621, %v1613
          %v1894 = vpack.c.b16 %v1622, %v1614
          %v1895 = vpack.c.b16 %v1623, %v1615
          %v1896 = vpack.c.b16 %v1624, %v1616
          %v1897 = vpack.c.b16 %v1625, %v1617
          %v1898 = vpack.c.b16 %v1626, %v1618
          %v1899 = vpack.c.b16 %v1627, %v1619
          %v1900 = vpack.c.b16 %v1636, %v1628
          %v1901 = vpack.c.b16 %v1637, %v1629
          %v1902 = vpack.c.b16 %v1638, %v1630
          %v1903 = vpack.c.b16 %v1639, %v1631
          %v1904 = vpack.c.b16 %v1640, %v1632
          %v1905 = vpack.c.b16 %v1641, %v1633
          %v1906 = vpack.c.b16 %v1642, %v1634
          %v1907 = vpack.c.b16 %v1643, %v1635
          %v1908 = vpack.c.b16 %v1652, %v1644
          %v1909 = vpack.c.b16 %v1653, %v1645
          %v1910 = vpack.c.b16 %v1654, %v1646
          %v1911 = vpack.c.b16 %v1655, %v1647
          %v1912 = vpack.c.b16 %v1656, %v1648
          %v1913 = vpack.c.b16 %v1657, %v1649
          %v1914 = vpack.c.b16 %v1658, %v1650
          %v1915 = vpack.c.b16 %v1659, %v1651
          %2172 = vmatprep.subr.bf16.mxu0 %v1661
          %2173 = vmatpush1.bf16.msra.mxu0 %v1660
          %2174 = vmatprep.subr.bf16.mxu0 %v1669
          %2175 = vmatpush1.bf16.msra.mxu0 %v1668
          %2176 = vmatprep.subr.bf16.mxu0 %v1677
          %2177 = vmatpush1.bf16.msra.mxu0 %v1676
          %2178 = vmatprep.subr.bf16.mxu0 %v1685
          %2179 = vmatpush1.bf16.msra.mxu0 %v1684
          %2180 = vmatprep.subr.bf16.mxu0 %v1693
          %2181 = vmatpush1.bf16.msra.mxu0 %v1692
          %2182 = vmatprep.subr.bf16.mxu0 %v1701
          %2183 = vmatpush1.bf16.msra.mxu0 %v1700
          %2184 = vmatprep.subr.bf16.mxu0 %v1709
          %2185 = vmatpush1.bf16.msra.mxu0 %v1708
          %2186 = vmatprep.subr.bf16.mxu0 %v1717
          %2187 = vmatpush1.bf16.msra.mxu0 %v1716
          %2188 = vmatprep.subr.bf16.mxu0 %v1725
          %2189 = vmatpush1.bf16.msra.mxu0 %v1724
          %2190 = vmatprep.subr.bf16.mxu0 %v1733
          %2191 = vmatpush1.bf16.msra.mxu0 %v1732
          %2192 = vmatprep.subr.bf16.mxu0 %v1741
          %2193 = vmatpush1.bf16.msra.mxu0 %v1740
          %2194 = vmatprep.subr.bf16.mxu0 %v1749
          %2195 = vmatpush1.bf16.msra.mxu0 %v1748
          %2196 = vmatprep.subr.bf16.mxu0 %v1757
          %2197 = vmatpush1.bf16.msra.mxu0 %v1756
          %2198 = vmatprep.subr.bf16.mxu0 %v1765
          %2199 = vmatpush1.bf16.msra.mxu0 %v1764
          %2200 = vmatprep.subr.bf16.mxu0 %v1773
          %2201 = vmatpush1.bf16.msra.mxu0 %v1772
          %2202 = vmatprep.subr.bf16.mxu0 %v1781
          %2203 = vmatpush1.bf16.msra.mxu0 %v1780
          %2204 = vmatprep.mubr.bf16.mxu0 %v591
          %2205 = vmatmul.mubr.bf16.gmra.mrb[0].mxu0 %v590
          %v2206 = vpop.f32.mrb[0].mxu0
          %v2207 = vadd.f32 %v855, %v2206
          %v2208 = vpop.f32.mrb[0].mxu0
          %v2209 = vadd.f32 %v859, %v2208
          %v2210 = vpop.f32.mrb[0].mxu0
          %v2211 = vpop.f32.mrb[0].mxu0
          %2212 = vdwg.mxu0
          %2213 = vmatprep.subr.bf16.mxu0 %v1789
          %2214 = vmatpush1.bf16.msra.mxu0 %v1788
          %2215 = vmatprep.subr.bf16.mxu0 %v1797
          %2216 = vmatpush1.bf16.msra.mxu0 %v1796
          %2217 = vmatprep.subr.bf16.mxu0 %v1805
          %2218 = vmatpush1.bf16.msra.mxu0 %v1804
          %2219 = vmatprep.subr.bf16.mxu0 %v1813
          %2220 = vmatpush1.bf16.msra.mxu0 %v1812
          %2221 = vmatprep.subr.bf16.mxu0 %v1821
          %2222 = vmatpush1.bf16.msra.mxu0 %v1820
          %2223 = vmatprep.subr.bf16.mxu0 %v1829
          %2224 = vmatpush1.bf16.msra.mxu0 %v1828
          %2225 = vmatprep.subr.bf16.mxu0 %v1837
          %2226 = vmatpush1.bf16.msra.mxu0 %v1836
          %2227 = vmatprep.subr.bf16.mxu0 %v1845
          %2228 = vmatpush1.bf16.msra.mxu0 %v1844
          %2229 = vmatprep.subr.bf16.mxu0 %v1853
          %2230 = vmatpush1.bf16.msra.mxu0 %v1852
          %2231 = vmatprep.subr.bf16.mxu0 %v1861
          %2232 = vmatpush1.bf16.msra.mxu0 %v1860
          %2233 = vmatprep.subr.bf16.mxu0 %v1869
          %2234 = vmatpush1.bf16.msra.mxu0 %v1868
          %2235 = vmatprep.subr.bf16.mxu0 %v1877
          %2236 = vmatpush1.bf16.msra.mxu0 %v1876
          %2237 = vmatprep.subr.bf16.mxu0 %v1885
          %2238 = vmatpush1.bf16.msra.mxu0 %v1884
          %2239 = vmatprep.subr.bf16.mxu0 %v1893
          %2240 = vmatpush1.bf16.msra.mxu0 %v1892
          %2241 = vmatprep.subr.bf16.mxu0 %v1901
          %2242 = vmatpush1.bf16.msra.mxu0 %v1900
          %2243 = vmatprep.subr.bf16.mxu0 %v1909
          %2244 = vmatpush1.bf16.msra.mxu0 %v1908
          %2245 = vmatprep.mubr.bf16.mxu0 %v593
          %2246 = vmatmul.mubr.bf16.gmra.mrb[0].mxu0 %v592
          %v2247 = vpop.f32.mrb[0].mxu0
          %v2248 = vadd.f32 %v2207, %v2247
          %v2249 = vpop.f32.mrb[0].mxu0
          %v2250 = vadd.f32 %v2209, %v2249
          %v2251 = vpop.f32.mrb[0].mxu0
          %v2252 = vpop.f32.mrb[0].mxu0
          %2253 = vdwg.mxu0
          %2254 = vmatprep.subr.bf16.mxu0 %v1663
          %2255 = vmatpush1.bf16.msra.mxu0 %v1662
          %2256 = vmatprep.subr.bf16.mxu0 %v1671
          %2257 = vmatpush1.bf16.msra.mxu0 %v1670
          %2258 = vmatprep.subr.bf16.mxu0 %v1679
          %2259 = vmatpush1.bf16.msra.mxu0 %v1678
          %2260 = vmatprep.subr.bf16.mxu0 %v1687
          %2261 = vmatpush1.bf16.msra.mxu0 %v1686
          %2262 = vmatprep.subr.bf16.mxu0 %v1695
          %2263 = vmatpush1.bf16.msra.mxu0 %v1694
          %2264 = vmatprep.subr.bf16.mxu0 %v1703
          %2265 = vmatpush1.bf16.msra.mxu0 %v1702
          %2266 = vmatprep.subr.bf16.mxu0 %v1711
          %2267 = vmatpush1.bf16.msra.mxu0 %v1710
          %2268 = vmatprep.subr.bf16.mxu0 %v1719
          %2269 = vmatpush1.bf16.msra.mxu0 %v1718
          %2270 = vmatprep.subr.bf16.mxu0 %v1727
          %2271 = vmatpush1.bf16.msra.mxu0 %v1726
          %2272 = vmatprep.subr.bf16.mxu0 %v1735
          %2273 = vmatpush1.bf16.msra.mxu0 %v1734
          %2274 = vmatprep.subr.bf16.mxu0 %v1743
          %2275 = vmatpush1.bf16.msra.mxu0 %v1742
          %2276 = vmatprep.subr.bf16.mxu0 %v1751
          %2277 = vmatpush1.bf16.msra.mxu0 %v1750
          %2278 = vmatprep.subr.bf16.mxu0 %v1759
          %2279 = vmatpush1.bf16.msra.mxu0 %v1758
          %2280 = vmatprep.subr.bf16.mxu0 %v1767
          %2281 = vmatpush1.bf16.msra.mxu0 %v1766
          %2282 = vmatprep.subr.bf16.mxu0 %v1775
          %2283 = vmatpush1.bf16.msra.mxu0 %v1774
          %2284 = vmatprep.subr.bf16.mxu0 %v1783
          %2285 = vmatpush1.bf16.msra.mxu0 %v1782
          %2286 = vmatprep.mubr.bf16.mxu0 %v591
          %2287 = vmatmul.mubr.bf16.gmra.mrb[0].mxu0 %v590
          %v2288 = vpop.f32.mrb[0].mxu0
          %v2289 = vadd.f32 %v863, %v2288
          %v2290 = vpop.f32.mrb[0].mxu0
          %v2291 = vadd.f32 %v867, %v2290
          %v2292 = vpop.f32.mrb[0].mxu0
          %v2293 = vpop.f32.mrb[0].mxu0
          %2294 = vdwg.mxu0
          %2295 = vmatprep.subr.bf16.mxu0 %v1791
          %2296 = vmatpush1.bf16.msra.mxu0 %v1790
          %2297 = vmatprep.subr.bf16.mxu0 %v1799
          %2298 = vmatpush1.bf16.msra.mxu0 %v1798
          %2299 = vmatprep.subr.bf16.mxu0 %v1807
          %2300 = vmatpush1.bf16.msra.mxu0 %v1806
          %2301 = vmatprep.subr.bf16.mxu0 %v1815
          %2302 = vmatpush1.bf16.msra.mxu0 %v1814
          %2303 = vmatprep.subr.bf16.mxu0 %v1823
          %2304 = vmatpush1.bf16.msra.mxu0 %v1822
          %2305 = vmatprep.subr.bf16.mxu0 %v1831
          %2306 = vmatpush1.bf16.msra.mxu0 %v1830
          %2307 = vmatprep.subr.bf16.mxu0 %v1839
          %2308 = vmatpush1.bf16.msra.mxu0 %v1838
          %2309 = vmatprep.subr.bf16.mxu0 %v1847
          %2310 = vmatpush1.bf16.msra.mxu0 %v1846
          %2311 = vmatprep.subr.bf16.mxu0 %v1855
          %2312 = vmatpush1.bf16.msra.mxu0 %v1854
          %2313 = vmatprep.subr.bf16.mxu0 %v1863
          %2314 = vmatpush1.bf16.msra.mxu0 %v1862
          %2315 = vmatprep.subr.bf16.mxu0 %v1871
          %2316 = vmatpush1.bf16.msra.mxu0 %v1870
          %2317 = vmatprep.subr.bf16.mxu0 %v1879
          %2318 = vmatpush1.bf16.msra.mxu0 %v1878
          %2319 = vmatprep.subr.bf16.mxu0 %v1887
          %2320 = vmatpush1.bf16.msra.mxu0 %v1886
          %2321 = vmatprep.subr.bf16.mxu0 %v1895
          %2322 = vmatpush1.bf16.msra.mxu0 %v1894
          %2323 = vmatprep.subr.bf16.mxu0 %v1903
          %2324 = vmatpush1.bf16.msra.mxu0 %v1902
          %2325 = vmatprep.subr.bf16.mxu0 %v1911
          %2326 = vmatpush1.bf16.msra.mxu0 %v1910
          %2327 = vmatprep.mubr.bf16.mxu0 %v593
          %2328 = vmatmul.mubr.bf16.gmra.mrb[0].mxu0 %v592
          %v2329 = vpop.f32.mrb[0].mxu0
          %v2330 = vadd.f32 %v2289, %v2329
          %v2331 = vpop.f32.mrb[0].mxu0
          %v2332 = vadd.f32 %v2291, %v2331
          %v2333 = vpop.f32.mrb[0].mxu0
          %v2334 = vpop.f32.mrb[0].mxu0
          %2335 = vdwg.mxu0
          %2336 = vmatprep.subr.bf16.mxu0 %v1665
          %2337 = vmatpush1.bf16.msra.mxu0 %v1664
          %2338 = vmatprep.subr.bf16.mxu0 %v1673
          %2339 = vmatpush1.bf16.msra.mxu0 %v1672
          %2340 = vmatprep.subr.bf16.mxu0 %v1681
          %2341 = vmatpush1.bf16.msra.mxu0 %v1680
          %2342 = vmatprep.subr.bf16.mxu0 %v1689
          %2343 = vmatpush1.bf16.msra.mxu0 %v1688
          %2344 = vmatprep.subr.bf16.mxu0 %v1697
          %2345 = vmatpush1.bf16.msra.mxu0 %v1696
          %2346 = vmatprep.subr.bf16.mxu0 %v1705
          %2347 = vmatpush1.bf16.msra.mxu0 %v1704
          %2348 = vmatprep.subr.bf16.mxu0 %v1713
          %2349 = vmatpush1.bf16.msra.mxu0 %v1712
          %2350 = vmatprep.subr.bf16.mxu0 %v1721
          %2351 = vmatpush1.bf16.msra.mxu0 %v1720
          %2352 = vmatprep.subr.bf16.mxu0 %v1729
          %2353 = vmatpush1.bf16.msra.mxu0 %v1728
          %2354 = vmatprep.subr.bf16.mxu0 %v1737
          %2355 = vmatpush1.bf16.msra.mxu0 %v1736
          %2356 = vmatprep.subr.bf16.mxu0 %v1745
          %2357 = vmatpush1.bf16.msra.mxu0 %v1744
          %2358 = vmatprep.subr.bf16.mxu0 %v1753
          %2359 = vmatpush1.bf16.msra.mxu0 %v1752
          %2360 = vmatprep.subr.bf16.mxu0 %v1761
          %2361 = vmatpush1.bf16.msra.mxu0 %v1760
          %2362 = vmatprep.subr.bf16.mxu0 %v1769
          %2363 = vmatpush1.bf16.msra.mxu0 %v1768
          %2364 = vmatprep.subr.bf16.mxu0 %v1777
          %2365 = vmatpush1.bf16.msra.mxu0 %v1776
          %2366 = vmatprep.subr.bf16.mxu0 %v1785
          %2367 = vmatpush1.bf16.msra.mxu0 %v1784
          %2368 = vmatprep.mubr.bf16.mxu0 %v591
          %2369 = vmatmul.mubr.bf16.gmra.mrb[0].mxu0 %v590
          %v2370 = vpop.f32.mrb[0].mxu0
          %v2371 = vadd.f32 %v871, %v2370
          %v2372 = vpop.f32.mrb[0].mxu0
          %v2373 = vadd.f32 %v875, %v2372
          %v2374 = vpop.f32.mrb[0].mxu0
          %v2375 = vpop.f32.mrb[0].mxu0
          %2376 = vdwg.mxu0
          %2377 = vmatprep.subr.bf16.mxu0 %v1793
          %2378 = vmatpush1.bf16.msra.mxu0 %v1792
          %2379 = vmatprep.subr.bf16.mxu0 %v1801
          %2380 = vmatpush1.bf16.msra.mxu0 %v1800
          %2381 = vmatprep.subr.bf16.mxu0 %v1809
          %2382 = vmatpush1.bf16.msra.mxu0 %v1808
          %2383 = vmatprep.subr.bf16.mxu0 %v1817
          %2384 = vmatpush1.bf16.msra.mxu0 %v1816
          %2385 = vmatprep.subr.bf16.mxu0 %v1825
          %2386 = vmatpush1.bf16.msra.mxu0 %v1824
          %2387 = vmatprep.subr.bf16.mxu0 %v1833
          %2388 = vmatpush1.bf16.msra.mxu0 %v1832
          %2389 = vmatprep.subr.bf16.mxu0 %v1841
          %2390 = vmatpush1.bf16.msra.mxu0 %v1840
          %2391 = vmatprep.subr.bf16.mxu0 %v1849
          %2392 = vmatpush1.bf16.msra.mxu0 %v1848
          %2393 = vmatprep.subr.bf16.mxu0 %v1857
          %2394 = vmatpush1.bf16.msra.mxu0 %v1856
          %2395 = vmatprep.subr.bf16.mxu0 %v1865
          %2396 = vmatpush1.bf16.msra.mxu0 %v1864
          %2397 = vmatprep.subr.bf16.mxu0 %v1873
          %2398 = vmatpush1.bf16.msra.mxu0 %v1872
          %2399 = vmatprep.subr.bf16.mxu0 %v1881
          %2400 = vmatpush1.bf16.msra.mxu0 %v1880
          %2401 = vmatprep.subr.bf16.mxu0 %v1889
          %2402 = vmatpush1.bf16.msra.mxu0 %v1888
          %2403 = vmatprep.subr.bf16.mxu0 %v1897
          %2404 = vmatpush1.bf16.msra.mxu0 %v1896
          %2405 = vmatprep.subr.bf16.mxu0 %v1905
          %2406 = vmatpush1.bf16.msra.mxu0 %v1904
          %2407 = vmatprep.subr.bf16.mxu0 %v1913
          %2408 = vmatpush1.bf16.msra.mxu0 %v1912
          %2409 = vmatprep.mubr.bf16.mxu0 %v593
          %2410 = vmatmul.mubr.bf16.gmra.mrb[0].mxu0 %v592
          %v2411 = vpop.f32.mrb[0].mxu0
          %v2412 = vadd.f32 %v2371, %v2411
          %v2413 = vpop.f32.mrb[0].mxu0
          %v2414 = vadd.f32 %v2373, %v2413
          %v2415 = vpop.f32.mrb[0].mxu0
          %v2416 = vpop.f32.mrb[0].mxu0
          %2417 = vdwg.mxu0
          %2418 = vmatprep.subr.bf16.mxu0 %v1667
          %2419 = vmatpush1.bf16.msra.mxu0 %v1666
          %2420 = vmatprep.subr.bf16.mxu0 %v1675
          %2421 = vmatpush1.bf16.msra.mxu0 %v1674
          %2422 = vmatprep.subr.bf16.mxu0 %v1683
          %2423 = vmatpush1.bf16.msra.mxu0 %v1682
          %2424 = vmatprep.subr.bf16.mxu0 %v1691
          %2425 = vmatpush1.bf16.msra.mxu0 %v1690
          %2426 = vmatprep.subr.bf16.mxu0 %v1699
          %2427 = vmatpush1.bf16.msra.mxu0 %v1698
          %2428 = vmatprep.subr.bf16.mxu0 %v1707
          %2429 = vmatpush1.bf16.msra.mxu0 %v1706
          %2430 = vmatprep.subr.bf16.mxu0 %v1715
          %2431 = vmatpush1.bf16.msra.mxu0 %v1714
          %2432 = vmatprep.subr.bf16.mxu0 %v1723
          %2433 = vmatpush1.bf16.msra.mxu0 %v1722
          %2434 = vmatprep.subr.bf16.mxu0 %v1731
          %2435 = vmatpush1.bf16.msra.mxu0 %v1730
          %2436 = vmatprep.subr.bf16.mxu0 %v1739
          %2437 = vmatpush1.bf16.msra.mxu0 %v1738
          %2438 = vmatprep.subr.bf16.mxu0 %v1747
          %2439 = vmatpush1.bf16.msra.mxu0 %v1746
          %2440 = vmatprep.subr.bf16.mxu0 %v1755
          %2441 = vmatpush1.bf16.msra.mxu0 %v1754
          %2442 = vmatprep.subr.bf16.mxu0 %v1763
          %2443 = vmatpush1.bf16.msra.mxu0 %v1762
          %2444 = vmatprep.subr.bf16.mxu0 %v1771
          %2445 = vmatpush1.bf16.msra.mxu0 %v1770
          %2446 = vmatprep.subr.bf16.mxu0 %v1779
          %2447 = vmatpush1.bf16.msra.mxu0 %v1778
          %2448 = vmatprep.subr.bf16.mxu0 %v1787
          %2449 = vmatpush1.bf16.msra.mxu0 %v1786
          %2450 = vmatprep.mubr.bf16.mxu0 %v591
          %2451 = vmatmul.mubr.bf16.gmra.mrb[0].mxu0 %v590
          %v2452 = vpop.f32.mrb[0].mxu0
          %v2453 = vadd.f32 %v879, %v2452
          %v2454 = vpop.f32.mrb[0].mxu0
          %v2455 = vadd.f32 %v883, %v2454
          %v2456 = vpop.f32.mrb[0].mxu0
          %v2457 = vpop.f32.mrb[0].mxu0
          %2458 = vdwg.mxu0
          %2459 = vmatprep.subr.bf16.mxu0 %v1795
          %2460 = vmatpush1.bf16.msra.mxu0 %v1794
          %2461 = vmatprep.subr.bf16.mxu0 %v1803
          %2462 = vmatpush1.bf16.msra.mxu0 %v1802
          %2463 = vmatprep.subr.bf16.mxu0 %v1811
          %2464 = vmatpush1.bf16.msra.mxu0 %v1810
          %2465 = vmatprep.subr.bf16.mxu0 %v1819
          %2466 = vmatpush1.bf16.msra.mxu0 %v1818
          %2467 = vmatprep.subr.bf16.mxu0 %v1827
          %2468 = vmatpush1.bf16.msra.mxu0 %v1826
          %2469 = vmatprep.subr.bf16.mxu0 %v1835
          %2470 = vmatpush1.bf16.msra.mxu0 %v1834
          %2471 = vmatprep.subr.bf16.mxu0 %v1843
          %2472 = vmatpush1.bf16.msra.mxu0 %v1842
          %2473 = vmatprep.subr.bf16.mxu0 %v1851
          %2474 = vmatpush1.bf16.msra.mxu0 %v1850
          %2475 = vmatprep.subr.bf16.mxu0 %v1859
          %2476 = vmatpush1.bf16.msra.mxu0 %v1858
          %2477 = vmatprep.subr.bf16.mxu0 %v1867
          %2478 = vmatpush1.bf16.msra.mxu0 %v1866
          %2479 = vmatprep.subr.bf16.mxu0 %v1875
          %2480 = vmatpush1.bf16.msra.mxu0 %v1874
          %2481 = vmatprep.subr.bf16.mxu0 %v1883
          %2482 = vmatpush1.bf16.msra.mxu0 %v1882
          %2483 = vmatprep.subr.bf16.mxu0 %v1891
          %2484 = vmatpush1.bf16.msra.mxu0 %v1890
          %2485 = vmatprep.subr.bf16.mxu0 %v1899
          %2486 = vmatpush1.bf16.msra.mxu0 %v1898
          %2487 = vmatprep.subr.bf16.mxu0 %v1907
          %2488 = vmatpush1.bf16.msra.mxu0 %v1906
          %2489 = vmatprep.subr.bf16.mxu0 %v1915
          %2490 = vmatpush1.bf16.msra.mxu0 %v1914
          %2491 = vmatprep.mubr.bf16.mxu0 %v593
          %2492 = vmatmul.mubr.bf16.gmra.mrb[0].mxu0 %v592
          %v2493 = vpop.f32.mrb[0].mxu0
          %v2494 = vadd.f32 %v2453, %v2493
          %v2495 = vpop.f32.mrb[0].mxu0
          %v2496 = vadd.f32 %v2455, %v2495
          %v2497 = vpop.f32.mrb[0].mxu0
          %v2498 = vpop.f32.mrb[0].mxu0
          %2499 = vdwg.mxu0
          %v2500 = vmax.f32 %v2248, 0.0
          %v2501 = vmax.f32 %v2250, 0.0
          %v2502 = vmax.f32 %v2330, 0.0
          %v2503 = vmax.f32 %v2332, 0.0
          %v2504 = vmax.f32 %v2412, 0.0
          %v2505 = vmax.f32 %v2414, 0.0
          %v2506 = vmax.f32 %v2494, 0.0
          %v2507 = vmax.f32 %v2496, 0.0
          %v2508 = vpack.c.bf16 %v2500, %v2500
          %v2509 = vpack.c.bf16 %v2501, %v2501
          %v2510 = vpack.c.bf16 %v2502, %v2502
          %v2511 = vpack.c.bf16 %v2503, %v2503
          %v2512 = vpack.c.bf16 %v2504, %v2504
          %v2513 = vpack.c.bf16 %v2505, %v2505
          %v2514 = vpack.c.bf16 %v2506, %v2506
          %v2515 = vpack.c.bf16 %v2507, %v2507
          %v2524 = vcombine.low %v2508, %v2509
          %v2525 = vcombine.low %v2510, %v2511
          %v2526 = vcombine.low %v2512, %v2513
          %v2527 = vcombine.low %v2514, %v2515
          %v2529 = vunpack.c.l.s4 1966171168
          %v2530 = vunpack.c.0.s8 %v2529
          %v2531 = vlaneseq
          %v2532 = vshrl.u32 %v2531, 7
          %v2533 = vsub.s32 %v2530, %v2532
          %v2534 = vrot.slane %v2524, %v2533
          %v2536 = vunpack.c.l.s4 1966171168
          %v2537 = vunpack.c.0.s8 %v2536
          %v2538 = vlaneseq
          %v2539 = vshrl.u32 %v2538, 7
          %v2540 = vsub.s32 %v2537, %v2539
          %v2541 = vrot.slane %v2525, %v2540
          %v2543 = vunpack.c.l.s4 1966171168
          %v2544 = vunpack.c.0.s8 %v2543
          %v2545 = vlaneseq
          %v2546 = vshrl.u32 %v2545, 7
          %v2547 = vsub.s32 %v2544, %v2546
          %v2548 = vrot.slane %v2526, %v2547
          %v2550 = vunpack.c.l.s4 1966171168
          %v2551 = vunpack.c.0.s8 %v2550
          %v2552 = vlaneseq
          %v2553 = vshrl.u32 %v2552, 7
          %v2554 = vsub.s32 %v2551, %v2553
          %v2555 = vrot.slane %v2527, %v2554
          %v2556 = vcombine.low %v2534, %v2541
          %v2557 = vcombine.low %v2548, %v2555
          %v2559 = vunpack.c.l.s4 1966171168
          %v2560 = vunpack.c.0.s8 %v2559
          %v2561 = vlaneseq
          %v2562 = vshrl.u32 %v2561, 7
          %v2563 = vsub.s32 %v2560, %v2562
          %v2564 = vrot.slane %v2556, %v2563
          %v2566 = vunpack.c.l.s4 1966171168
          %v2567 = vunpack.c.0.s8 %v2566
          %v2568 = vlaneseq
          %v2569 = vshrl.u32 %v2568, 7
          %v2570 = vsub.s32 %v2567, %v2569
          %v2571 = vrot.slane %v2557, %v2570
          %v2572 = vcombine.low %v2564, %v2571
          %2574 = vst [vmem:[#allocation2] sm:$0xff] %v2572
        $region80: #{tpu_custom_call.1} parent=47 // pred_fallthru
          _
        %v2575 = vld [vmem:[#allocation2] sm:$0xff]
        %v2576 = vld [vmem:[%s375] sm:$0xff]
        %v2577 = vld [vmem:[%s375 + $0x8] sm:$0xff]
        %v2578 = vld [vmem:[%s375 + $0x10] sm:$0xff]
        %v2579 = vld [vmem:[%s375 + $0x18] sm:$0xff]
        %v2580 = vld [vmem:[%s375 + $0x20] sm:$0xff]
        %v2581 = vld [vmem:[%s375 + $0x28] sm:$0xff]
        %v2582 = vld [vmem:[%s375 + $0x30] sm:$0xff]
        %v2583 = vld [vmem:[%s375 + $0x38] sm:$0xff]
        %v2584 = vld [vmem:[%s375 + $0x40] sm:$0xff]
        %v2585 = vld [vmem:[%s375 + $0x48] sm:$0xff]
        %v2586 = vld [vmem:[%s375 + $0x50] sm:$0xff]
        %v2587 = vld [vmem:[%s375 + $0x58] sm:$0xff]
        %v2588 = vld [vmem:[%s375 + $0x60] sm:$0xff]
        %v2589 = vld [vmem:[%s375 + $0x68] sm:$0xff]
        %v2590 = vld [vmem:[%s375 + $0x70] sm:$0xff]
        %v2591 = vld [vmem:[%s375 + $0x78] sm:$0xff]
        %v2592 = vld [vmem:[%s375 + $0x80] sm:$0xff]
        %v2593 = vld [vmem:[%s375 + $0x88] sm:$0xff]
        %v2594 = vld [vmem:[%s375 + $0x90] sm:$0xff]
        %v2595 = vld [vmem:[%s375 + $0x98] sm:$0xff]
        %v2596 = vld [vmem:[%s375 + $0xa0] sm:$0xff]
        %v2597 = vld [vmem:[%s375 + $0xa8] sm:$0xff]
        %v2598 = vld [vmem:[%s375 + $0xb0] sm:$0xff]
        %v2599 = vld [vmem:[%s375 + $0xb8] sm:$0xff]
        %v2600 = vld [vmem:[%s375 + $0xc0] sm:$0xff]
        %v2601 = vld [vmem:[%s375 + $0xc8] sm:$0xff]
        %v2602 = vld [vmem:[%s375 + $0xd0] sm:$0xff]
        %v2603 = vld [vmem:[%s375 + $0xd8] sm:$0xff]
        %v2604 = vld [vmem:[%s375 + $0xe0] sm:$0xff]
        %v2605 = vld [vmem:[%s375 + $0xe8] sm:$0xff]
        %v2606 = vld [vmem:[%s375 + $0xf0] sm:$0xff]
        %v2607 = vld [vmem:[%s375 + $0xf8] sm:$0xff]
        %v2608 = vld [vmem:[%s375 + $0x100] sm:$0xff]
        %v2609 = vld [vmem:[%s375 + $0x108] sm:$0xff]
        %v2610 = vld [vmem:[%s375 + $0x110] sm:$0xff]
        %v2611 = vld [vmem:[%s375 + $0x118] sm:$0xff]
        %v2612 = vld [vmem:[%s375 + $0x120] sm:$0xff]
        %v2613 = vld [vmem:[%s375 + $0x128] sm:$0xff]
        %v2614 = vld [vmem:[%s375 + $0x130] sm:$0xff]
        %v2615 = vld [vmem:[%s375 + $0x138] sm:$0xff]
        %v2616 = vld [vmem:[%s375 + $0x140] sm:$0xff]
        %v2617 = vld [vmem:[%s375 + $0x148] sm:$0xff]
        %v2618 = vld [vmem:[%s375 + $0x150] sm:$0xff]
        %v2619 = vld [vmem:[%s375 + $0x158] sm:$0xff]
        %v2620 = vld [vmem:[%s375 + $0x160] sm:$0xff]
        %v2621 = vld [vmem:[%s375 + $0x168] sm:$0xff]
        %v2622 = vld [vmem:[%s375 + $0x170] sm:$0xff]
        %v2623 = vld [vmem:[%s375 + $0x178] sm:$0xff]
        %v2624 = vld [vmem:[%s375 + $0x180] sm:$0xff]
        %v2625 = vld [vmem:[%s375 + $0x188] sm:$0xff]
        %v2626 = vld [vmem:[%s375 + $0x190] sm:$0xff]
        %v2627 = vld [vmem:[%s375 + $0x198] sm:$0xff]
        %v2628 = vld [vmem:[%s375 + $0x1a0] sm:$0xff]
        %v2629 = vld [vmem:[%s375 + $0x1a8] sm:$0xff]
        %v2630 = vld [vmem:[%s375 + $0x1b0] sm:$0xff]
        %v2631 = vld [vmem:[%s375 + $0x1b8] sm:$0xff]
        %v2632 = vld [vmem:[%s375 + $0x1c0] sm:$0xff]
        %v2633 = vld [vmem:[%s375 + $0x1c8] sm:$0xff]
        %v2634 = vld [vmem:[%s375 + $0x1d0] sm:$0xff]
        %v2635 = vld [vmem:[%s375 + $0x1d8] sm:$0xff]
        %v2636 = vld [vmem:[%s375 + $0x1e0] sm:$0xff]
        %v2637 = vld [vmem:[%s375 + $0x1e8] sm:$0xff]
        %v2638 = vld [vmem:[%s375 + $0x1f0] sm:$0xff]
        %v2639 = vld [vmem:[%s375 + $0x1f8] sm:$0xff]
        %v2640 = vld [vmem:[%s375 + $0x200] sm:$0xff]
        %v2641 = vld [vmem:[%s375 + $0x208] sm:$0xff]
        %v2642 = vld [vmem:[%s375 + $0x210] sm:$0xff]
        %v2643 = vld [vmem:[%s375 + $0x218] sm:$0xff]
        %v2644 = vld [vmem:[%s375 + $0x220] sm:$0xff]
        %v2645 = vld [vmem:[%s375 + $0x228] sm:$0xff]
        %v2646 = vld [vmem:[%s375 + $0x230] sm:$0xff]
        %v2647 = vld [vmem:[%s375 + $0x238] sm:$0xff]
        %v2648 = vld [vmem:[%s375 + $0x240] sm:$0xff]
        %v2649 = vld [vmem:[%s375 + $0x248] sm:$0xff]
        %v2650 = vld [vmem:[%s375 + $0x250] sm:$0xff]
        %v2651 = vld [vmem:[%s375 + $0x258] sm:$0xff]
        %v2652 = vld [vmem:[%s375 + $0x260] sm:$0xff]
        %v2653 = vld [vmem:[%s375 + $0x268] sm:$0xff]
        %v2654 = vld [vmem:[%s375 + $0x270] sm:$0xff]
        %v2655 = vld [vmem:[%s375 + $0x278] sm:$0xff]
        %v2656 = vld [vmem:[%s375 + $0x280] sm:$0xff]
        %v2657 = vld [vmem:[%s375 + $0x288] sm:$0xff]
        %v2658 = vld [vmem:[%s375 + $0x290] sm:$0xff]
        %v2659 = vld [vmem:[%s375 + $0x298] sm:$0xff]
        %v2660 = vld [vmem:[%s375 + $0x2a0] sm:$0xff]
        %v2661 = vld [vmem:[%s375 + $0x2a8] sm:$0xff]
        %v2662 = vld [vmem:[%s375 + $0x2b0] sm:$0xff]
        %v2663 = vld [vmem:[%s375 + $0x2b8] sm:$0xff]
        %v2664 = vld [vmem:[%s375 + $0x2c0] sm:$0xff]
        %v2665 = vld [vmem:[%s375 + $0x2c8] sm:$0xff]
        %v2666 = vld [vmem:[%s375 + $0x2d0] sm:$0xff]
        %v2667 = vld [vmem:[%s375 + $0x2d8] sm:$0xff]
        %v2668 = vld [vmem:[%s375 + $0x2e0] sm:$0xff]
        %v2669 = vld [vmem:[%s375 + $0x2e8] sm:$0xff]
        %v2670 = vld [vmem:[%s375 + $0x2f0] sm:$0xff]
        %v2671 = vld [vmem:[%s375 + $0x2f8] sm:$0xff]
        %v2672 = vld [vmem:[%s375 + $0x300] sm:$0xff]
        %v2673 = vld [vmem:[%s375 + $0x308] sm:$0xff]
        %v2674 = vld [vmem:[%s375 + $0x310] sm:$0xff]
        %v2675 = vld [vmem:[%s375 + $0x318] sm:$0xff]
        %v2676 = vld [vmem:[%s375 + $0x320] sm:$0xff]
        %v2677 = vld [vmem:[%s375 + $0x328] sm:$0xff]
        %v2678 = vld [vmem:[%s375 + $0x330] sm:$0xff]
        %v2679 = vld [vmem:[%s375 + $0x338] sm:$0xff]
        %v2680 = vld [vmem:[%s375 + $0x340] sm:$0xff]
        %v2681 = vld [vmem:[%s375 + $0x348] sm:$0xff]
        %v2682 = vld [vmem:[%s375 + $0x350] sm:$0xff]
        %v2683 = vld [vmem:[%s375 + $0x358] sm:$0xff]
        %v2684 = vld [vmem:[%s375 + $0x360] sm:$0xff]
        %v2685 = vld [vmem:[%s375 + $0x368] sm:$0xff]
        %v2686 = vld [vmem:[%s375 + $0x370] sm:$0xff]
        %v2687 = vld [vmem:[%s375 + $0x378] sm:$0xff]
        %v2688 = vld [vmem:[%s375 + $0x380] sm:$0xff]
        %v2689 = vld [vmem:[%s375 + $0x388] sm:$0xff]
        %v2690 = vld [vmem:[%s375 + $0x390] sm:$0xff]
        %v2691 = vld [vmem:[%s375 + $0x398] sm:$0xff]
        %v2692 = vld [vmem:[%s375 + $0x3a0] sm:$0xff]
        %v2693 = vld [vmem:[%s375 + $0x3a8] sm:$0xff]
        %v2694 = vld [vmem:[%s375 + $0x3b0] sm:$0xff]
        %v2695 = vld [vmem:[%s375 + $0x3b8] sm:$0xff]
        %v2696 = vld [vmem:[%s375 + $0x3c0] sm:$0xff]
        %v2697 = vld [vmem:[%s375 + $0x3c8] sm:$0xff]
        %v2698 = vld [vmem:[%s375 + $0x3d0] sm:$0xff]
        %v2699 = vld [vmem:[%s375 + $0x3d8] sm:$0xff]
        %v2700 = vld [vmem:[%s375 + $0x3e0] sm:$0xff]
        %v2701 = vld [vmem:[%s375 + $0x3e8] sm:$0xff]
        %v2702 = vld [vmem:[%s375 + $0x3f0] sm:$0xff]
        %v2703 = vld [vmem:[%s375 + $0x3f8] sm:$0xff]
        %v2704 = vld [vmem:[%s375 + $0x400] sm:$0xff]
        %v2705 = vld [vmem:[%s375 + $0x408] sm:$0xff]
        %v2706 = vld [vmem:[%s375 + $0x410] sm:$0xff]
        %v2707 = vld [vmem:[%s375 + $0x418] sm:$0xff]
        %v2708 = vld [vmem:[%s375 + $0x420] sm:$0xff]
        %v2709 = vld [vmem:[%s375 + $0x428] sm:$0xff]
        %v2710 = vld [vmem:[%s375 + $0x430] sm:$0xff]
        %v2711 = vld [vmem:[%s375 + $0x438] sm:$0xff]
        %v2712 = vld [vmem:[%s375 + $0x440] sm:$0xff]
        %v2713 = vld [vmem:[%s375 + $0x448] sm:$0xff]
        %v2714 = vld [vmem:[%s375 + $0x450] sm:$0xff]
        %v2715 = vld [vmem:[%s375 + $0x458] sm:$0xff]
        %v2716 = vld [vmem:[%s375 + $0x460] sm:$0xff]
        %v2717 = vld [vmem:[%s375 + $0x468] sm:$0xff]
        %v2718 = vld [vmem:[%s375 + $0x470] sm:$0xff]
        %v2719 = vld [vmem:[%s375 + $0x478] sm:$0xff]
        %v2720 = vld [vmem:[%s375 + $0x480] sm:$0xff]
        %v2721 = vld [vmem:[%s375 + $0x488] sm:$0xff]
        %v2722 = vld [vmem:[%s375 + $0x490] sm:$0xff]
        %v2723 = vld [vmem:[%s375 + $0x498] sm:$0xff]
        %v2724 = vld [vmem:[%s375 + $0x4a0] sm:$0xff]
        %v2725 = vld [vmem:[%s375 + $0x4a8] sm:$0xff]
        %v2726 = vld [vmem:[%s375 + $0x4b0] sm:$0xff]
        %v2727 = vld [vmem:[%s375 + $0x4b8] sm:$0xff]
        %v2728 = vld [vmem:[%s375 + $0x4c0] sm:$0xff]
        %v2729 = vld [vmem:[%s375 + $0x4c8] sm:$0xff]
        %v2730 = vld [vmem:[%s375 + $0x4d0] sm:$0xff]
        %v2731 = vld [vmem:[%s375 + $0x4d8] sm:$0xff]
        %v2732 = vld [vmem:[%s375 + $0x4e0] sm:$0xff]
        %v2733 = vld [vmem:[%s375 + $0x4e8] sm:$0xff]
        %v2734 = vld [vmem:[%s375 + $0x4f0] sm:$0xff]
        %v2735 = vld [vmem:[%s375 + $0x4f8] sm:$0xff]
        %v2736 = vld [vmem:[%s375 + $0x500] sm:$0xff]
        %v2737 = vld [vmem:[%s375 + $0x508] sm:$0xff]
        %v2738 = vld [vmem:[%s375 + $0x510] sm:$0xff]
        %v2739 = vld [vmem:[%s375 + $0x518] sm:$0xff]
        %v2740 = vld [vmem:[%s375 + $0x520] sm:$0xff]
        %v2741 = vld [vmem:[%s375 + $0x528] sm:$0xff]
        %v2742 = vld [vmem:[%s375 + $0x530] sm:$0xff]
        %v2743 = vld [vmem:[%s375 + $0x538] sm:$0xff]
        %v2744 = vld [vmem:[%s375 + $0x540] sm:$0xff]
        %v2745 = vld [vmem:[%s375 + $0x548] sm:$0xff]
        %v2746 = vld [vmem:[%s375 + $0x550] sm:$0xff]
        %v2747 = vld [vmem:[%s375 + $0x558] sm:$0xff]
        %v2748 = vld [vmem:[%s375 + $0x560] sm:$0xff]
        %v2749 = vld [vmem:[%s375 + $0x568] sm:$0xff]
        %v2750 = vld [vmem:[%s375 + $0x570] sm:$0xff]
        %v2751 = vld [vmem:[%s375 + $0x578] sm:$0xff]
        %v2752 = vld [vmem:[%s375 + $0x580] sm:$0xff]
        %v2753 = vld [vmem:[%s375 + $0x588] sm:$0xff]
        %v2754 = vld [vmem:[%s375 + $0x590] sm:$0xff]
        %v2755 = vld [vmem:[%s375 + $0x598] sm:$0xff]
        %v2756 = vld [vmem:[%s375 + $0x5a0] sm:$0xff]
        %v2757 = vld [vmem:[%s375 + $0x5a8] sm:$0xff]
        %v2758 = vld [vmem:[%s375 + $0x5b0] sm:$0xff]
        %v2759 = vld [vmem:[%s375 + $0x5b8] sm:$0xff]
        %v2760 = vld [vmem:[%s375 + $0x5c0] sm:$0xff]
        %v2761 = vld [vmem:[%s375 + $0x5c8] sm:$0xff]
        %v2762 = vld [vmem:[%s375 + $0x5d0] sm:$0xff]
        %v2763 = vld [vmem:[%s375 + $0x5d8] sm:$0xff]
        %v2764 = vld [vmem:[%s375 + $0x5e0] sm:$0xff]
        %v2765 = vld [vmem:[%s375 + $0x5e8] sm:$0xff]
        %v2766 = vld [vmem:[%s375 + $0x5f0] sm:$0xff]
        %v2767 = vld [vmem:[%s375 + $0x5f8] sm:$0xff]
        %v2768 = vld [vmem:[%s375 + $0x600] sm:$0xff]
        %v2769 = vld [vmem:[%s375 + $0x608] sm:$0xff]
        %v2770 = vld [vmem:[%s375 + $0x610] sm:$0xff]
        %v2771 = vld [vmem:[%s375 + $0x618] sm:$0xff]
        %v2772 = vld [vmem:[%s375 + $0x620] sm:$0xff]
        %v2773 = vld [vmem:[%s375 + $0x628] sm:$0xff]
        %v2774 = vld [vmem:[%s375 + $0x630] sm:$0xff]
        %v2775 = vld [vmem:[%s375 + $0x638] sm:$0xff]
        %v2776 = vld [vmem:[%s375 + $0x640] sm:$0xff]
        %v2777 = vld [vmem:[%s375 + $0x648] sm:$0xff]
        %v2778 = vld [vmem:[%s375 + $0x650] sm:$0xff]
        %v2779 = vld [vmem:[%s375 + $0x658] sm:$0xff]
        %v2780 = vld [vmem:[%s375 + $0x660] sm:$0xff]
        %v2781 = vld [vmem:[%s375 + $0x668] sm:$0xff]
        %v2782 = vld [vmem:[%s375 + $0x670] sm:$0xff]
        %v2783 = vld [vmem:[%s375 + $0x678] sm:$0xff]
        %v2784 = vld [vmem:[%s375 + $0x680] sm:$0xff]
        %v2785 = vld [vmem:[%s375 + $0x688] sm:$0xff]
        %v2786 = vld [vmem:[%s375 + $0x690] sm:$0xff]
        %v2787 = vld [vmem:[%s375 + $0x698] sm:$0xff]
        %v2788 = vld [vmem:[%s375 + $0x6a0] sm:$0xff]
        %v2789 = vld [vmem:[%s375 + $0x6a8] sm:$0xff]
        %v2790 = vld [vmem:[%s375 + $0x6b0] sm:$0xff]
        %v2791 = vld [vmem:[%s375 + $0x6b8] sm:$0xff]
        %v2792 = vld [vmem:[%s375 + $0x6c0] sm:$0xff]
        %v2793 = vld [vmem:[%s375 + $0x6c8] sm:$0xff]
        %v2794 = vld [vmem:[%s375 + $0x6d0] sm:$0xff]
        %v2795 = vld [vmem:[%s375 + $0x6d8] sm:$0xff]
        %v2796 = vld [vmem:[%s375 + $0x6e0] sm:$0xff]
        %v2797 = vld [vmem:[%s375 + $0x6e8] sm:$0xff]
        %v2798 = vld [vmem:[%s375 + $0x6f0] sm:$0xff]
        %v2799 = vld [vmem:[%s375 + $0x6f8] sm:$0xff]
        %v2800 = vld [vmem:[%s375 + $0x700] sm:$0xff]
        %v2801 = vld [vmem:[%s375 + $0x708] sm:$0xff]
        %v2802 = vld [vmem:[%s375 + $0x710] sm:$0xff]
        %v2803 = vld [vmem:[%s375 + $0x718] sm:$0xff]
        %v2804 = vld [vmem:[%s375 + $0x720] sm:$0xff]
        %v2805 = vld [vmem:[%s375 + $0x728] sm:$0xff]
        %v2806 = vld [vmem:[%s375 + $0x730] sm:$0xff]
        %v2807 = vld [vmem:[%s375 + $0x738] sm:$0xff]
        %v2808 = vld [vmem:[%s375 + $0x740] sm:$0xff]
        %v2809 = vld [vmem:[%s375 + $0x748] sm:$0xff]
        %v2810 = vld [vmem:[%s375 + $0x750] sm:$0xff]
        %v2811 = vld [vmem:[%s375 + $0x758] sm:$0xff]
        %v2812 = vld [vmem:[%s375 + $0x760] sm:$0xff]
        %v2813 = vld [vmem:[%s375 + $0x768] sm:$0xff]
        %v2814 = vld [vmem:[%s375 + $0x770] sm:$0xff]
        %v2815 = vld [vmem:[%s375 + $0x778] sm:$0xff]
        %v2816 = vld [vmem:[%s375 + $0x780] sm:$0xff]
        %v2817 = vld [vmem:[%s375 + $0x788] sm:$0xff]
        %v2818 = vld [vmem:[%s375 + $0x790] sm:$0xff]
        %v2819 = vld [vmem:[%s375 + $0x798] sm:$0xff]
        %v2820 = vld [vmem:[%s375 + $0x7a0] sm:$0xff]
        %v2821 = vld [vmem:[%s375 + $0x7a8] sm:$0xff]
        %v2822 = vld [vmem:[%s375 + $0x7b0] sm:$0xff]
        %v2823 = vld [vmem:[%s375 + $0x7b8] sm:$0xff]
        %v2824 = vld [vmem:[%s375 + $0x7c0] sm:$0xff]
        %v2825 = vld [vmem:[%s375 + $0x7c8] sm:$0xff]
        %v2826 = vld [vmem:[%s375 + $0x7d0] sm:$0xff]
        %v2827 = vld [vmem:[%s375 + $0x7d8] sm:$0xff]
        %v2828 = vld [vmem:[%s375 + $0x7e0] sm:$0xff]
        %v2829 = vld [vmem:[%s375 + $0x7e8] sm:$0xff]
        %v2830 = vld [vmem:[%s375 + $0x7f0] sm:$0xff]
        %v2831 = vld [vmem:[%s375 + $0x7f8] sm:$0xff]
        %v2832 = vld [vmem:[%s384] sm:$0xf]
        %v2834 = vlaneseq
        %v2835 = vshrl.u32 %v2834, 7
        %v2836 = vsub.s32 0, %v2835
        %v2837 = vrot.slane %v2832, %v2836
        %v2838 = vlaneseq
        %v2839 = vshrl.u32 %v2838, 7
        %v2840 = vsub.s32 1, %v2839
        %v2841 = vrot.slane %v2832, %v2840
        %v2842 = vlaneseq
        %v2843 = vshrl.u32 %v2842, 7
        %v2844 = vsub.s32 2, %v2843
        %v2845 = vrot.slane %v2832, %v2844
        %v2846 = vlaneseq
        %v2847 = vshrl.u32 %v2846, 7
        %v2848 = vsub.s32 3, %v2847
        %v2849 = vrot.slane %v2832, %v2848
        %v2855 = vcombine.high %v2575, %v2575
        %v2857 = vunpack.c.l.s4 1966171168
        %v2858 = vunpack.c.0.s8 %v2857
        %v2859 = vlaneseq
        %v2860 = vshrl.u32 %v2859, 7
        %v2861 = vsub.s32 %v2858, %v2860
        %v2862 = vrot.slane %v2575, %v2861
        %v2864 = vunpack.c.l.s4 1966171168
        %v2865 = vunpack.c.0.s8 %v2864
        %v2866 = vlaneseq
        %v2867 = vshrl.u32 %v2866, 7
        %v2868 = vsub.s32 %v2865, %v2867
        %v2869 = vrot.slane %v2855, %v2868
        %v2870 = vcombine.high %v2862, %v2862
        %v2871 = vcombine.high %v2869, %v2869
        %v2873 = vunpack.c.l.s4 1966171168
        %v2874 = vunpack.c.0.s8 %v2873
        %v2875 = vlaneseq
        %v2876 = vshrl.u32 %v2875, 7
        %v2877 = vsub.s32 %v2874, %v2876
        %v2878 = vrot.slane %v2862, %v2877
        %v2880 = vunpack.c.l.s4 1966171168
        %v2881 = vunpack.c.0.s8 %v2880
        %v2882 = vlaneseq
        %v2883 = vshrl.u32 %v2882, 7
        %v2884 = vsub.s32 %v2881, %v2883
        %v2885 = vrot.slane %v2869, %v2884
        %v2887 = vunpack.c.l.s4 1966171168
        %v2888 = vunpack.c.0.s8 %v2887
        %v2889 = vlaneseq
        %v2890 = vshrl.u32 %v2889, 7
        %v2891 = vsub.s32 %v2888, %v2890
        %v2892 = vrot.slane %v2870, %v2891
        %v2894 = vunpack.c.l.s4 1966171168
        %v2895 = vunpack.c.0.s8 %v2894
        %v2896 = vlaneseq
        %v2897 = vshrl.u32 %v2896, 7
        %v2898 = vsub.s32 %v2895, %v2897
        %v2899 = vrot.slane %v2871, %v2898
        %v2900 = vcombine.high %v2878, %v2878
        %v2901 = vcombine.high %v2885, %v2885
        %v2902 = vcombine.high %v2892, %v2892
        %v2903 = vcombine.high %v2899, %v2899
        %v3168 = vunpack.c.l.b16 %v2576
        %v3169 = vunpack.c.h.b16 %v2576
        %v3170 = vunpack.c.l.b16 %v2577
        %v3171 = vunpack.c.h.b16 %v2577
        %v3172 = vunpack.c.l.b16 %v2578
        %v3173 = vunpack.c.h.b16 %v2578
        %v3174 = vunpack.c.l.b16 %v2579
        %v3175 = vunpack.c.h.b16 %v2579
        %v3176 = vunpack.c.l.b16 %v2580
        %v3177 = vunpack.c.h.b16 %v2580
        %v3178 = vunpack.c.l.b16 %v2581
        %v3179 = vunpack.c.h.b16 %v2581
        %v3180 = vunpack.c.l.b16 %v2582
        %v3181 = vunpack.c.h.b16 %v2582
        %v3182 = vunpack.c.l.b16 %v2583
        %v3183 = vunpack.c.h.b16 %v2583
        %v3184 = vunpack.c.l.b16 %v2584
        %v3185 = vunpack.c.h.b16 %v2584
        %v3186 = vunpack.c.l.b16 %v2585
        %v3187 = vunpack.c.h.b16 %v2585
        %v3188 = vunpack.c.l.b16 %v2586
        %v3189 = vunpack.c.h.b16 %v2586
        %v3190 = vunpack.c.l.b16 %v2587
        %v3191 = vunpack.c.h.b16 %v2587
        %v3192 = vunpack.c.l.b16 %v2588
        %v3193 = vunpack.c.h.b16 %v2588
        %v3194 = vunpack.c.l.b16 %v2589
        %v3195 = vunpack.c.h.b16 %v2589
        %v3196 = vunpack.c.l.b16 %v2590
        %v3197 = vunpack.c.h.b16 %v2590
        %v3198 = vunpack.c.l.b16 %v2591
        %v3199 = vunpack.c.h.b16 %v2591
        %v3200 = vunpack.c.l.b16 %v2592
        %v3201 = vunpack.c.h.b16 %v2592
        %v3202 = vunpack.c.l.b16 %v2593
        %v3203 = vunpack.c.h.b16 %v2593
        %v3204 = vunpack.c.l.b16 %v2594
        %v3205 = vunpack.c.h.b16 %v2594
        %v3206 = vunpack.c.l.b16 %v2595
        %v3207 = vunpack.c.h.b16 %v2595
        %v3208 = vunpack.c.l.b16 %v2596
        %v3209 = vunpack.c.h.b16 %v2596
        %v3210 = vunpack.c.l.b16 %v2597
        %v3211 = vunpack.c.h.b16 %v2597
        %v3212 = vunpack.c.l.b16 %v2598
        %v3213 = vunpack.c.h.b16 %v2598
        %v3214 = vunpack.c.l.b16 %v2599
        %v3215 = vunpack.c.h.b16 %v2599
        %v3216 = vunpack.c.l.b16 %v2600
        %v3217 = vunpack.c.h.b16 %v2600
        %v3218 = vunpack.c.l.b16 %v2601
        %v3219 = vunpack.c.h.b16 %v2601
        %v3220 = vunpack.c.l.b16 %v2602
        %v3221 = vunpack.c.h.b16 %v2602
        %v3222 = vunpack.c.l.b16 %v2603
        %v3223 = vunpack.c.h.b16 %v2603
        %v3224 = vunpack.c.l.b16 %v2604
        %v3225 = vunpack.c.h.b16 %v2604
        %v3226 = vunpack.c.l.b16 %v2605
        %v3227 = vunpack.c.h.b16 %v2605
        %v3228 = vunpack.c.l.b16 %v2606
        %v3229 = vunpack.c.h.b16 %v2606
        %v3230 = vunpack.c.l.b16 %v2607
        %v3231 = vunpack.c.h.b16 %v2607
        %v3232 = vunpack.c.l.b16 %v2608
        %v3233 = vunpack.c.h.b16 %v2608
        %v3234 = vunpack.c.l.b16 %v2609
        %v3235 = vunpack.c.h.b16 %v2609
        %v3236 = vunpack.c.l.b16 %v2610
        %v3237 = vunpack.c.h.b16 %v2610
        %v3238 = vunpack.c.l.b16 %v2611
        %v3239 = vunpack.c.h.b16 %v2611
        %v3240 = vunpack.c.l.b16 %v2612
        %v3241 = vunpack.c.h.b16 %v2612
        %v3242 = vunpack.c.l.b16 %v2613
        %v3243 = vunpack.c.h.b16 %v2613
        %v3244 = vunpack.c.l.b16 %v2614
        %v3245 = vunpack.c.h.b16 %v2614
        %v3246 = vunpack.c.l.b16 %v2615
        %v3247 = vunpack.c.h.b16 %v2615
        %v3248 = vunpack.c.l.b16 %v2616
        %v3249 = vunpack.c.h.b16 %v2616
        %v3250 = vunpack.c.l.b16 %v2617
        %v3251 = vunpack.c.h.b16 %v2617
        %v3252 = vunpack.c.l.b16 %v2618
        %v3253 = vunpack.c.h.b16 %v2618
        %v3254 = vunpack.c.l.b16 %v2619
        %v3255 = vunpack.c.h.b16 %v2619
        %v3256 = vunpack.c.l.b16 %v2620
        %v3257 = vunpack.c.h.b16 %v2620
        %v3258 = vunpack.c.l.b16 %v2621
        %v3259 = vunpack.c.h.b16 %v2621
        %v3260 = vunpack.c.l.b16 %v2622
        %v3261 = vunpack.c.h.b16 %v2622
        %v3262 = vunpack.c.l.b16 %v2623
        %v3263 = vunpack.c.h.b16 %v2623
        %v3264 = vunpack.c.l.b16 %v2624
        %v3265 = vunpack.c.h.b16 %v2624
        %v3266 = vunpack.c.l.b16 %v2625
        %v3267 = vunpack.c.h.b16 %v2625
        %v3268 = vunpack.c.l.b16 %v2626
        %v3269 = vunpack.c.h.b16 %v2626
        %v3270 = vunpack.c.l.b16 %v2627
        %v3271 = vunpack.c.h.b16 %v2627
        %v3272 = vunpack.c.l.b16 %v2628
        %v3273 = vunpack.c.h.b16 %v2628
        %v3274 = vunpack.c.l.b16 %v2629
        %v3275 = vunpack.c.h.b16 %v2629
        %v3276 = vunpack.c.l.b16 %v2630
        %v3277 = vunpack.c.h.b16 %v2630
        %v3278 = vunpack.c.l.b16 %v2631
        %v3279 = vunpack.c.h.b16 %v2631
        %v3280 = vunpack.c.l.b16 %v2632
        %v3281 = vunpack.c.h.b16 %v2632
        %v3282 = vunpack.c.l.b16 %v2633
        %v3283 = vunpack.c.h.b16 %v2633
        %v3284 = vunpack.c.l.b16 %v2634
        %v3285 = vunpack.c.h.b16 %v2634
        %v3286 = vunpack.c.l.b16 %v2635
        %v3287 = vunpack.c.h.b16 %v2635
        %v3288 = vunpack.c.l.b16 %v2636
        %v3289 = vunpack.c.h.b16 %v2636
        %v3290 = vunpack.c.l.b16 %v2637
        %v3291 = vunpack.c.h.b16 %v2637
        %v3292 = vunpack.c.l.b16 %v2638
        %v3293 = vunpack.c.h.b16 %v2638
        %v3294 = vunpack.c.l.b16 %v2639
        %v3295 = vunpack.c.h.b16 %v2639
        %v3296 = vunpack.c.l.b16 %v2640
        %v3297 = vunpack.c.h.b16 %v2640
        %v3298 = vunpack.c.l.b16 %v2641
        %v3299 = vunpack.c.h.b16 %v2641
        %v3300 = vunpack.c.l.b16 %v2642
        %v3301 = vunpack.c.h.b16 %v2642
        %v3302 = vunpack.c.l.b16 %v2643
        %v3303 = vunpack.c.h.b16 %v2643
        %v3304 = vunpack.c.l.b16 %v2644
        %v3305 = vunpack.c.h.b16 %v2644
        %v3306 = vunpack.c.l.b16 %v2645
        %v3307 = vunpack.c.h.b16 %v2645
        %v3308 = vunpack.c.l.b16 %v2646
        %v3309 = vunpack.c.h.b16 %v2646
        %v3310 = vunpack.c.l.b16 %v2647
        %v3311 = vunpack.c.h.b16 %v2647
        %v3312 = vunpack.c.l.b16 %v2648
        %v3313 = vunpack.c.h.b16 %v2648
        %v3314 = vunpack.c.l.b16 %v2649
        %v3315 = vunpack.c.h.b16 %v2649
        %v3316 = vunpack.c.l.b16 %v2650
        %v3317 = vunpack.c.h.b16 %v2650
        %v3318 = vunpack.c.l.b16 %v2651
        %v3319 = vunpack.c.h.b16 %v2651
        %v3320 = vunpack.c.l.b16 %v2652
        %v3321 = vunpack.c.h.b16 %v2652
        %v3322 = vunpack.c.l.b16 %v2653
        %v3323 = vunpack.c.h.b16 %v2653
        %v3324 = vunpack.c.l.b16 %v2654
        %v3325 = vunpack.c.h.b16 %v2654
        %v3326 = vunpack.c.l.b16 %v2655
        %v3327 = vunpack.c.h.b16 %v2655
        %v3328 = vunpack.c.l.b16 %v2656
        %v3329 = vunpack.c.h.b16 %v2656
        %v3330 = vunpack.c.l.b16 %v2657
        %v3331 = vunpack.c.h.b16 %v2657
        %v3332 = vunpack.c.l.b16 %v2658
        %v3333 = vunpack.c.h.b16 %v2658
        %v3334 = vunpack.c.l.b16 %v2659
        %v3335 = vunpack.c.h.b16 %v2659
        %v3336 = vunpack.c.l.b16 %v2660
        %v3337 = vunpack.c.h.b16 %v2660
        %v3338 = vunpack.c.l.b16 %v2661
        %v3339 = vunpack.c.h.b16 %v2661
        %v3340 = vunpack.c.l.b16 %v2662
        %v3341 = vunpack.c.h.b16 %v2662
        %v3342 = vunpack.c.l.b16 %v2663
        %v3343 = vunpack.c.h.b16 %v2663
        %v3344 = vunpack.c.l.b16 %v2664
        %v3345 = vunpack.c.h.b16 %v2664
        %v3346 = vunpack.c.l.b16 %v2665
        %v3347 = vunpack.c.h.b16 %v2665
        %v3348 = vunpack.c.l.b16 %v2666
        %v3349 = vunpack.c.h.b16 %v2666
        %v3350 = vunpack.c.l.b16 %v2667
        %v3351 = vunpack.c.h.b16 %v2667
        %v3352 = vunpack.c.l.b16 %v2668
        %v3353 = vunpack.c.h.b16 %v2668
        %v3354 = vunpack.c.l.b16 %v2669
        %v3355 = vunpack.c.h.b16 %v2669
        %v3356 = vunpack.c.l.b16 %v2670
        %v3357 = vunpack.c.h.b16 %v2670
        %v3358 = vunpack.c.l.b16 %v2671
        %v3359 = vunpack.c.h.b16 %v2671
        %v3360 = vunpack.c.l.b16 %v2672
        %v3361 = vunpack.c.h.b16 %v2672
        %v3362 = vunpack.c.l.b16 %v2673
        %v3363 = vunpack.c.h.b16 %v2673
        %v3364 = vunpack.c.l.b16 %v2674
        %v3365 = vunpack.c.h.b16 %v2674
        %v3366 = vunpack.c.l.b16 %v2675
        %v3367 = vunpack.c.h.b16 %v2675
        %v3368 = vunpack.c.l.b16 %v2676
        %v3369 = vunpack.c.h.b16 %v2676
        %v3370 = vunpack.c.l.b16 %v2677
        %v3371 = vunpack.c.h.b16 %v2677
        %v3372 = vunpack.c.l.b16 %v2678
        %v3373 = vunpack.c.h.b16 %v2678
        %v3374 = vunpack.c.l.b16 %v2679
        %v3375 = vunpack.c.h.b16 %v2679
        %v3376 = vunpack.c.l.b16 %v2680
        %v3377 = vunpack.c.h.b16 %v2680
        %v3378 = vunpack.c.l.b16 %v2681
        %v3379 = vunpack.c.h.b16 %v2681
        %v3380 = vunpack.c.l.b16 %v2682
        %v3381 = vunpack.c.h.b16 %v2682
        %v3382 = vunpack.c.l.b16 %v2683
        %v3383 = vunpack.c.h.b16 %v2683
        %v3384 = vunpack.c.l.b16 %v2684
        %v3385 = vunpack.c.h.b16 %v2684
        %v3386 = vunpack.c.l.b16 %v2685
        %v3387 = vunpack.c.h.b16 %v2685
        %v3388 = vunpack.c.l.b16 %v2686
        %v3389 = vunpack.c.h.b16 %v2686
        %v3390 = vunpack.c.l.b16 %v2687
        %v3391 = vunpack.c.h.b16 %v2687
        %v3392 = vunpack.c.l.b16 %v2688
        %v3393 = vunpack.c.h.b16 %v2688
        %v3394 = vunpack.c.l.b16 %v2689
        %v3395 = vunpack.c.h.b16 %v2689
        %v3396 = vunpack.c.l.b16 %v2690
        %v3397 = vunpack.c.h.b16 %v2690
        %v3398 = vunpack.c.l.b16 %v2691
        %v3399 = vunpack.c.h.b16 %v2691
        %v3400 = vunpack.c.l.b16 %v2692
        %v3401 = vunpack.c.h.b16 %v2692
        %v3402 = vunpack.c.l.b16 %v2693
        %v3403 = vunpack.c.h.b16 %v2693
        %v3404 = vunpack.c.l.b16 %v2694
        %v3405 = vunpack.c.h.b16 %v2694
        %v3406 = vunpack.c.l.b16 %v2695
        %v3407 = vunpack.c.h.b16 %v2695
        %v3408 = vunpack.c.l.b16 %v2696
        %v3409 = vunpack.c.h.b16 %v2696
        %v3410 = vunpack.c.l.b16 %v2697
        %v3411 = vunpack.c.h.b16 %v2697
        %v3412 = vunpack.c.l.b16 %v2698
        %v3413 = vunpack.c.h.b16 %v2698
        %v3414 = vunpack.c.l.b16 %v2699
        %v3415 = vunpack.c.h.b16 %v2699
        %v3416 = vunpack.c.l.b16 %v2700
        %v3417 = vunpack.c.h.b16 %v2700
        %v3418 = vunpack.c.l.b16 %v2701
        %v3419 = vunpack.c.h.b16 %v2701
        %v3420 = vunpack.c.l.b16 %v2702
        %v3421 = vunpack.c.h.b16 %v2702
        %v3422 = vunpack.c.l.b16 %v2703
        %v3423 = vunpack.c.h.b16 %v2703
        %v3424 = vunpack.c.l.b16 %v2704
        %v3425 = vunpack.c.h.b16 %v2704
        %v3426 = vunpack.c.l.b16 %v2705
        %v3427 = vunpack.c.h.b16 %v2705
        %v3428 = vunpack.c.l.b16 %v2706
        %v3429 = vunpack.c.h.b16 %v2706
        %v3430 = vunpack.c.l.b16 %v2707
        %v3431 = vunpack.c.h.b16 %v2707
        %v3432 = vunpack.c.l.b16 %v2708
        %v3433 = vunpack.c.h.b16 %v2708
        %v3434 = vunpack.c.l.b16 %v2709
        %v3435 = vunpack.c.h.b16 %v2709
        %v3436 = vunpack.c.l.b16 %v2710
        %v3437 = vunpack.c.h.b16 %v2710
        %v3438 = vunpack.c.l.b16 %v2711
        %v3439 = vunpack.c.h.b16 %v2711
        %v3440 = vunpack.c.l.b16 %v2712
        %v3441 = vunpack.c.h.b16 %v2712
        %v3442 = vunpack.c.l.b16 %v2713
        %v3443 = vunpack.c.h.b16 %v2713
        %v3444 = vunpack.c.l.b16 %v2714
        %v3445 = vunpack.c.h.b16 %v2714
        %v3446 = vunpack.c.l.b16 %v2715
        %v3447 = vunpack.c.h.b16 %v2715
        %v3448 = vunpack.c.l.b16 %v2716
        %v3449 = vunpack.c.h.b16 %v2716
        %v3450 = vunpack.c.l.b16 %v2717
        %v3451 = vunpack.c.h.b16 %v2717
        %v3452 = vunpack.c.l.b16 %v2718
        %v3453 = vunpack.c.h.b16 %v2718
        %v3454 = vunpack.c.l.b16 %v2719
        %v3455 = vunpack.c.h.b16 %v2719
        %v3456 = vunpack.c.l.b16 %v2720
        %v3457 = vunpack.c.h.b16 %v2720
        %v3458 = vunpack.c.l.b16 %v2721
        %v3459 = vunpack.c.h.b16 %v2721
        %v3460 = vunpack.c.l.b16 %v2722
        %v3461 = vunpack.c.h.b16 %v2722
        %v3462 = vunpack.c.l.b16 %v2723
        %v3463 = vunpack.c.h.b16 %v2723
        %v3464 = vunpack.c.l.b16 %v2724
        %v3465 = vunpack.c.h.b16 %v2724
        %v3466 = vunpack.c.l.b16 %v2725
        %v3467 = vunpack.c.h.b16 %v2725
        %v3468 = vunpack.c.l.b16 %v2726
        %v3469 = vunpack.c.h.b16 %v2726
        %v3470 = vunpack.c.l.b16 %v2727
        %v3471 = vunpack.c.h.b16 %v2727
        %v3472 = vunpack.c.l.b16 %v2728
        %v3473 = vunpack.c.h.b16 %v2728
        %v3474 = vunpack.c.l.b16 %v2729
        %v3475 = vunpack.c.h.b16 %v2729
        %v3476 = vunpack.c.l.b16 %v2730
        %v3477 = vunpack.c.h.b16 %v2730
        %v3478 = vunpack.c.l.b16 %v2731
        %v3479 = vunpack.c.h.b16 %v2731
        %v3480 = vunpack.c.l.b16 %v2732
        %v3481 = vunpack.c.h.b16 %v2732
        %v3482 = vunpack.c.l.b16 %v2733
        %v3483 = vunpack.c.h.b16 %v2733
        %v3484 = vunpack.c.l.b16 %v2734
        %v3485 = vunpack.c.h.b16 %v2734
        %v3486 = vunpack.c.l.b16 %v2735
        %v3487 = vunpack.c.h.b16 %v2735
        %v3488 = vunpack.c.l.b16 %v2736
        %v3489 = vunpack.c.h.b16 %v2736
        %v3490 = vunpack.c.l.b16 %v2737
        %v3491 = vunpack.c.h.b16 %v2737
        %v3492 = vunpack.c.l.b16 %v2738
        %v3493 = vunpack.c.h.b16 %v2738
        %v3494 = vunpack.c.l.b16 %v2739
        %v3495 = vunpack.c.h.b16 %v2739
        %v3496 = vunpack.c.l.b16 %v2740
        %v3497 = vunpack.c.h.b16 %v2740
        %v3498 = vunpack.c.l.b16 %v2741
        %v3499 = vunpack.c.h.b16 %v2741
        %v3500 = vunpack.c.l.b16 %v2742
        %v3501 = vunpack.c.h.b16 %v2742
        %v3502 = vunpack.c.l.b16 %v2743
        %v3503 = vunpack.c.h.b16 %v2743
        %v3504 = vunpack.c.l.b16 %v2744
        %v3505 = vunpack.c.h.b16 %v2744
        %v3506 = vunpack.c.l.b16 %v2745
        %v3507 = vunpack.c.h.b16 %v2745
        %v3508 = vunpack.c.l.b16 %v2746
        %v3509 = vunpack.c.h.b16 %v2746
        %v3510 = vunpack.c.l.b16 %v2747
        %v3511 = vunpack.c.h.b16 %v2747
        %v3512 = vunpack.c.l.b16 %v2748
        %v3513 = vunpack.c.h.b16 %v2748
        %v3514 = vunpack.c.l.b16 %v2749
        %v3515 = vunpack.c.h.b16 %v2749
        %v3516 = vunpack.c.l.b16 %v2750
        %v3517 = vunpack.c.h.b16 %v2750
        %v3518 = vunpack.c.l.b16 %v2751
        %v3519 = vunpack.c.h.b16 %v2751
        %v3520 = vunpack.c.l.b16 %v2752
        %v3521 = vunpack.c.h.b16 %v2752
        %v3522 = vunpack.c.l.b16 %v2753
        %v3523 = vunpack.c.h.b16 %v2753
        %v3524 = vunpack.c.l.b16 %v2754
        %v3525 = vunpack.c.h.b16 %v2754
        %v3526 = vunpack.c.l.b16 %v2755
        %v3527 = vunpack.c.h.b16 %v2755
        %v3528 = vunpack.c.l.b16 %v2756
        %v3529 = vunpack.c.h.b16 %v2756
        %v3530 = vunpack.c.l.b16 %v2757
        %v3531 = vunpack.c.h.b16 %v2757
        %v3532 = vunpack.c.l.b16 %v2758
        %v3533 = vunpack.c.h.b16 %v2758
        %v3534 = vunpack.c.l.b16 %v2759
        %v3535 = vunpack.c.h.b16 %v2759
        %v3536 = vunpack.c.l.b16 %v2760
        %v3537 = vunpack.c.h.b16 %v2760
        %v3538 = vunpack.c.l.b16 %v2761
        %v3539 = vunpack.c.h.b16 %v2761
        %v3540 = vunpack.c.l.b16 %v2762
        %v3541 = vunpack.c.h.b16 %v2762
        %v3542 = vunpack.c.l.b16 %v2763
        %v3543 = vunpack.c.h.b16 %v2763
        %v3544 = vunpack.c.l.b16 %v2764
        %v3545 = vunpack.c.h.b16 %v2764
        %v3546 = vunpack.c.l.b16 %v2765
        %v3547 = vunpack.c.h.b16 %v2765
        %v3548 = vunpack.c.l.b16 %v2766
        %v3549 = vunpack.c.h.b16 %v2766
        %v3550 = vunpack.c.l.b16 %v2767
        %v3551 = vunpack.c.h.b16 %v2767
        %v3552 = vunpack.c.l.b16 %v2768
        %v3553 = vunpack.c.h.b16 %v2768
        %v3554 = vunpack.c.l.b16 %v2769
        %v3555 = vunpack.c.h.b16 %v2769
        %v3556 = vunpack.c.l.b16 %v2770
        %v3557 = vunpack.c.h.b16 %v2770
        %v3558 = vunpack.c.l.b16 %v2771
        %v3559 = vunpack.c.h.b16 %v2771
        %v3560 = vunpack.c.l.b16 %v2772
        %v3561 = vunpack.c.h.b16 %v2772
        %v3562 = vunpack.c.l.b16 %v2773
        %v3563 = vunpack.c.h.b16 %v2773
        %v3564 = vunpack.c.l.b16 %v2774
        %v3565 = vunpack.c.h.b16 %v2774
        %v3566 = vunpack.c.l.b16 %v2775
        %v3567 = vunpack.c.h.b16 %v2775
        %v3568 = vunpack.c.l.b16 %v2776
        %v3569 = vunpack.c.h.b16 %v2776
        %v3570 = vunpack.c.l.b16 %v2777
        %v3571 = vunpack.c.h.b16 %v2777
        %v3572 = vunpack.c.l.b16 %v2778
        %v3573 = vunpack.c.h.b16 %v2778
        %v3574 = vunpack.c.l.b16 %v2779
        %v3575 = vunpack.c.h.b16 %v2779
        %v3576 = vunpack.c.l.b16 %v2780
        %v3577 = vunpack.c.h.b16 %v2780
        %v3578 = vunpack.c.l.b16 %v2781
        %v3579 = vunpack.c.h.b16 %v2781
        %v3580 = vunpack.c.l.b16 %v2782
        %v3581 = vunpack.c.h.b16 %v2782
        %v3582 = vunpack.c.l.b16 %v2783
        %v3583 = vunpack.c.h.b16 %v2783
        %v3584 = vunpack.c.l.b16 %v2784
        %v3585 = vunpack.c.h.b16 %v2784
        %v3586 = vunpack.c.l.b16 %v2785
        %v3587 = vunpack.c.h.b16 %v2785
        %v3588 = vunpack.c.l.b16 %v2786
        %v3589 = vunpack.c.h.b16 %v2786
        %v3590 = vunpack.c.l.b16 %v2787
        %v3591 = vunpack.c.h.b16 %v2787
        %v3592 = vunpack.c.l.b16 %v2788
        %v3593 = vunpack.c.h.b16 %v2788
        %v3594 = vunpack.c.l.b16 %v2789
        %v3595 = vunpack.c.h.b16 %v2789
        %v3596 = vunpack.c.l.b16 %v2790
        %v3597 = vunpack.c.h.b16 %v2790
        %v3598 = vunpack.c.l.b16 %v2791
        %v3599 = vunpack.c.h.b16 %v2791
        %v3600 = vunpack.c.l.b16 %v2792
        %v3601 = vunpack.c.h.b16 %v2792
        %v3602 = vunpack.c.l.b16 %v2793
        %v3603 = vunpack.c.h.b16 %v2793
        %v3604 = vunpack.c.l.b16 %v2794
        %v3605 = vunpack.c.h.b16 %v2794
        %v3606 = vunpack.c.l.b16 %v2795
        %v3607 = vunpack.c.h.b16 %v2795
        %v3608 = vunpack.c.l.b16 %v2796
        %v3609 = vunpack.c.h.b16 %v2796
        %v3610 = vunpack.c.l.b16 %v2797
        %v3611 = vunpack.c.h.b16 %v2797
        %v3612 = vunpack.c.l.b16 %v2798
        %v3613 = vunpack.c.h.b16 %v2798
        %v3614 = vunpack.c.l.b16 %v2799
        %v3615 = vunpack.c.h.b16 %v2799
        %v3616 = vunpack.c.l.b16 %v2800
        %v3617 = vunpack.c.h.b16 %v2800
        %v3618 = vunpack.c.l.b16 %v2801
        %v3619 = vunpack.c.h.b16 %v2801
        %v3620 = vunpack.c.l.b16 %v2802
        %v3621 = vunpack.c.h.b16 %v2802
        %v3622 = vunpack.c.l.b16 %v2803
        %v3623 = vunpack.c.h.b16 %v2803
        %v3624 = vunpack.c.l.b16 %v2804
        %v3625 = vunpack.c.h.b16 %v2804
        %v3626 = vunpack.c.l.b16 %v2805
        %v3627 = vunpack.c.h.b16 %v2805
        %v3628 = vunpack.c.l.b16 %v2806
        %v3629 = vunpack.c.h.b16 %v2806
        %v3630 = vunpack.c.l.b16 %v2807
        %v3631 = vunpack.c.h.b16 %v2807
        %v3632 = vunpack.c.l.b16 %v2808
        %v3633 = vunpack.c.h.b16 %v2808
        %v3634 = vunpack.c.l.b16 %v2809
        %v3635 = vunpack.c.h.b16 %v2809
        %v3636 = vunpack.c.l.b16 %v2810
        %v3637 = vunpack.c.h.b16 %v2810
        %v3638 = vunpack.c.l.b16 %v2811
        %v3639 = vunpack.c.h.b16 %v2811
        %v3640 = vunpack.c.l.b16 %v2812
        %v3641 = vunpack.c.h.b16 %v2812
        %v3642 = vunpack.c.l.b16 %v2813
        %v3643 = vunpack.c.h.b16 %v2813
        %v3644 = vunpack.c.l.b16 %v2814
        %v3645 = vunpack.c.h.b16 %v2814
        %v3646 = vunpack.c.l.b16 %v2815
        %v3647 = vunpack.c.h.b16 %v2815
        %v3648 = vunpack.c.l.b16 %v2816
        %v3649 = vunpack.c.h.b16 %v2816
        %v3650 = vunpack.c.l.b16 %v2817
        %v3651 = vunpack.c.h.b16 %v2817
        %v3652 = vunpack.c.l.b16 %v2818
        %v3653 = vunpack.c.h.b16 %v2818
        %v3654 = vunpack.c.l.b16 %v2819
        %v3655 = vunpack.c.h.b16 %v2819
        %v3656 = vunpack.c.l.b16 %v2820
        %v3657 = vunpack.c.h.b16 %v2820
        %v3658 = vunpack.c.l.b16 %v2821
        %v3659 = vunpack.c.h.b16 %v2821
        %v3660 = vunpack.c.l.b16 %v2822
        %v3661 = vunpack.c.h.b16 %v2822
        %v3662 = vunpack.c.l.b16 %v2823
        %v3663 = vunpack.c.h.b16 %v2823
        %v3664 = vunpack.c.l.b16 %v2824
        %v3665 = vunpack.c.h.b16 %v2824
        %v3666 = vunpack.c.l.b16 %v2825
        %v3667 = vunpack.c.h.b16 %v2825
        %v3668 = vunpack.c.l.b16 %v2826
        %v3669 = vunpack.c.h.b16 %v2826
        %v3670 = vunpack.c.l.b16 %v2827
        %v3671 = vunpack.c.h.b16 %v2827
        %v3672 = vunpack.c.l.b16 %v2828
        %v3673 = vunpack.c.h.b16 %v2828
        %v3674 = vunpack.c.l.b16 %v2829
        %v3675 = vunpack.c.h.b16 %v2829
        %v3676 = vunpack.c.l.b16 %v2830
        %v3677 = vunpack.c.h.b16 %v2830
        %v3678 = vunpack.c.l.b16 %v2831
        %v3679 = vunpack.c.h.b16 %v2831
        %v3680 = vpack.c.b16 %v3172, %v3168
        %v3681 = vpack.c.b16 %v3173, %v3169
        %v3682 = vpack.c.b16 %v3174, %v3170
        %v3683 = vpack.c.b16 %v3175, %v3171
        %v3684 = vpack.c.b16 %v3180, %v3176
        %v3685 = vpack.c.b16 %v3181, %v3177
        %v3686 = vpack.c.b16 %v3182, %v3178
        %v3687 = vpack.c.b16 %v3183, %v3179
        %v3688 = vpack.c.b16 %v3188, %v3184
        %v3689 = vpack.c.b16 %v3189, %v3185
        %v3690 = vpack.c.b16 %v3190, %v3186
        %v3691 = vpack.c.b16 %v3191, %v3187
        %v3692 = vpack.c.b16 %v3196, %v3192
        %v3693 = vpack.c.b16 %v3197, %v3193
        %v3694 = vpack.c.b16 %v3198, %v3194
        %v3695 = vpack.c.b16 %v3199, %v3195
        %v3696 = vpack.c.b16 %v3204, %v3200
        %v3697 = vpack.c.b16 %v3205, %v3201
        %v3698 = vpack.c.b16 %v3206, %v3202
        %v3699 = vpack.c.b16 %v3207, %v3203
        %v3700 = vpack.c.b16 %v3212, %v3208
        %v3701 = vpack.c.b16 %v3213, %v3209
        %v3702 = vpack.c.b16 %v3214, %v3210
        %v3703 = vpack.c.b16 %v3215, %v3211
        %v3704 = vpack.c.b16 %v3220, %v3216
        %v3705 = vpack.c.b16 %v3221, %v3217
        %v3706 = vpack.c.b16 %v3222, %v3218
        %v3707 = vpack.c.b16 %v3223, %v3219
        %v3708 = vpack.c.b16 %v3228, %v3224
        %v3709 = vpack.c.b16 %v3229, %v3225
        %v3710 = vpack.c.b16 %v3230, %v3226
        %v3711 = vpack.c.b16 %v3231, %v3227
        %v3712 = vpack.c.b16 %v3236, %v3232
        %v3713 = vpack.c.b16 %v3237, %v3233
        %v3714 = vpack.c.b16 %v3238, %v3234
        %v3715 = vpack.c.b16 %v3239, %v3235
        %v3716 = vpack.c.b16 %v3244, %v3240
        %v3717 = vpack.c.b16 %v3245, %v3241
        %v3718 = vpack.c.b16 %v3246, %v3242
        %v3719 = vpack.c.b16 %v3247, %v3243
        %v3720 = vpack.c.b16 %v3252, %v3248
        %v3721 = vpack.c.b16 %v3253, %v3249
        %v3722 = vpack.c.b16 %v3254, %v3250
        %v3723 = vpack.c.b16 %v3255, %v3251
        %v3724 = vpack.c.b16 %v3260, %v3256
        %v3725 = vpack.c.b16 %v3261, %v3257
        %v3726 = vpack.c.b16 %v3262, %v3258
        %v3727 = vpack.c.b16 %v3263, %v3259
        %v3728 = vpack.c.b16 %v3268, %v3264
        %v3729 = vpack.c.b16 %v3269, %v3265
        %v3730 = vpack.c.b16 %v3270, %v3266
        %v3731 = vpack.c.b16 %v3271, %v3267
        %v3732 = vpack.c.b16 %v3276, %v3272
        %v3733 = vpack.c.b16 %v3277, %v3273
        %v3734 = vpack.c.b16 %v3278, %v3274
        %v3735 = vpack.c.b16 %v3279, %v3275
        %v3736 = vpack.c.b16 %v3284, %v3280
        %v3737 = vpack.c.b16 %v3285, %v3281
        %v3738 = vpack.c.b16 %v3286, %v3282
        %v3739 = vpack.c.b16 %v3287, %v3283
        %v3740 = vpack.c.b16 %v3292, %v3288
        %v3741 = vpack.c.b16 %v3293, %v3289
        %v3742 = vpack.c.b16 %v3294, %v3290
        %v3743 = vpack.c.b16 %v3295, %v3291
        %v3744 = vpack.c.b16 %v3300, %v3296
        %v3745 = vpack.c.b16 %v3301, %v3297
        %v3746 = vpack.c.b16 %v3302, %v3298
        %v3747 = vpack.c.b16 %v3303, %v3299
        %v3748 = vpack.c.b16 %v3308, %v3304
        %v3749 = vpack.c.b16 %v3309, %v3305
        %v3750 = vpack.c.b16 %v3310, %v3306
        %v3751 = vpack.c.b16 %v3311, %v3307
        %v3752 = vpack.c.b16 %v3316, %v3312
        %v3753 = vpack.c.b16 %v3317, %v3313
        %v3754 = vpack.c.b16 %v3318, %v3314
        %v3755 = vpack.c.b16 %v3319, %v3315
        %v3756 = vpack.c.b16 %v3324, %v3320
        %v3757 = vpack.c.b16 %v3325, %v3321
        %v3758 = vpack.c.b16 %v3326, %v3322
        %v3759 = vpack.c.b16 %v3327, %v3323
        %v3760 = vpack.c.b16 %v3332, %v3328
        %v3761 = vpack.c.b16 %v3333, %v3329
        %v3762 = vpack.c.b16 %v3334, %v3330
        %v3763 = vpack.c.b16 %v3335, %v3331
        %v3764 = vpack.c.b16 %v3340, %v3336
        %v3765 = vpack.c.b16 %v3341, %v3337
        %v3766 = vpack.c.b16 %v3342, %v3338
        %v3767 = vpack.c.b16 %v3343, %v3339
        %v3768 = vpack.c.b16 %v3348, %v3344
        %v3769 = vpack.c.b16 %v3349, %v3345
        %v3770 = vpack.c.b16 %v3350, %v3346
        %v3771 = vpack.c.b16 %v3351, %v3347
        %v3772 = vpack.c.b16 %v3356, %v3352
        %v3773 = vpack.c.b16 %v3357, %v3353
        %v3774 = vpack.c.b16 %v3358, %v3354
        %v3775 = vpack.c.b16 %v3359, %v3355
        %v3776 = vpack.c.b16 %v3364, %v3360
        %v3777 = vpack.c.b16 %v3365, %v3361
        %v3778 = vpack.c.b16 %v3366, %v3362
        %v3779 = vpack.c.b16 %v3367, %v3363
        %v3780 = vpack.c.b16 %v3372, %v3368
        %v3781 = vpack.c.b16 %v3373, %v3369
        %v3782 = vpack.c.b16 %v3374, %v3370
        %v3783 = vpack.c.b16 %v3375, %v3371
        %v3784 = vpack.c.b16 %v3380, %v3376
        %v3785 = vpack.c.b16 %v3381, %v3377
        %v3786 = vpack.c.b16 %v3382, %v3378
        %v3787 = vpack.c.b16 %v3383, %v3379
        %v3788 = vpack.c.b16 %v3388, %v3384
        %v3789 = vpack.c.b16 %v3389, %v3385
        %v3790 = vpack.c.b16 %v3390, %v3386
        %v3791 = vpack.c.b16 %v3391, %v3387
        %v3792 = vpack.c.b16 %v3396, %v3392
        %v3793 = vpack.c.b16 %v3397, %v3393
        %v3794 = vpack.c.b16 %v3398, %v3394
        %v3795 = vpack.c.b16 %v3399, %v3395
        %v3796 = vpack.c.b16 %v3404, %v3400
        %v3797 = vpack.c.b16 %v3405, %v3401
        %v3798 = vpack.c.b16 %v3406, %v3402
        %v3799 = vpack.c.b16 %v3407, %v3403
        %v3800 = vpack.c.b16 %v3412, %v3408
        %v3801 = vpack.c.b16 %v3413, %v3409
        %v3802 = vpack.c.b16 %v3414, %v3410
        %v3803 = vpack.c.b16 %v3415, %v3411
        %v3804 = vpack.c.b16 %v3420, %v3416
        %v3805 = vpack.c.b16 %v3421, %v3417
        %v3806 = vpack.c.b16 %v3422, %v3418
        %v3807 = vpack.c.b16 %v3423, %v3419
        %v3808 = vpack.c.b16 %v3428, %v3424
        %v3809 = vpack.c.b16 %v3429, %v3425
        %v3810 = vpack.c.b16 %v3430, %v3426
        %v3811 = vpack.c.b16 %v3431, %v3427
        %v3812 = vpack.c.b16 %v3436, %v3432
        %v3813 = vpack.c.b16 %v3437, %v3433
        %v3814 = vpack.c.b16 %v3438, %v3434
        %v3815 = vpack.c.b16 %v3439, %v3435
        %v3816 = vpack.c.b16 %v3444, %v3440
        %v3817 = vpack.c.b16 %v3445, %v3441
        %v3818 = vpack.c.b16 %v3446, %v3442
        %v3819 = vpack.c.b16 %v3447, %v3443
        %v3820 = vpack.c.b16 %v3452, %v3448
        %v3821 = vpack.c.b16 %v3453, %v3449
        %v3822 = vpack.c.b16 %v3454, %v3450
        %v3823 = vpack.c.b16 %v3455, %v3451
        %v3824 = vpack.c.b16 %v3460, %v3456
        %v3825 = vpack.c.b16 %v3461, %v3457
        %v3826 = vpack.c.b16 %v3462, %v3458
        %v3827 = vpack.c.b16 %v3463, %v3459
        %v3828 = vpack.c.b16 %v3468, %v3464
        %v3829 = vpack.c.b16 %v3469, %v3465
        %v3830 = vpack.c.b16 %v3470, %v3466
        %v3831 = vpack.c.b16 %v3471, %v3467
        %v3832 = vpack.c.b16 %v3476, %v3472
        %v3833 = vpack.c.b16 %v3477, %v3473
        %v3834 = vpack.c.b16 %v3478, %v3474
        %v3835 = vpack.c.b16 %v3479, %v3475
        %v3836 = vpack.c.b16 %v3484, %v3480
        %v3837 = vpack.c.b16 %v3485, %v3481
        %v3838 = vpack.c.b16 %v3486, %v3482
        %v3839 = vpack.c.b16 %v3487, %v3483
        %v3840 = vpack.c.b16 %v3492, %v3488
        %v3841 = vpack.c.b16 %v3493, %v3489
        %v3842 = vpack.c.b16 %v3494, %v3490
        %v3843 = vpack.c.b16 %v3495, %v3491
        %v3844 = vpack.c.b16 %v3500, %v3496
        %v3845 = vpack.c.b16 %v3501, %v3497
        %v3846 = vpack.c.b16 %v3502, %v3498
        %v3847 = vpack.c.b16 %v3503, %v3499
        %v3848 = vpack.c.b16 %v3508, %v3504
        %v3849 = vpack.c.b16 %v3509, %v3505
        %v3850 = vpack.c.b16 %v3510, %v3506
        %v3851 = vpack.c.b16 %v3511, %v3507
        %v3852 = vpack.c.b16 %v3516, %v3512
        %v3853 = vpack.c.b16 %v3517, %v3513
        %v3854 = vpack.c.b16 %v3518, %v3514
        %v3855 = vpack.c.b16 %v3519, %v3515
        %v3856 = vpack.c.b16 %v3524, %v3520
        %v3857 = vpack.c.b16 %v3525, %v3521
        %v3858 = vpack.c.b16 %v3526, %v3522
        %v3859 = vpack.c.b16 %v3527, %v3523
        %v3860 = vpack.c.b16 %v3532, %v3528
        %v3861 = vpack.c.b16 %v3533, %v3529
        %v3862 = vpack.c.b16 %v3534, %v3530
        %v3863 = vpack.c.b16 %v3535, %v3531
        %v3864 = vpack.c.b16 %v3540, %v3536
        %v3865 = vpack.c.b16 %v3541, %v3537
        %v3866 = vpack.c.b16 %v3542, %v3538
        %v3867 = vpack.c.b16 %v3543, %v3539
        %v3868 = vpack.c.b16 %v3548, %v3544
        %v3869 = vpack.c.b16 %v3549, %v3545
        %v3870 = vpack.c.b16 %v3550, %v3546
        %v3871 = vpack.c.b16 %v3551, %v3547
        %v3872 = vpack.c.b16 %v3556, %v3552
        %v3873 = vpack.c.b16 %v3557, %v3553
        %v3874 = vpack.c.b16 %v3558, %v3554
        %v3875 = vpack.c.b16 %v3559, %v3555
        %v3876 = vpack.c.b16 %v3564, %v3560
        %v3877 = vpack.c.b16 %v3565, %v3561
        %v3878 = vpack.c.b16 %v3566, %v3562
        %v3879 = vpack.c.b16 %v3567, %v3563
        %v3880 = vpack.c.b16 %v3572, %v3568
        %v3881 = vpack.c.b16 %v3573, %v3569
        %v3882 = vpack.c.b16 %v3574, %v3570
        %v3883 = vpack.c.b16 %v3575, %v3571
        %v3884 = vpack.c.b16 %v3580, %v3576
        %v3885 = vpack.c.b16 %v3581, %v3577
        %v3886 = vpack.c.b16 %v3582, %v3578
        %v3887 = vpack.c.b16 %v3583, %v3579
        %v3888 = vpack.c.b16 %v3588, %v3584
        %v3889 = vpack.c.b16 %v3589, %v3585
        %v3890 = vpack.c.b16 %v3590, %v3586
        %v3891 = vpack.c.b16 %v3591, %v3587
        %v3892 = vpack.c.b16 %v3596, %v3592
        %v3893 = vpack.c.b16 %v3597, %v3593
        %v3894 = vpack.c.b16 %v3598, %v3594
        %v3895 = vpack.c.b16 %v3599, %v3595
        %v3896 = vpack.c.b16 %v3604, %v3600
        %v3897 = vpack.c.b16 %v3605, %v3601
        %v3898 = vpack.c.b16 %v3606, %v3602
        %v3899 = vpack.c.b16 %v3607, %v3603
        %v3900 = vpack.c.b16 %v3612, %v3608
        %v3901 = vpack.c.b16 %v3613, %v3609
        %v3902 = vpack.c.b16 %v3614, %v3610
        %v3903 = vpack.c.b16 %v3615, %v3611
        %v3904 = vpack.c.b16 %v3620, %v3616
        %v3905 = vpack.c.b16 %v3621, %v3617
        %v3906 = vpack.c.b16 %v3622, %v3618
        %v3907 = vpack.c.b16 %v3623, %v3619
        %v3908 = vpack.c.b16 %v3628, %v3624
        %v3909 = vpack.c.b16 %v3629, %v3625
        %v3910 = vpack.c.b16 %v3630, %v3626
        %v3911 = vpack.c.b16 %v3631, %v3627
        %v3912 = vpack.c.b16 %v3636, %v3632
        %v3913 = vpack.c.b16 %v3637, %v3633
        %v3914 = vpack.c.b16 %v3638, %v3634
        %v3915 = vpack.c.b16 %v3639, %v3635
        %v3916 = vpack.c.b16 %v3644, %v3640
        %v3917 = vpack.c.b16 %v3645, %v3641
        %v3918 = vpack.c.b16 %v3646, %v3642
        %v3919 = vpack.c.b16 %v3647, %v3643
        %v3920 = vpack.c.b16 %v3652, %v3648
        %v3921 = vpack.c.b16 %v3653, %v3649
        %v3922 = vpack.c.b16 %v3654, %v3650
        %v3923 = vpack.c.b16 %v3655, %v3651
        %v3924 = vpack.c.b16 %v3660, %v3656
        %v3925 = vpack.c.b16 %v3661, %v3657
        %v3926 = vpack.c.b16 %v3662, %v3658
        %v3927 = vpack.c.b16 %v3663, %v3659
        %v3928 = vpack.c.b16 %v3668, %v3664
        %v3929 = vpack.c.b16 %v3669, %v3665
        %v3930 = vpack.c.b16 %v3670, %v3666
        %v3931 = vpack.c.b16 %v3671, %v3667
        %v3932 = vpack.c.b16 %v3676, %v3672
        %v3933 = vpack.c.b16 %v3677, %v3673
        %v3934 = vpack.c.b16 %v3678, %v3674
        %v3935 = vpack.c.b16 %v3679, %v3675
        %4192 = vmatprep.subr.bf16.mxu0 %v3681
        %4193 = vmatpush1.bf16.msra.mxu0 %v3680
        %4194 = vmatprep.subr.bf16.mxu0 %v3685
        %4195 = vmatpush1.bf16.msra.mxu0 %v3684
        %4196 = vmatprep.subr.bf16.mxu0 %v3689
        %4197 = vmatpush1.bf16.msra.mxu0 %v3688
        %4198 = vmatprep.subr.bf16.mxu0 %v3693
        %4199 = vmatpush1.bf16.msra.mxu0 %v3692
        %4200 = vmatprep.subr.bf16.mxu0 %v3697
        %4201 = vmatpush1.bf16.msra.mxu0 %v3696
        %4202 = vmatprep.subr.bf16.mxu0 %v3701
        %4203 = vmatpush1.bf16.msra.mxu0 %v3700
        %4204 = vmatprep.subr.bf16.mxu0 %v3705
        %4205 = vmatpush1.bf16.msra.mxu0 %v3704
        %4206 = vmatprep.subr.bf16.mxu0 %v3709
        %4207 = vmatpush1.bf16.msra.mxu0 %v3708
        %4208 = vmatprep.subr.bf16.mxu0 %v3713
        %4209 = vmatpush1.bf16.msra.mxu0 %v3712
        %4210 = vmatprep.subr.bf16.mxu0 %v3717
        %4211 = vmatpush1.bf16.msra.mxu0 %v3716
        %4212 = vmatprep.subr.bf16.mxu0 %v3721
        %4213 = vmatpush1.bf16.msra.mxu0 %v3720
        %4214 = vmatprep.subr.bf16.mxu0 %v3725
        %4215 = vmatpush1.bf16.msra.mxu0 %v3724
        %4216 = vmatprep.subr.bf16.mxu0 %v3729
        %4217 = vmatpush1.bf16.msra.mxu0 %v3728
        %4218 = vmatprep.subr.bf16.mxu0 %v3733
        %4219 = vmatpush1.bf16.msra.mxu0 %v3732
        %4220 = vmatprep.subr.bf16.mxu0 %v3737
        %4221 = vmatpush1.bf16.msra.mxu0 %v3736
        %4222 = vmatprep.subr.bf16.mxu0 %v3741
        %4223 = vmatpush1.bf16.msra.mxu0 %v3740
        %4224 = vmatprep.mubr.bf16.mxu0 %v2892
        %4225 = vmatmul.mubr.bf16.gmra.mrb[0].mxu0 %v2878
        %v4226 = vpop.f32.mrb[0].mxu0
        %v4227 = vadd.f32 %v2837, %v4226
        %v4228 = vpop.f32.mrb[0].mxu0
        %v4229 = vadd.f32 %v2841, %v4228
        %v4230 = vpop.f32.mrb[0].mxu0
        %v4231 = vpop.f32.mrb[0].mxu0
        %4232 = vdwg.mxu0
        %4233 = vmatprep.subr.bf16.mxu0 %v3745
        %4234 = vmatpush1.bf16.msra.mxu0 %v3744
        %4235 = vmatprep.subr.bf16.mxu0 %v3749
        %4236 = vmatpush1.bf16.msra.mxu0 %v3748
        %4237 = vmatprep.subr.bf16.mxu0 %v3753
        %4238 = vmatpush1.bf16.msra.mxu0 %v3752
        %4239 = vmatprep.subr.bf16.mxu0 %v3757
        %4240 = vmatpush1.bf16.msra.mxu0 %v3756
        %4241 = vmatprep.subr.bf16.mxu0 %v3761
        %4242 = vmatpush1.bf16.msra.mxu0 %v3760
        %4243 = vmatprep.subr.bf16.mxu0 %v3765
        %4244 = vmatpush1.bf16.msra.mxu0 %v3764
        %4245 = vmatprep.subr.bf16.mxu0 %v3769
        %4246 = vmatpush1.bf16.msra.mxu0 %v3768
        %4247 = vmatprep.subr.bf16.mxu0 %v3773
        %4248 = vmatpush1.bf16.msra.mxu0 %v3772
        %4249 = vmatprep.subr.bf16.mxu0 %v3777
        %4250 = vmatpush1.bf16.msra.mxu0 %v3776
        %4251 = vmatprep.subr.bf16.mxu0 %v3781
        %4252 = vmatpush1.bf16.msra.mxu0 %v3780
        %4253 = vmatprep.subr.bf16.mxu0 %v3785
        %4254 = vmatpush1.bf16.msra.mxu0 %v3784
        %4255 = vmatprep.subr.bf16.mxu0 %v3789
        %4256 = vmatpush1.bf16.msra.mxu0 %v3788
        %4257 = vmatprep.subr.bf16.mxu0 %v3793
        %4258 = vmatpush1.bf16.msra.mxu0 %v3792
        %4259 = vmatprep.subr.bf16.mxu0 %v3797
        %4260 = vmatpush1.bf16.msra.mxu0 %v3796
        %4261 = vmatprep.subr.bf16.mxu0 %v3801
        %4262 = vmatpush1.bf16.msra.mxu0 %v3800
        %4263 = vmatprep.subr.bf16.mxu0 %v3805
        %4264 = vmatpush1.bf16.msra.mxu0 %v3804
        %4265 = vmatprep.mubr.bf16.mxu0 %v2902
        %4266 = vmatmul.mubr.bf16.gmra.mrb[0].mxu0 %v2900
        %v4267 = vpop.f32.mrb[0].mxu0
        %v4268 = vadd.f32 %v4227, %v4267
        %v4269 = vpop.f32.mrb[0].mxu0
        %v4270 = vadd.f32 %v4229, %v4269
        %v4271 = vpop.f32.mrb[0].mxu0
        %v4272 = vpop.f32.mrb[0].mxu0
        %4273 = vdwg.mxu0
        %4274 = vmatprep.subr.bf16.mxu0 %v3809
        %4275 = vmatpush1.bf16.msra.mxu0 %v3808
        %4276 = vmatprep.subr.bf16.mxu0 %v3813
        %4277 = vmatpush1.bf16.msra.mxu0 %v3812
        %4278 = vmatprep.subr.bf16.mxu0 %v3817
        %4279 = vmatpush1.bf16.msra.mxu0 %v3816
        %4280 = vmatprep.subr.bf16.mxu0 %v3821
        %4281 = vmatpush1.bf16.msra.mxu0 %v3820
        %4282 = vmatprep.subr.bf16.mxu0 %v3825
        %4283 = vmatpush1.bf16.msra.mxu0 %v3824
        %4284 = vmatprep.subr.bf16.mxu0 %v3829
        %4285 = vmatpush1.bf16.msra.mxu0 %v3828
        %4286 = vmatprep.subr.bf16.mxu0 %v3833
        %4287 = vmatpush1.bf16.msra.mxu0 %v3832
        %4288 = vmatprep.subr.bf16.mxu0 %v3837
        %4289 = vmatpush1.bf16.msra.mxu0 %v3836
        %4290 = vmatprep.subr.bf16.mxu0 %v3841
        %4291 = vmatpush1.bf16.msra.mxu0 %v3840
        %4292 = vmatprep.subr.bf16.mxu0 %v3845
        %4293 = vmatpush1.bf16.msra.mxu0 %v3844
        %4294 = vmatprep.subr.bf16.mxu0 %v3849
        %4295 = vmatpush1.bf16.msra.mxu0 %v3848
        %4296 = vmatprep.subr.bf16.mxu0 %v3853
        %4297 = vmatpush1.bf16.msra.mxu0 %v3852
        %4298 = vmatprep.subr.bf16.mxu0 %v3857
        %4299 = vmatpush1.bf16.msra.mxu0 %v3856
        %4300 = vmatprep.subr.bf16.mxu0 %v3861
        %4301 = vmatpush1.bf16.msra.mxu0 %v3860
        %4302 = vmatprep.subr.bf16.mxu0 %v3865
        %4303 = vmatpush1.bf16.msra.mxu0 %v3864
        %4304 = vmatprep.subr.bf16.mxu0 %v3869
        %4305 = vmatpush1.bf16.msra.mxu0 %v3868
        %4306 = vmatprep.mubr.bf16.mxu0 %v2899
        %4307 = vmatmul.mubr.bf16.gmra.mrb[0].mxu0 %v2885
        %v4308 = vpop.f32.mrb[0].mxu0
        %v4309 = vadd.f32 %v4268, %v4308
        %v4310 = vpop.f32.mrb[0].mxu0
        %v4311 = vadd.f32 %v4270, %v4310
        %v4312 = vpop.f32.mrb[0].mxu0
        %v4313 = vpop.f32.mrb[0].mxu0
        %4314 = vdwg.mxu0
        %4315 = vmatprep.subr.bf16.mxu0 %v3873
        %4316 = vmatpush1.bf16.msra.mxu0 %v3872
        %4317 = vmatprep.subr.bf16.mxu0 %v3877
        %4318 = vmatpush1.bf16.msra.mxu0 %v3876
        %4319 = vmatprep.subr.bf16.mxu0 %v3881
        %4320 = vmatpush1.bf16.msra.mxu0 %v3880
        %4321 = vmatprep.subr.bf16.mxu0 %v3885
        %4322 = vmatpush1.bf16.msra.mxu0 %v3884
        %4323 = vmatprep.subr.bf16.mxu0 %v3889
        %4324 = vmatpush1.bf16.msra.mxu0 %v3888
        %4325 = vmatprep.subr.bf16.mxu0 %v3893
        %4326 = vmatpush1.bf16.msra.mxu0 %v3892
        %4327 = vmatprep.subr.bf16.mxu0 %v3897
        %4328 = vmatpush1.bf16.msra.mxu0 %v3896
        %4329 = vmatprep.subr.bf16.mxu0 %v3901
        %4330 = vmatpush1.bf16.msra.mxu0 %v3900
        %4331 = vmatprep.subr.bf16.mxu0 %v3905
        %4332 = vmatpush1.bf16.msra.mxu0 %v3904
        %4333 = vmatprep.subr.bf16.mxu0 %v3909
        %4334 = vmatpush1.bf16.msra.mxu0 %v3908
        %4335 = vmatprep.subr.bf16.mxu0 %v3913
        %4336 = vmatpush1.bf16.msra.mxu0 %v3912
        %4337 = vmatprep.subr.bf16.mxu0 %v3917
        %4338 = vmatpush1.bf16.msra.mxu0 %v3916
        %4339 = vmatprep.subr.bf16.mxu0 %v3921
        %4340 = vmatpush1.bf16.msra.mxu0 %v3920
        %4341 = vmatprep.subr.bf16.mxu0 %v3925
        %4342 = vmatpush1.bf16.msra.mxu0 %v3924
        %4343 = vmatprep.subr.bf16.mxu0 %v3929
        %4344 = vmatpush1.bf16.msra.mxu0 %v3928
        %4345 = vmatprep.subr.bf16.mxu0 %v3933
        %4346 = vmatpush1.bf16.msra.mxu0 %v3932
        %4347 = vmatprep.mubr.bf16.mxu0 %v2903
        %4348 = vmatmul.mubr.bf16.gmra.mrb[0].mxu0 %v2901
        %v4349 = vpop.f32.mrb[0].mxu0
        %v4350 = vadd.f32 %v4309, %v4349
        %v4351 = vpop.f32.mrb[0].mxu0
        %v4352 = vadd.f32 %v4311, %v4351
        %v4353 = vpop.f32.mrb[0].mxu0
        %v4354 = vpop.f32.mrb[0].mxu0
        %4355 = vdwg.mxu0
        %4356 = vmatprep.subr.bf16.mxu0 %v3683
        %4357 = vmatpush1.bf16.msra.mxu0 %v3682
        %4358 = vmatprep.subr.bf16.mxu0 %v3687
        %4359 = vmatpush1.bf16.msra.mxu0 %v3686
        %4360 = vmatprep.subr.bf16.mxu0 %v3691
        %4361 = vmatpush1.bf16.msra.mxu0 %v3690
        %4362 = vmatprep.subr.bf16.mxu0 %v3695
        %4363 = vmatpush1.bf16.msra.mxu0 %v3694
        %4364 = vmatprep.subr.bf16.mxu0 %v3699
        %4365 = vmatpush1.bf16.msra.mxu0 %v3698
        %4366 = vmatprep.subr.bf16.mxu0 %v3703
        %4367 = vmatpush1.bf16.msra.mxu0 %v3702
        %4368 = vmatprep.subr.bf16.mxu0 %v3707
        %4369 = vmatpush1.bf16.msra.mxu0 %v3706
        %4370 = vmatprep.subr.bf16.mxu0 %v3711
        %4371 = vmatpush1.bf16.msra.mxu0 %v3710
        %4372 = vmatprep.subr.bf16.mxu0 %v3715
        %4373 = vmatpush1.bf16.msra.mxu0 %v3714
        %4374 = vmatprep.subr.bf16.mxu0 %v3719
        %4375 = vmatpush1.bf16.msra.mxu0 %v3718
        %4376 = vmatprep.subr.bf16.mxu0 %v3723
        %4377 = vmatpush1.bf16.msra.mxu0 %v3722
        %4378 = vmatprep.subr.bf16.mxu0 %v3727
        %4379 = vmatpush1.bf16.msra.mxu0 %v3726
        %4380 = vmatprep.subr.bf16.mxu0 %v3731
        %4381 = vmatpush1.bf16.msra.mxu0 %v3730
        %4382 = vmatprep.subr.bf16.mxu0 %v3735
        %4383 = vmatpush1.bf16.msra.mxu0 %v3734
        %4384 = vmatprep.subr.bf16.mxu0 %v3739
        %4385 = vmatpush1.bf16.msra.mxu0 %v3738
        %4386 = vmatprep.subr.bf16.mxu0 %v3743
        %4387 = vmatpush1.bf16.msra.mxu0 %v3742
        %4388 = vmatprep.mubr.bf16.mxu0 %v2892
        %4389 = vmatmul.mubr.bf16.gmra.mrb[0].mxu0 %v2878
        %v4390 = vpop.f32.mrb[0].mxu0
        %v4391 = vadd.f32 %v2845, %v4390
        %v4392 = vpop.f32.mrb[0].mxu0
        %v4393 = vadd.f32 %v2849, %v4392
        %v4394 = vpop.f32.mrb[0].mxu0
        %v4395 = vpop.f32.mrb[0].mxu0
        %4396 = vdwg.mxu0
        %4397 = vmatprep.subr.bf16.mxu0 %v3747
        %4398 = vmatpush1.bf16.msra.mxu0 %v3746
        %4399 = vmatprep.subr.bf16.mxu0 %v3751
        %4400 = vmatpush1.bf16.msra.mxu0 %v3750
        %4401 = vmatprep.subr.bf16.mxu0 %v3755
        %4402 = vmatpush1.bf16.msra.mxu0 %v3754
        %4403 = vmatprep.subr.bf16.mxu0 %v3759
        %4404 = vmatpush1.bf16.msra.mxu0 %v3758
        %4405 = vmatprep.subr.bf16.mxu0 %v3763
        %4406 = vmatpush1.bf16.msra.mxu0 %v3762
        %4407 = vmatprep.subr.bf16.mxu0 %v3767
        %4408 = vmatpush1.bf16.msra.mxu0 %v3766
        %4409 = vmatprep.subr.bf16.mxu0 %v3771
        %4410 = vmatpush1.bf16.msra.mxu0 %v3770
        %4411 = vmatprep.subr.bf16.mxu0 %v3775
        %4412 = vmatpush1.bf16.msra.mxu0 %v3774
        %4413 = vmatprep.subr.bf16.mxu0 %v3779
        %4414 = vmatpush1.bf16.msra.mxu0 %v3778
        %4415 = vmatprep.subr.bf16.mxu0 %v3783
        %4416 = vmatpush1.bf16.msra.mxu0 %v3782
        %4417 = vmatprep.subr.bf16.mxu0 %v3787
        %4418 = vmatpush1.bf16.msra.mxu0 %v3786
        %4419 = vmatprep.subr.bf16.mxu0 %v3791
        %4420 = vmatpush1.bf16.msra.mxu0 %v3790
        %4421 = vmatprep.subr.bf16.mxu0 %v3795
        %4422 = vmatpush1.bf16.msra.mxu0 %v3794
        %4423 = vmatprep.subr.bf16.mxu0 %v3799
        %4424 = vmatpush1.bf16.msra.mxu0 %v3798
        %4425 = vmatprep.subr.bf16.mxu0 %v3803
        %4426 = vmatpush1.bf16.msra.mxu0 %v3802
        %4427 = vmatprep.subr.bf16.mxu0 %v3807
        %4428 = vmatpush1.bf16.msra.mxu0 %v3806
        %4429 = vmatprep.mubr.bf16.mxu0 %v2902
        %4430 = vmatmul.mubr.bf16.gmra.mrb[0].mxu0 %v2900
        %v4431 = vpop.f32.mrb[0].mxu0
        %v4432 = vadd.f32 %v4391, %v4431
        %v4433 = vpop.f32.mrb[0].mxu0
        %v4434 = vadd.f32 %v4393, %v4433
        %v4435 = vpop.f32.mrb[0].mxu0
        %v4436 = vpop.f32.mrb[0].mxu0
        %4437 = vdwg.mxu0
        %4438 = vmatprep.subr.bf16.mxu0 %v3811
        %4439 = vmatpush1.bf16.msra.mxu0 %v3810
        %4440 = vmatprep.subr.bf16.mxu0 %v3815
        %4441 = vmatpush1.bf16.msra.mxu0 %v3814
        %4442 = vmatprep.subr.bf16.mxu0 %v3819
        %4443 = vmatpush1.bf16.msra.mxu0 %v3818
        %4444 = vmatprep.subr.bf16.mxu0 %v3823
        %4445 = vmatpush1.bf16.msra.mxu0 %v3822
        %4446 = vmatprep.subr.bf16.mxu0 %v3827
        %4447 = vmatpush1.bf16.msra.mxu0 %v3826
        %4448 = vmatprep.subr.bf16.mxu0 %v3831
        %4449 = vmatpush1.bf16.msra.mxu0 %v3830
        %4450 = vmatprep.subr.bf16.mxu0 %v3835
        %4451 = vmatpush1.bf16.msra.mxu0 %v3834
        %4452 = vmatprep.subr.bf16.mxu0 %v3839
        %4453 = vmatpush1.bf16.msra.mxu0 %v3838
        %4454 = vmatprep.subr.bf16.mxu0 %v3843
        %4455 = vmatpush1.bf16.msra.mxu0 %v3842
        %4456 = vmatprep.subr.bf16.mxu0 %v3847
        %4457 = vmatpush1.bf16.msra.mxu0 %v3846
        %4458 = vmatprep.subr.bf16.mxu0 %v3851
        %4459 = vmatpush1.bf16.msra.mxu0 %v3850
        %4460 = vmatprep.subr.bf16.mxu0 %v3855
        %4461 = vmatpush1.bf16.msra.mxu0 %v3854
        %4462 = vmatprep.subr.bf16.mxu0 %v3859
        %4463 = vmatpush1.bf16.msra.mxu0 %v3858
        %4464 = vmatprep.subr.bf16.mxu0 %v3863
        %4465 = vmatpush1.bf16.msra.mxu0 %v3862
        %4466 = vmatprep.subr.bf16.mxu0 %v3867
        %4467 = vmatpush1.bf16.msra.mxu0 %v3866
        %4468 = vmatprep.subr.bf16.mxu0 %v3871
        %4469 = vmatpush1.bf16.msra.mxu0 %v3870
        %4470 = vmatprep.mubr.bf16.mxu0 %v2899
        %4471 = vmatmul.mubr.bf16.gmra.mrb[0].mxu0 %v2885
        %v4472 = vpop.f32.mrb[0].mxu0
        %v4473 = vadd.f32 %v4432, %v4472
        %v4474 = vpop.f32.mrb[0].mxu0
        %v4475 = vadd.f32 %v4434, %v4474
        %v4476 = vpop.f32.mrb[0].mxu0
        %v4477 = vpop.f32.mrb[0].mxu0
        %4478 = vdwg.mxu0
        %4479 = vmatprep.subr.bf16.mxu0 %v3875
        %4480 = vmatpush1.bf16.msra.mxu0 %v3874
        %4481 = vmatprep.subr.bf16.mxu0 %v3879
        %4482 = vmatpush1.bf16.msra.mxu0 %v3878
        %4483 = vmatprep.subr.bf16.mxu0 %v3883
        %4484 = vmatpush1.bf16.msra.mxu0 %v3882
        %4485 = vmatprep.subr.bf16.mxu0 %v3887
        %4486 = vmatpush1.bf16.msra.mxu0 %v3886
        %4487 = vmatprep.subr.bf16.mxu0 %v3891
        %4488 = vmatpush1.bf16.msra.mxu0 %v3890
        %4489 = vmatprep.subr.bf16.mxu0 %v3895
        %4490 = vmatpush1.bf16.msra.mxu0 %v3894
        %4491 = vmatprep.subr.bf16.mxu0 %v3899
        %4492 = vmatpush1.bf16.msra.mxu0 %v3898
        %4493 = vmatprep.subr.bf16.mxu0 %v3903
        %4494 = vmatpush1.bf16.msra.mxu0 %v3902
        %4495 = vmatprep.subr.bf16.mxu0 %v3907
        %4496 = vmatpush1.bf16.msra.mxu0 %v3906
        %4497 = vmatprep.subr.bf16.mxu0 %v3911
        %4498 = vmatpush1.bf16.msra.mxu0 %v3910
        %4499 = vmatprep.subr.bf16.mxu0 %v3915
        %4500 = vmatpush1.bf16.msra.mxu0 %v3914
        %4501 = vmatprep.subr.bf16.mxu0 %v3919
        %4502 = vmatpush1.bf16.msra.mxu0 %v3918
        %4503 = vmatprep.subr.bf16.mxu0 %v3923
        %4504 = vmatpush1.bf16.msra.mxu0 %v3922
        %4505 = vmatprep.subr.bf16.mxu0 %v3927
        %4506 = vmatpush1.bf16.msra.mxu0 %v3926
        %4507 = vmatprep.subr.bf16.mxu0 %v3931
        %4508 = vmatpush1.bf16.msra.mxu0 %v3930
        %4509 = vmatprep.subr.bf16.mxu0 %v3935
        %4510 = vmatpush1.bf16.msra.mxu0 %v3934
        %4511 = vmatprep.mubr.bf16.mxu0 %v2903
        %4512 = vmatmul.mubr.bf16.gmra.mrb[0].mxu0 %v2901
        %v4513 = vpop.f32.mrb[0].mxu0
        %v4514 = vadd.f32 %v4473, %v4513
        %v4515 = vpop.f32.mrb[0].mxu0
        %v4516 = vadd.f32 %v4475, %v4515
        %v4517 = vpop.f32.mrb[0].mxu0
        %v4518 = vpop.f32.mrb[0].mxu0
        %4519 = vdwg.mxu0
        %v4520 = vxor.u32 %v4350, 2147483648
        %v4521 = vxor.u32 %v4352, 2147483648
        %v4522 = vxor.u32 %v4514, 2147483648
        %v4523 = vxor.u32 %v4516, 2147483648
        %v4524 = vmul.f32 %v4520, 1.442695
        %v4525 = vpow.pop %v4524
        %v4526 = vmul.f32 %v4521, 1.442695
        %v4527 = vpow.pop %v4526
        %v4528 = vmul.f32 %v4522, 1.442695
        %v4529 = vpow.pop %v4528
        %v4530 = vmul.f32 %v4523, 1.442695
        %v4531 = vpow.pop %v4530
        %v4532 = vadd.f32 %v4525, 1.0
        %v4533 = vadd.f32 %v4527, 1.0
        %v4534 = vadd.f32 %v4529, 1.0
        %v4535 = vadd.f32 %v4531, 1.0
        %v4536 = vrcp.pop %v4532
        %v4537 = vmul.f32 1.0, %v4536
        %v4538 = vrcp.pop %v4533
        %v4539 = vmul.f32 1.0, %v4538
        %v4540 = vrcp.pop %v4534
        %v4541 = vmul.f32 1.0, %v4540
        %v4542 = vrcp.pop %v4535
        %v4543 = vmul.f32 1.0, %v4542
        %v4548 = vcombine.low %v4537, %v4539
        %v4549 = vcombine.low %v4541, %v4543
        %v4551 = vunpack.c.l.s4 1983009808
        %v4552 = vunpack.c.0.s8 %v4551
        %v4553 = vlaneseq
        %v4554 = vshrl.u32 %v4553, 7
        %v4555 = vsub.s32 %v4552, %v4554
        %v4556 = vrot.slane %v4548, %v4555
        %v4558 = vunpack.c.l.s4 1983009808
        %v4559 = vunpack.c.0.s8 %v4558
        %v4560 = vlaneseq
        %v4561 = vshrl.u32 %v4560, 7
        %v4562 = vsub.s32 %v4559, %v4561
        %v4563 = vrot.slane %v4549, %v4562
        %v4564 = vcombine.low %v4556, %v4563
        %4566 = vst [vmem:[%s419] sm:$0xff] %v4564
        %s4567 = sand.u32 %s211, 1
        %s4568 = scalar_lea.sflag [#allocation5], %s4567
        %s4569 = sand.u32 %s211, 1
        %s4570 = smul.addr %s4569, 8
        %s4571 = scalar_lea.vmem [#allocation15], %s4570
        // Predicated region
        $region81: #{tpu_custom_call.1} parent=47 // pred_check
          %p4572 = pneg %p221
        $region82: #{tpu_custom_call.1} parent=47 // pred_check_branch
          %4574 = sbr.rel (%p4572) target = $region84
        $region83: #{tpu_custom_call.1} parent=47 // pred_region
          %s4575 = smul.u32 4, %s32
          %s4577 = ssub.s32 128, 128
          %4578 = vsyncadd %s4568, %s4577
          %s4579 = smul.addr %s31, 20
          %s4580 = sadd.s32 %s4575, %s4579
          %s4581 = smul.addr %s4580, 32
          %s4582 = scalar_lea.hbm %s7, %s4581
          %s4584 = sshll.u32 %s4571, 4
          %s4585 = int_to_ptr.vmem [resolvable:$true] %s4584
          %4587 = dma.vmem_to_hbm [thread:$0]  %s4585, 128, %s4582, %s4568
        $region84: #{tpu_custom_call.1} parent=47 // pred_fallthru
          _
      $region48: #{tpu_custom_call.1} parent=5 // pred_fallthru
        _
      %p4588 = scmp.le.s32.totalorder 2, %s22
      // Predicated region
      $region85: #{tpu_custom_call.1} parent=5 // pred_check
        %p4589 = pneg %p4588
      $region86: #{tpu_custom_call.1} parent=5 // pred_check_branch
        %4591 = sbr.rel (%p4589) target = $region88
      $region87: #{tpu_custom_call.1} parent=5 // pred_region
        %s4592 = ssub.s32 %s22, 2
        // Predicated region
        $region89: #{tpu_custom_call.1} parent=87 // pred_check
          %p4593 = pneg %p227
        $region90: #{tpu_custom_call.1} parent=87 // pred_check_branch
          %4595 = sbr.rel (%p4593) target = $region92
        $region91: #{tpu_custom_call.1} parent=87 // pred_region
          %s4596 = sand.u32 %s212, 1
          %s4597 = scalar_lea.sflag [#allocation5], %s4596
          %s4598 = sand.u32 %s212, 1
          %s4599 = smul.addr %s4598, 8
          %s4600 = scalar_lea.vmem [#allocation15], %s4599
          %4601 = dma.done %s4597, 128
        $region92: #{tpu_custom_call.1} parent=87 // pred_fallthru
          _
      $region88: #{tpu_custom_call.1} parent=5 // pred_fallthru
        _
    $region6: #{tpu_custom_call.1} parent=1 // loop_footer
      %s26 = sadd.s32 1, %s22
    $region7: #{tpu_custom_call.1} parent=1 // loop_footer_branch
      %21 = sbr.rel target = $region3
    $region8: #{tpu_custom_call.1} parent=1 // loop_exit
      _
    %4602 = vsyncpa [#allocation4], 1
    %s4603 = scalar_lea.sflag [#allocation4], 1
    %4604 = vsyncpa %s4603, 1
    %4605 = vsyncpa [#allocation7], 1
    %4606 = vsyncpa [#allocation10], 1
    %4607 = vsyncpa [#allocation13], 1
    %s4608 = scalar_lea.sflag [#allocation13], 1
    %4609 = vsyncpa %s4608, 1
    %4610 = vsyncpa [#allocation5], 1
    %s4611 = scalar_lea.sflag [#allocation5], 1
    %4612 = vsyncpa %s4611, 1

</llo_original>
